<compile_context>
chip_gen: v7x
topology: tpu7x:2x2x1
jax: 0.10.0
libtpu: 0.0.40
codegen_flags: <defaults>
</compile_context>

<pallas_src>
import functools

import jax
import jax.numpy as jnp
from jax.experimental import pallas as pl
from jax.experimental.pallas import tpu as pltpu

_BN_EPS = 1e-5
_LANE = 128                      # output channels padded to a lane multiple
_VMEM_LIMIT = 48 * 1024 * 1024   # explicit scoped-VMEM cap (fits v5e/v6e/v7x)


def _round_up(x, m):
    return (x + m - 1) // m * m


# ---------------------------------------------------------------------------
# Pallas kernels
# ---------------------------------------------------------------------------
def _conv_stats_kernel(x_ref, w_ref, y_ref, st_ref, *, taps, ho, wo, cin, cp):
    """Conv for one image.  Taps are gathered in-kernel from the (phase-split,
    halo-padded) NHWC block -- no im2col tensor in HBM.  Emits the pre-BN output
    in bf16 plus per-image (sum, sum_of_squares) BN partials in f32."""
    x = x_ref[...].astype(jnp.float32)            # slice/reshape in f32 layouts
    acc = jnp.zeros((ho * wo, cp), jnp.float32)
    for t, (p, dh, dw) in enumerate(taps):
        patch = x[p, dh:dh + ho, dw:dw + wo, :].reshape(ho * wo, cin)
        acc = acc + jnp.dot(patch.astype(jnp.bfloat16), w_ref[t],
                            preferred_element_type=jnp.float32)
    y_ref[...] = acc.reshape(1, ho, wo, cp).astype(y_ref.dtype)   # bf16 store
    s1 = jnp.sum(acc, axis=0, keepdims=True)
    s2 = jnp.sum(acc * acc, axis=0, keepdims=True)
    st_ref[...] = jnp.concatenate([s1, s2], axis=0)


def _bn_relu_pad_kernel(y_ref, sc_ref, sh_ref, o_ref, *, ho, wo, cp):
    """out1 = relu(y * scale + shift), emitted as a spatially halo-padded bf16
    block so conv2 consumes it directly (no wrapper-side jnp.pad pass)."""
    v = jnp.maximum(y_ref[...].astype(jnp.float32) * sc_ref[...] + sh_ref[...],
                    0.0)                                     # (1, ho, wo, cp)
    zc = jnp.zeros((1, ho, 1, cp), jnp.float32)
    v = jnp.concatenate([zc, v, zc], axis=2)                 # W halo
    zr = jnp.zeros((1, 1, wo + 2, cp), jnp.float32)
    v = jnp.concatenate([zr, v, zr], axis=1)                 # H halo
    o_ref[...] = v.astype(o_ref.dtype)                       # aligned full store


def _fused_proj_kernel(y_ref, s_ref, sc2_ref, sh2_ref, scs_ref, shs_ref, o_ref):
    """out = relu(bn2(conv2) + bn_s(conv_s))   (projection shortcut)."""
    main = y_ref[...].astype(jnp.float32) * sc2_ref[...] + sh2_ref[...]
    short = s_ref[...].astype(jnp.float32) * scs_ref[...] + shs_ref[...]
    o_ref[...] = jnp.maximum(main + short, 0.0)


def _fused_identity_kernel(y_ref, x_ref, sc2_ref, sh2_ref, o_ref, *,
                           ho, wo, cin, cp):
    """out = relu(bn2(conv2) + x)   (identity shortcut, specialised: no shortcut
    scale/shift; x's channel padding to cp handled in-kernel)."""
    main = y_ref[...].astype(jnp.float32) * sc2_ref[...] + sh2_ref[...]
    s = x_ref[...].astype(jnp.float32)[:, 1:1 + ho, 1:1 + wo, :]
    if cin == cp:
        o_ref[...] = jnp.maximum(main + s, 0.0)
    else:
        o_ref[...] = jnp.maximum(main, 0.0)
        o_ref[:, :, :, :cin] = jnp.maximum(main[:, :, :, :cin] + s, 0.0)


# ---------------------------------------------------------------------------
# pallas_call dispatchers
# ---------------------------------------------------------------------------
def _conv_bn_stats(x_in, w_taps, *, n, blk, sel_stride, sel_off,
                   hh, wh, cin, ho, wo, cp, taps):
    nt = len(taps)
    kernel = functools.partial(_conv_stats_kernel, taps=tuple(taps),
                               ho=ho, wo=wo, cin=cin, cp=cp)
    flops = 2 * n * ho * wo * nt * cin * cp
    bytes_accessed = int(n * blk * hh * wh * cin * 2 + w_taps.size * 2
                         + n * ho * wo * cp * 2 + n * 2 * cp * 4)
    return pl.pallas_call(
        kernel,
        out_shape=(jax.ShapeDtypeStruct((n, ho, wo, cp), jnp.bfloat16),
                   jax.ShapeDtypeStruct((n, 2, cp), jnp.float32)),
        grid_spec=pltpu.PrefetchScalarGridSpec(
            num_scalar_prefetch=0,
            grid=(n,),
            in_specs=[
                pl.BlockSpec((blk, hh, wh, cin),
                             lambda b: (b * sel_stride + sel_off, 0, 0, 0)),
                # whole weight tensor: same block every step -> stays resident
                pl.BlockSpec((nt, cin, cp), lambda b: (0, 0, 0)),
            ],
            out_specs=(pl.BlockSpec((1, ho, wo, cp), lambda b: (b, 0, 0, 0)),
                       pl.BlockSpec((None, 2, cp), lambda b: (b, 0, 0)))),
        compiler_params=pltpu.CompilerParams(
            dimension_semantics=("parallel",),
            vmem_limit_bytes=_VMEM_LIMIT),
        cost_estimate=pl.CostEstimate(flops=flops, transcendentals=0,
                                      bytes_accessed=bytes_accessed),
    )(x_in, w_taps)


def _bn_relu_pad(y, scale, shift, *, n, ho, wo, cp):
    kernel = functools.partial(_bn_relu_pad_kernel, ho=ho, wo=wo, cp=cp)
    return pl.pallas_call(
        kernel,
        out_shape=jax.ShapeDtypeStruct((n, ho + 2, wo + 2, cp), jnp.bfloat16),
        grid_spec=pltpu.PrefetchScalarGridSpec(
            num_scalar_prefetch=0, grid=(n,),
            in_specs=[pl.BlockSpec((1, ho, wo, cp), lambda b: (b, 0, 0, 0)),
                      pl.BlockSpec((1, cp), lambda b: (0, 0)),
                      pl.BlockSpec((1, cp), lambda b: (0, 0))],
            out_specs=pl.BlockSpec((1, ho + 2, wo + 2, cp),
                                   lambda b: (b, 0, 0, 0))),
        compiler_params=pltpu.CompilerParams(dimension_semantics=("parallel",),
                                             vmem_limit_bytes=_VMEM_LIMIT),
    )(y, scale, shift)


def _fused_output_proj(y2, ys, sc2, sh2, scs, shs, *, n, ho, wo, cp):
    return pl.pallas_call(
        _fused_proj_kernel,
        out_shape=jax.ShapeDtypeStruct((n, ho, wo, cp), jnp.float32),
        grid_spec=pltpu.PrefetchScalarGridSpec(
            num_scalar_prefetch=0, grid=(n,),
            in_specs=[pl.BlockSpec((1, ho, wo, cp), lambda b: (b, 0, 0, 0)),
                      pl.BlockSpec((1, ho, wo, cp), lambda b: (b, 0, 0, 0)),
                      pl.BlockSpec((1, cp), lambda b: (0, 0)),
                      pl.BlockSpec((1, cp), lambda b: (0, 0)),
                      pl.BlockSpec((1, cp), lambda b: (0, 0)),
                      pl.BlockSpec((1, cp), lambda b: (0, 0))],
            out_specs=pl.BlockSpec((1, ho, wo, cp), lambda b: (b, 0, 0, 0))),
        compiler_params=pltpu.CompilerParams(dimension_semantics=("parallel",),
                                             vmem_limit_bytes=_VMEM_LIMIT),
    )(y2, ys, sc2, sh2, scs, shs)


def _fused_output_identity(y2, x_pad, sc2, sh2, *, n, ho, wo, cin, cp):
    kernel = functools.partial(_fused_identity_kernel, ho=ho, wo=wo,
                               cin=cin, cp=cp)
    return pl.pallas_call(
        kernel,
        out_shape=jax.ShapeDtypeStruct((n, ho, wo, cp), jnp.float32),
        grid_spec=pltpu.PrefetchScalarGridSpec(
            num_scalar_prefetch=0, grid=(n,),
            in_specs=[pl.BlockSpec((1, ho, wo, cp), lambda b: (b, 0, 0, 0)),
                      pl.BlockSpec((1, ho + 2, wo + 2, cin),
                                   lambda b: (b, 0, 0, 0)),
                      pl.BlockSpec((1, cp), lambda b: (0, 0)),
                      pl.BlockSpec((1, cp), lambda b: (0, 0))],
            out_specs=pl.BlockSpec((1, ho, wo, cp), lambda b: (b, 0, 0, 0))),
        compiler_params=pltpu.CompilerParams(dimension_semantics=("parallel",),
                                             vmem_limit_bytes=_VMEM_LIMIT),
    )(y2, x_pad, sc2, sh2)


# ---------------------------------------------------------------------------
# Wrapper-side glue (tiny per-channel math only)
# ---------------------------------------------------------------------------
def _bn_fold(gamma, beta, stats, count, cp):
    """Reduce per-image partial stats and fold BN into scale/shift (f32)."""
    ssum = stats[:, 0, :].sum(axis=0, keepdims=True)
    ssq = stats[:, 1, :].sum(axis=0, keepdims=True)
    mean = ssum / count
    var = jnp.maximum(ssq / count - mean * mean, 0.0)   # clamp cancellation
    g = jnp.pad(gamma, ((0, 0), (0, cp - gamma.shape[1])))
    b = jnp.pad(beta, ((0, 0), (0, cp - beta.shape[1])))
    scale = g * jax.lax.rsqrt(var + _BN_EPS)
    shift = b - mean * scale
    return scale, shift


def _prep_w(w, cin_tap, cp):
    """(kh,kw,ci,co) -> (kh*kw, cin_tap, cp) bf16, zero-padded channels."""
    kh, kw, ci, _ = w.shape
    co = w.shape[-1]
    w = jnp.pad(w, ((0, 0), (0, 0), (0, cin_tap - ci), (0, cp - co)))
    return w.reshape(kh * kw, cin_tap, cp).astype(jnp.bfloat16)


def basic_block_forward(params, x_nchw, stride):
    """Pallas implementation of BasicBlock.forward (input/output NCHW)."""
    x = jnp.transpose(x_nchw, (0, 2, 3, 1)).astype(jnp.float32)   # -> NHWC
    n, h, w, cin = x.shape
    planes = params["w1"].shape[-1]
    cp = _round_up(planes, _LANE)
    ho = (h - 1) // stride + 1
    wo = (w - 1) // stride + 1
    m_cnt = n * ho * wo

    # ---- conv1 input: spatial halo pad (+ 2x2 phase split when stride==2) ----
    if stride == 1:
        x1 = jnp.pad(x, ((0, 0), (1, 1), (1, 1), (0, 0))).astype(jnp.bfloat16)
        x1_in, blk1, hh1, wh1 = x1, 1, h + 2, w + 2
        taps1 = [(0, kh, kw) for kh in range(3) for kw in range(3)]
    else:
        xp = jnp.pad(x, ((0, 0), (1, 2), (1, 2), (0, 0))).astype(jnp.bfloat16)
        hh1, wh1 = ho + 1, wo + 1
        phases = [xp[:, a::2, b::2, :][:, :hh1, :wh1, :]
                  for a in range(2) for b in range(2)]
        x1_in = jnp.stack(phases, axis=1).reshape(n * 4, hh1, wh1, cin)
        blk1 = 4
        # tap (kh,kw) of the stride-2 conv reads phase (kh%2,kw%2) at unit offset
        taps1 = [((kh % 2) * 2 + (kw % 2), kh // 2, kw // 2)
                 for kh in range(3) for kw in range(3)]

    # ---- conv1 (3x3, stride) + bn1 batch statistics ----
    w1 = _prep_w(params["w1"], cin, cp)
    y1, st1 = _conv_bn_stats(x1_in, w1, n=n, blk=blk1, sel_stride=1, sel_off=0,
                             hh=hh1, wh=wh1, cin=cin, ho=ho, wo=wo, cp=cp,
                             taps=taps1)
    sc1, sh1 = _bn_fold(params["g1"], params["b1"], st1, m_cnt, cp)

    # ---- bn1 + relu, written halo-padded bf16 (feeds conv2 directly) ----
    out1p = _bn_relu_pad(y1, sc1, sh1, n=n, ho=ho, wo=wo, cp=cp)

    # ---- conv2 (3x3, stride 1) + bn2 batch statistics ----
    w2 = _prep_w(params["w2"], cp, cp)
    taps2 = [(0, kh, kw) for kh in range(3) for kw in range(3)]
    y2, st2 = _conv_bn_stats(out1p, w2, n=n, blk=1, sel_stride=1, sel_off=0,
                             hh=ho + 2, wh=wo + 2, cin=cp, ho=ho, wo=wo, cp=cp,
                             taps=taps2)
    sc2, sh2 = _bn_fold(params["g2"], params["b2"], st2, m_cnt, cp)

    # ---- shortcut + residual add + final relu (fused) ----
    if "ws" in params:
        ws = _prep_w(params["ws"], cin, cp)
        if stride == 1:
            # 1x1/stride-1 projection: interior of the already-padded x1 block.
            ys, sts = _conv_bn_stats(x1_in, ws, n=n, blk=1, sel_stride=1,
                                     sel_off=0, hh=hh1, wh=wh1, cin=cin,
                                     ho=ho, wo=wo, cp=cp, taps=[(0, 1, 1)])
        else:
            # 1x1/stride-2 projection == phase (1,1) of the phase-split input.
            ys, sts = _conv_bn_stats(x1_in, ws, n=n, blk=1, sel_stride=4,
                                     sel_off=3, hh=hh1, wh=wh1, cin=cin,
                                     ho=ho, wo=wo, cp=cp, taps=[(0, 0, 0)])
        scs, shs = _bn_fold(params["gs"], params["bs"], sts, m_cnt, cp)
        out = _fused_output_proj(y2, ys, sc2, sh2, scs, shs,
                                 n=n, ho=ho, wo=wo, cp=cp)
    else:
        out = _fused_output_identity(y2, x1, sc2, sh2, n=n, ho=ho, wo=wo,
                                     cin=cin, cp=cp)

    out = out[:, :, :, :planes]
    return jnp.transpose(out, (0, 3, 1, 2))   # -> NCHW


# ---------------------------------------------------------------------------
# Parameter init + pure-JAX reference (PyTorch training-mode BN; mirrors the
# kernels' bf16-storage / f32-accumulate precision so tolerances stay tight).
# ---------------------------------------------------------------------------
def init_basic_block(key, in_planes, planes, stride):
    ks = jax.random.split(key, 9)
    f32 = jnp.float32
    p = {
        "w1": jax.random.normal(ks[0], (3, 3, in_planes, planes), f32)
        * (2.0 / (9 * in_planes)) ** 0.5,
        "g1": 1.0 + 0.1 * jax.random.normal(ks[1], (1, planes), f32),
        "b1": 0.1 * jax.random.normal(ks[2], (1, planes), f32),
        "w2": jax.random.normal(ks[3], (3, 3, planes, planes), f32)
        * (2.0 / (9 * planes)) ** 0.5,
        "g2": 1.0 + 0.1 * jax.random.normal(ks[4], (1, planes), f32),
        "b2": 0.1 * jax.random.normal(ks[5], (1, planes), f32),
    }
    if stride != 1 or in_planes != planes:
        p["ws"] = jax.random.normal(ks[6], (1, 1, in_planes, planes), f32) * (
            2.0 / in_planes) ** 0.5
        p["gs"] = 1.0 + 0.1 * jax.random.normal(ks[7], (1, planes), f32)
        p["bs"] = 0.1 * jax.random.normal(ks[8], (1, planes), f32)
    return p


def _ref_forward(params, x_nchw, stride):
    bf = jnp.bfloat16

    def conv(xx, w_hwio, s):
        pad = ((1, 1), (1, 1)) if w_hwio.shape[0] == 3 else ((0, 0), (0, 0))
        y = jax.lax.conv_general_dilated(
            xx.astype(bf), w_hwio.astype(bf), (s, s), pad,
            dimension_numbers=("NCHW", "HWIO", "NCHW"),
            preferred_element_type=jnp.float32)
        return y.astype(bf).astype(jnp.float32)   # kernels store pre-BN y in bf16

    def bn(y, g, b):
        mean = y.mean(axis=(0, 2, 3), keepdims=True)
        var = ((y - mean) ** 2).mean(axis=(0, 2, 3), keepdims=True)
        yhat = (y - mean) * jax.lax.rsqrt(var + _BN_EPS)
        return yhat * g.reshape(1, -1, 1, 1) + b.reshape(1, -1, 1, 1)

    o = jax.nn.relu(bn(conv(x_nchw, params["w1"], stride),
                       params["g1"], params["b1"]))
    o = o.astype(bf).astype(jnp.float32)           # out1 stored in bf16
    o = bn(conv(o, params["w2"], 1), params["g2"], params["b2"])
    if "ws" in params:
        s = bn(conv(x_nchw, params["ws"], stride), params["gs"], params["bs"])
    else:
        s = x_nchw.astype(bf).astype(jnp.float32)  # identity read as bf16
    return jax.nn.relu(o + s)


if __name__ == "__main__":
    key = jax.random.PRNGKey(0)
    kx, kp1, kp2 = jax.random.split(key, 3)

    x = jax.random.normal(kx, (2, 4, 16, 16), jnp.float32)  # NCHW
    fwd = jax.jit(basic_block_forward, static_argnames=("stride",))

    # Case 1: downsampling block (stride=2, channel change) -> 1x1 conv shortcut.
    params_a = init_basic_block(kp1, in_planes=4, planes=8, stride=2)
    out_a = jax.block_until_ready(fwd(params_a, x, stride=2))
    ref_a = _ref_forward(params_a, x, 2)
    assert out_a.shape == (2, 8, 8, 8), out_a.shape
    assert jnp.allclose(out_a, ref_a, atol=2e-2, rtol=2e-2), \
        float(jnp.max(jnp.abs(out_a - ref_a)))

    # Case 2: identity block (stride=1, same channels) -> identity shortcut.
    params_b = init_basic_block(kp2, in_planes=4, planes=4, stride=1)
    out_b = jax.block_until_ready(fwd(params_b, x, stride=1))
    ref_b = _ref_forward(params_b, x, 1)
    assert out_b.shape == (2, 4, 16, 16), out_b.shape
    assert jnp.allclose(out_b, ref_b, atol=2e-2, rtol=2e-2), \
        float(jnp.max(jnp.abs(out_b - ref_b)))

    print("KERNEL_OK")
</pallas_src>

<mosaic_0001>
module attributes {stable_mosaic.version = 11 : i64} {
  func.func @_conv_stats_kernel(%arg0: i32, %arg1: memref<4x9x9x4xbf16, #tpu.memory_space<vmem>>, %arg2: memref<9x4x128xbf16, #tpu.memory_space<vmem>>, %arg3: memref<1x8x8x128xbf16, #tpu.memory_space<vmem>>, %arg4: memref<1x2x128xf32, #tpu.memory_space<vmem>>) attributes {dimension_semantics = [#tpu.dimension_semantics<parallel>], iteration_bounds = array<i64: 2>, scalar_prefetch = 0 : i64, scratch_operands = 0 : i64, tpu.core_type = #tpu.core_type<tc>, window_params = [{transform_indices = @transform_0, window_bounds = array<i64: 4, 9, 9, 4>}, {pipeline_mode = #tpu.pipeline_mode<synchronous>, transform_indices = @transform_1, window_bounds = array<i64: 9, 4, 128>}, {transform_indices = @transform_2, window_bounds = array<i64: 1, 8, 8, 128>}, {transform_indices = @transform_3, window_bounds = array<i64: 1, 2, 128>}]} {
    %c0 = arith.constant 0 : index
    %c0_0 = arith.constant 0 : index
    %c0_1 = arith.constant 0 : index
    %c0_2 = arith.constant 0 : index
    %0 = vector.load %arg1[%c0, %c0_0, %c0_1, %c0_2] : memref<4x9x9x4xbf16, #tpu.memory_space<vmem>>, vector<4x9x9x4xbf16>
    %1 = arith.extf %0 : vector<4x9x9x4xbf16> to vector<4x9x9x4xf32>
    %cst = arith.constant 0.000000e+00 : f32
    %2 = vector.broadcast %cst : f32 to vector<64x128xf32>
    %3 = vector.extract_strided_slice %1 {offsets = [0, 0, 0, 0], sizes = [1, 8, 8, 4], strides = [1, 1, 1, 1]} : vector<4x9x9x4xf32> to vector<1x8x8x4xf32>
    %4 = vector.shape_cast %3 : vector<1x8x8x4xf32> to vector<8x8x4xf32>
    %5 = vector.shape_cast %4 : vector<8x8x4xf32> to vector<64x4xf32>
    %6 = arith.truncf %5 : vector<64x4xf32> to vector<64x4xbf16>
    %c0_3 = arith.constant 0 : index
    %c0_4 = arith.constant 0 : index
    %c0_5 = arith.constant 0 : index
    %7 = vector.load %arg2[%c0_3, %c0_4, %c0_5] : memref<9x4x128xbf16, #tpu.memory_space<vmem>>, vector<1x4x128xbf16>
    %8 = vector.shape_cast %7 : vector<1x4x128xbf16> to vector<4x128xbf16>
    %cst_6 = arith.constant dense<0.000000e+00> : vector<64x128xf32>
    %9 = tpu.matmul %6, %8, %cst_6 {dimension_numbers = #tpu.dot_dimension_numbers<[1], [0], [0], [1], [0, 0, 1, 1], [], []>} : vector<64x4xbf16>, vector<4x128xbf16>, vector<64x128xf32> -> vector<64x128xf32>
    %10 = arith.addf %2, %9 : vector<64x128xf32>
    %11 = vector.extract_strided_slice %1 {offsets = [1, 0, 0, 0], sizes = [1, 8, 8, 4], strides = [1, 1, 1, 1]} : vector<4x9x9x4xf32> to vector<1x8x8x4xf32>
    %12 = vector.shape_cast %11 : vector<1x8x8x4xf32> to vector<8x8x4xf32>
    %13 = vector.shape_cast %12 : vector<8x8x4xf32> to vector<64x4xf32>
    %14 = arith.truncf %13 : vector<64x4xf32> to vector<64x4xbf16>
    %c1 = arith.constant 1 : index
    %c0_7 = arith.constant 0 : index
    %c0_8 = arith.constant 0 : index
    %15 = vector.load %arg2[%c1, %c0_7, %c0_8] : memref<9x4x128xbf16, #tpu.memory_space<vmem>>, vector<1x4x128xbf16>
    %16 = vector.shape_cast %15 : vector<1x4x128xbf16> to vector<4x128xbf16>
    %cst_9 = arith.constant dense<0.000000e+00> : vector<64x128xf32>
    %17 = tpu.matmul %14, %16, %cst_9 {dimension_numbers = #tpu.dot_dimension_numbers<[1], [0], [0], [1], [0, 0, 1, 1], [], []>} : vector<64x4xbf16>, vector<4x128xbf16>, vector<64x128xf32> -> vector<64x128xf32>
    %18 = arith.addf %10, %17 : vector<64x128xf32>
    %19 = vector.extract_strided_slice %1 {offsets = [0, 0, 1, 0], sizes = [1, 8, 8, 4], strides = [1, 1, 1, 1]} : vector<4x9x9x4xf32> to vector<1x8x8x4xf32>
    %20 = vector.shape_cast %19 : vector<1x8x8x4xf32> to vector<8x8x4xf32>
    %21 = vector.shape_cast %20 : vector<8x8x4xf32> to vector<64x4xf32>
    %22 = arith.truncf %21 : vector<64x4xf32> to vector<64x4xbf16>
    %c2 = arith.constant 2 : index
    %c0_10 = arith.constant 0 : index
    %c0_11 = arith.constant 0 : index
    %23 = vector.load %arg2[%c2, %c0_10, %c0_11] : memref<9x4x128xbf16, #tpu.memory_space<vmem>>, vector<1x4x128xbf16>
    %24 = vector.shape_cast %23 : vector<1x4x128xbf16> to vector<4x128xbf16>
    %cst_12 = arith.constant dense<0.000000e+00> : vector<64x128xf32>
    %25 = tpu.matmul %22, %24, %cst_12 {dimension_numbers = #tpu.dot_dimension_numbers<[1], [0], [0], [1], [0, 0, 1, 1], [], []>} : vector<64x4xbf16>, vector<4x128xbf16>, vector<64x128xf32> -> vector<64x128xf32>
    %26 = arith.addf %18, %25 : vector<64x128xf32>
    %27 = vector.extract_strided_slice %1 {offsets = [2, 0, 0, 0], sizes = [1, 8, 8, 4], strides = [1, 1, 1, 1]} : vector<4x9x9x4xf32> to vector<1x8x8x4xf32>
    %28 = vector.shape_cast %27 : vector<1x8x8x4xf32> to vector<8x8x4xf32>
    %29 = vector.shape_cast %28 : vector<8x8x4xf32> to vector<64x4xf32>
    %30 = arith.truncf %29 : vector<64x4xf32> to vector<64x4xbf16>
    %c3 = arith.constant 3 : index
    %c0_13 = arith.constant 0 : index
    %c0_14 = arith.constant 0 : index
    %31 = vector.load %arg2[%c3, %c0_13, %c0_14] : memref<9x4x128xbf16, #tpu.memory_space<vmem>>, vector<1x4x128xbf16>
    %32 = vector.shape_cast %31 : vector<1x4x128xbf16> to vector<4x128xbf16>
    %cst_15 = arith.constant dense<0.000000e+00> : vector<64x128xf32>
    %33 = tpu.matmul %30, %32, %cst_15 {dimension_numbers = #tpu.dot_dimension_numbers<[1], [0], [0], [1], [0, 0, 1, 1], [], []>} : vector<64x4xbf16>, vector<4x128xbf16>, vector<64x128xf32> -> vector<64x128xf32>
    %34 = arith.addf %26, %33 : vector<64x128xf32>
    %35 = vector.extract_strided_slice %1 {offsets = [3, 0, 0, 0], sizes = [1, 8, 8, 4], strides = [1, 1, 1, 1]} : vector<4x9x9x4xf32> to vector<1x8x8x4xf32>
    %36 = vector.shape_cast %35 : vector<1x8x8x4xf32> to vector<8x8x4xf32>
    %37 = vector.shape_cast %36 : vector<8x8x4xf32> to vector<64x4xf32>
    %38 = arith.truncf %37 : vector<64x4xf32> to vector<64x4xbf16>
    %c4 = arith.constant 4 : index
    %c0_16 = arith.constant 0 : index
    %c0_17 = arith.constant 0 : index
    %39 = vector.load %arg2[%c4, %c0_16, %c0_17] : memref<9x4x128xbf16, #tpu.memory_space<vmem>>, vector<1x4x128xbf16>
    %40 = vector.shape_cast %39 : vector<1x4x128xbf16> to vector<4x128xbf16>
    %cst_18 = arith.constant dense<0.000000e+00> : vector<64x128xf32>
    %41 = tpu.matmul %38, %40, %cst_18 {dimension_numbers = #tpu.dot_dimension_numbers<[1], [0], [0], [1], [0, 0, 1, 1], [], []>} : vector<64x4xbf16>, vector<4x128xbf16>, vector<64x128xf32> -> vector<64x128xf32>
    %42 = arith.addf %34, %41 : vector<64x128xf32>
    %43 = vector.extract_strided_slice %1 {offsets = [2, 0, 1, 0], sizes = [1, 8, 8, 4], strides = [1, 1, 1, 1]} : vector<4x9x9x4xf32> to vector<1x8x8x4xf32>
    %44 = vector.shape_cast %43 : vector<1x8x8x4xf32> to vector<8x8x4xf32>
    %45 = vector.shape_cast %44 : vector<8x8x4xf32> to vector<64x4xf32>
    %46 = arith.truncf %45 : vector<64x4xf32> to vector<64x4xbf16>
    %c5 = arith.constant 5 : index
    %c0_19 = arith.constant 0 : index
    %c0_20 = arith.constant 0 : index
    %47 = vector.load %arg2[%c5, %c0_19, %c0_20] : memref<9x4x128xbf16, #tpu.memory_space<vmem>>, vector<1x4x128xbf16>
    %48 = vector.shape_cast %47 : vector<1x4x128xbf16> to vector<4x128xbf16>
    %cst_21 = arith.constant dense<0.000000e+00> : vector<64x128xf32>
    %49 = tpu.matmul %46, %48, %cst_21 {dimension_numbers = #tpu.dot_dimension_numbers<[1], [0], [0], [1], [0, 0, 1, 1], [], []>} : vector<64x4xbf16>, vector<4x128xbf16>, vector<64x128xf32> -> vector<64x128xf32>
    %50 = arith.addf %42, %49 : vector<64x128xf32>
    %51 = vector.extract_strided_slice %1 {offsets = [0, 1, 0, 0], sizes = [1, 8, 8, 4], strides = [1, 1, 1, 1]} : vector<4x9x9x4xf32> to vector<1x8x8x4xf32>
    %52 = vector.shape_cast %51 : vector<1x8x8x4xf32> to vector<8x8x4xf32>
    %53 = vector.shape_cast %52 : vector<8x8x4xf32> to vector<64x4xf32>
    %54 = arith.truncf %53 : vector<64x4xf32> to vector<64x4xbf16>
    %c6 = arith.constant 6 : index
    %c0_22 = arith.constant 0 : index
    %c0_23 = arith.constant 0 : index
    %55 = vector.load %arg2[%c6, %c0_22, %c0_23] : memref<9x4x128xbf16, #tpu.memory_space<vmem>>, vector<1x4x128xbf16>
    %56 = vector.shape_cast %55 : vector<1x4x128xbf16> to vector<4x128xbf16>
    %cst_24 = arith.constant dense<0.000000e+00> : vector<64x128xf32>
    %57 = tpu.matmul %54, %56, %cst_24 {dimension_numbers = #tpu.dot_dimension_numbers<[1], [0], [0], [1], [0, 0, 1, 1], [], []>} : vector<64x4xbf16>, vector<4x128xbf16>, vector<64x128xf32> -> vector<64x128xf32>
    %58 = arith.addf %50, %57 : vector<64x128xf32>
    %59 = vector.extract_strided_slice %1 {offsets = [1, 1, 0, 0], sizes = [1, 8, 8, 4], strides = [1, 1, 1, 1]} : vector<4x9x9x4xf32> to vector<1x8x8x4xf32>
    %60 = vector.shape_cast %59 : vector<1x8x8x4xf32> to vector<8x8x4xf32>
    %61 = vector.shape_cast %60 : vector<8x8x4xf32> to vector<64x4xf32>
    %62 = arith.truncf %61 : vector<64x4xf32> to vector<64x4xbf16>
    %c7 = arith.constant 7 : index
    %c0_25 = arith.constant 0 : index
    %c0_26 = arith.constant 0 : index
    %63 = vector.load %arg2[%c7, %c0_25, %c0_26] : memref<9x4x128xbf16, #tpu.memory_space<vmem>>, vector<1x4x128xbf16>
    %64 = vector.shape_cast %63 : vector<1x4x128xbf16> to vector<4x128xbf16>
    %cst_27 = arith.constant dense<0.000000e+00> : vector<64x128xf32>
    %65 = tpu.matmul %62, %64, %cst_27 {dimension_numbers = #tpu.dot_dimension_numbers<[1], [0], [0], [1], [0, 0, 1, 1], [], []>} : vector<64x4xbf16>, vector<4x128xbf16>, vector<64x128xf32> -> vector<64x128xf32>
    %66 = arith.addf %58, %65 : vector<64x128xf32>
    %67 = vector.extract_strided_slice %1 {offsets = [0, 1, 1, 0], sizes = [1, 8, 8, 4], strides = [1, 1, 1, 1]} : vector<4x9x9x4xf32> to vector<1x8x8x4xf32>
    %68 = vector.shape_cast %67 : vector<1x8x8x4xf32> to vector<8x8x4xf32>
    %69 = vector.shape_cast %68 : vector<8x8x4xf32> to vector<64x4xf32>
    %70 = arith.truncf %69 : vector<64x4xf32> to vector<64x4xbf16>
    %c8 = arith.constant 8 : index
    %c0_28 = arith.constant 0 : index
    %c0_29 = arith.constant 0 : index
    %71 = vector.load %arg2[%c8, %c0_28, %c0_29] : memref<9x4x128xbf16, #tpu.memory_space<vmem>>, vector<1x4x128xbf16>
    %72 = vector.shape_cast %71 : vector<1x4x128xbf16> to vector<4x128xbf16>
    %cst_30 = arith.constant dense<0.000000e+00> : vector<64x128xf32>
    %73 = tpu.matmul %70, %72, %cst_30 {dimension_numbers = #tpu.dot_dimension_numbers<[1], [0], [0], [1], [0, 0, 1, 1], [], []>} : vector<64x4xbf16>, vector<4x128xbf16>, vector<64x128xf32> -> vector<64x128xf32>
    %74 = arith.addf %66, %73 : vector<64x128xf32>
    %75 = vector.shape_cast %74 : vector<64x128xf32> to vector<1x8x8x128xf32>
    %76 = arith.truncf %75 : vector<1x8x8x128xf32> to vector<1x8x8x128xbf16>
    %c0_31 = arith.constant 0 : index
    %c0_32 = arith.constant 0 : index
    %c0_33 = arith.constant 0 : index
    %c0_34 = arith.constant 0 : index
    %77 = vector.load %arg3[%c0_31, %c0_32, %c0_33, %c0_34] : memref<1x8x8x128xbf16, #tpu.memory_space<vmem>>, vector<1x8x8x128xbf16>
    tpu.vector_store %arg3[%c0_31, %c0_32, %c0_33, %c0_34], %76 {strides = array<i32>} : memref<1x8x8x128xbf16, #tpu.memory_space<vmem>>, vector<1x8x8x128xbf16>,
    %cst_35 = arith.constant dense<0.000000e+00> : vector<128xf32>
    %78 = vector.multi_reduction <add>, %74, %cst_35 [0] : vector<64x128xf32> to vector<128xf32>
    %79 = vector.shape_cast %78 : vector<128xf32> to vector<1x128xf32>
    %80 = arith.mulf %74, %74 : vector<64x128xf32>
    %cst_36 = arith.constant dense<0.000000e+00> : vector<128xf32>
    %81 = vector.multi_reduction <add>, %80, %cst_36 [0] : vector<64x128xf32> to vector<128xf32>
    %82 = vector.shape_cast %81 : vector<128xf32> to vector<1x128xf32>
    %83 = tpu.concatenate %79, %82 in 0 : vector<1x128xf32>, vector<1x128xf32> -> vector<2x128xf32>
    %c0_37 = arith.constant 0 : index
    %c0_38 = arith.constant 0 : index
    %c0_39 = arith.constant 0 : index
    %84 = vector.load %arg4[%c0_37, %c0_38, %c0_39] : memref<1x2x128xf32, #tpu.memory_space<vmem>>, vector<1x2x128xf32>
    %85 = vector.shape_cast %84 : vector<1x2x128xf32> to vector<2x128xf32>
    %86 = vector.shape_cast %83 : vector<2x128xf32> to vector<1x2x128xf32>
    tpu.vector_store %arg4[%c0_37, %c0_38, %c0_39], %86 {strides = array<i32>} : memref<1x2x128xf32, #tpu.memory_space<vmem>>, vector<1x2x128xf32>,
    return
  }
  func.func @transform_0(%arg0: i32) -> (i32, i32, i32, i32) {
    %c1_i32 = arith.constant 1 : i32
    %0 = arith.muli %arg0, %c1_i32 : i32
    %c0_i32 = arith.constant 0 : i32
    %1 = arith.addi %0, %c0_i32 : i32
    %c0_i32_0 = arith.constant 0 : i32
    %c0_i32_1 = arith.constant 0 : i32
    %c0_i32_2 = arith.constant 0 : i32
    %c0_i32_3 = arith.constant 0 : i32
    return %1, %c0_i32_0, %c0_i32_1, %c0_i32_2 : i32, i32, i32, i32
  }
  func.func @transform_1(%arg0: i32) -> (i32, i32, i32) {
    %c0_i32 = arith.constant 0 : i32
    %c0_i32_0 = arith.constant 0 : i32
    %c0_i32_1 = arith.constant 0 : i32
    %c0_i32_2 = arith.constant 0 : i32
    return %c0_i32, %c0_i32_0, %c0_i32_1 : i32, i32, i32
  }
  func.func @transform_2(%arg0: i32) -> (i32, i32, i32, i32) {
    %c0_i32 = arith.constant 0 : i32
    %c0_i32_0 = arith.constant 0 : i32
    %c0_i32_1 = arith.constant 0 : i32
    %c0_i32_2 = arith.constant 0 : i32
    return %arg0, %c0_i32, %c0_i32_0, %c0_i32_1 : i32, i32, i32, i32
  }
  func.func @transform_3(%arg0: i32) -> (i32, i32, i32) {
    %c0_i32 = arith.constant 0 : i32
    %c0_i32_0 = arith.constant 0 : i32
    %c0_i32_1 = arith.constant 0 : i32
    return %arg0, %c0_i32, %c0_i32_0 : i32, i32, i32
  }
}

module attributes {stable_mosaic.version = 11 : i64} {
  func.func @_conv_stats_kernel(%arg0: i32, %arg1: memref<1x9x9x4xbf16, #tpu.memory_space<vmem>>, %arg2: memref<1x4x128xbf16, #tpu.memory_space<vmem>>, %arg3: memref<1x8x8x128xbf16, #tpu.memory_space<vmem>>, %arg4: memref<1x2x128xf32, #tpu.memory_space<vmem>>) attributes {dimension_semantics = [#tpu.dimension_semantics<parallel>], iteration_bounds = array<i64: 2>, scalar_prefetch = 0 : i64, scratch_operands = 0 : i64, tpu.core_type = #tpu.core_type<tc>, window_params = [{transform_indices = @transform_0, window_bounds = array<i64: 1, 9, 9, 4>}, {pipeline_mode = #tpu.pipeline_mode<synchronous>, transform_indices = @transform_1, window_bounds = array<i64: 1, 4, 128>}, {transform_indices = @transform_2, window_bounds = array<i64: 1, 8, 8, 128>}, {transform_indices = @transform_3, window_bounds = array<i64: 1, 2, 128>}]} {
    %c0 = arith.constant 0 : index
    %c0_0 = arith.constant 0 : index
    %c0_1 = arith.constant 0 : index
    %c0_2 = arith.constant 0 : index
    %0 = vector.load %arg1[%c0, %c0_0, %c0_1, %c0_2] : memref<1x9x9x4xbf16, #tpu.memory_space<vmem>>, vector<1x9x9x4xbf16>
    %1 = arith.extf %0 : vector<1x9x9x4xbf16> to vector<1x9x9x4xf32>
    %cst = arith.constant 0.000000e+00 : f32
    %2 = vector.broadcast %cst : f32 to vector<64x128xf32>
    %3 = vector.extract_strided_slice %1 {offsets = [0, 0, 0, 0], sizes = [1, 8, 8, 4], strides = [1, 1, 1, 1]} : vector<1x9x9x4xf32> to vector<1x8x8x4xf32>
    %4 = vector.shape_cast %3 : vector<1x8x8x4xf32> to vector<8x8x4xf32>
    %5 = vector.shape_cast %4 : vector<8x8x4xf32> to vector<64x4xf32>
    %6 = arith.truncf %5 : vector<64x4xf32> to vector<64x4xbf16>
    %c0_3 = arith.constant 0 : index
    %c0_4 = arith.constant 0 : index
    %c0_5 = arith.constant 0 : index
    %7 = vector.load %arg2[%c0_3, %c0_4, %c0_5] : memref<1x4x128xbf16, #tpu.memory_space<vmem>>, vector<1x4x128xbf16>
    %8 = vector.shape_cast %7 : vector<1x4x128xbf16> to vector<4x128xbf16>
    %cst_6 = arith.constant dense<0.000000e+00> : vector<64x128xf32>
    %9 = tpu.matmul %6, %8, %cst_6 {dimension_numbers = #tpu.dot_dimension_numbers<[1], [0], [0], [1], [0, 0, 1, 1], [], []>} : vector<64x4xbf16>, vector<4x128xbf16>, vector<64x128xf32> -> vector<64x128xf32>
    %10 = arith.addf %2, %9 : vector<64x128xf32>
    %11 = vector.shape_cast %10 : vector<64x128xf32> to vector<1x8x8x128xf32>
    %12 = arith.truncf %11 : vector<1x8x8x128xf32> to vector<1x8x8x128xbf16>
    %c0_7 = arith.constant 0 : index
    %c0_8 = arith.constant 0 : index
    %c0_9 = arith.constant 0 : index
    %c0_10 = arith.constant 0 : index
    %13 = vector.load %arg3[%c0_7, %c0_8, %c0_9, %c0_10] : memref<1x8x8x128xbf16, #tpu.memory_space<vmem>>, vector<1x8x8x128xbf16>
    tpu.vector_store %arg3[%c0_7, %c0_8, %c0_9, %c0_10], %12 {strides = array<i32>} : memref<1x8x8x128xbf16, #tpu.memory_space<vmem>>, vector<1x8x8x128xbf16>,
    %cst_11 = arith.constant dense<0.000000e+00> : vector<128xf32>
    %14 = vector.multi_reduction <add>, %10, %cst_11 [0] : vector<64x128xf32> to vector<128xf32>
    %15 = vector.shape_cast %14 : vector<128xf32> to vector<1x128xf32>
    %16 = arith.mulf %10, %10 : vector<64x128xf32>
    %cst_12 = arith.constant dense<0.000000e+00> : vector<128xf32>
    %17 = vector.multi_reduction <add>, %16, %cst_12 [0] : vector<64x128xf32> to vector<128xf32>
    %18 = vector.shape_cast %17 : vector<128xf32> to vector<1x128xf32>
    %19 = tpu.concatenate %15, %18 in 0 : vector<1x128xf32>, vector<1x128xf32> -> vector<2x128xf32>
    %c0_13 = arith.constant 0 : index
    %c0_14 = arith.constant 0 : index
    %c0_15 = arith.constant 0 : index
    %20 = vector.load %arg4[%c0_13, %c0_14, %c0_15] : memref<1x2x128xf32, #tpu.memory_space<vmem>>, vector<1x2x128xf32>
    %21 = vector.shape_cast %20 : vector<1x2x128xf32> to vector<2x128xf32>
    %22 = vector.shape_cast %19 : vector<2x128xf32> to vector<1x2x128xf32>
    tpu.vector_store %arg4[%c0_13, %c0_14, %c0_15], %22 {strides = array<i32>} : memref<1x2x128xf32, #tpu.memory_space<vmem>>, vector<1x2x128xf32>,
    return
  }
  func.func @transform_0(%arg0: i32) -> (i32, i32, i32, i32) {
    %c4_i32 = arith.constant 4 : i32
    %0 = arith.muli %arg0, %c4_i32 : i32
    %c3_i32 = arith.constant 3 : i32
    %1 = arith.addi %0, %c3_i32 : i32
    %c0_i32 = arith.constant 0 : i32
    %c0_i32_0 = arith.constant 0 : i32
    %c0_i32_1 = arith.constant 0 : i32
    %c0_i32_2 = arith.constant 0 : i32
    return %1, %c0_i32, %c0_i32_0, %c0_i32_1 : i32, i32, i32, i32
  }
  func.func @transform_1(%arg0: i32) -> (i32, i32, i32) {
    %c0_i32 = arith.constant 0 : i32
    %c0_i32_0 = arith.constant 0 : i32
    %c0_i32_1 = arith.constant 0 : i32
    %c0_i32_2 = arith.constant 0 : i32
    return %c0_i32, %c0_i32_0, %c0_i32_1 : i32, i32, i32
  }
  func.func @transform_2(%arg0: i32) -> (i32, i32, i32, i32) {
    %c0_i32 = arith.constant 0 : i32
    %c0_i32_0 = arith.constant 0 : i32
    %c0_i32_1 = arith.constant 0 : i32
    %c0_i32_2 = arith.constant 0 : i32
    return %arg0, %c0_i32, %c0_i32_0, %c0_i32_1 : i32, i32, i32, i32
  }
  func.func @transform_3(%arg0: i32) -> (i32, i32, i32) {
    %c0_i32 = arith.constant 0 : i32
    %c0_i32_0 = arith.constant 0 : i32
    %c0_i32_1 = arith.constant 0 : i32
    return %arg0, %c0_i32, %c0_i32_0 : i32, i32, i32
  }
}

module attributes {stable_mosaic.version = 11 : i64} {
  func.func @_bn_relu_pad_kernel(%arg0: i32, %arg1: memref<1x8x8x128xbf16, #tpu.memory_space<vmem>>, %arg2: memref<1x128xf32, #tpu.memory_space<vmem>>, %arg3: memref<1x128xf32, #tpu.memory_space<vmem>>, %arg4: memref<1x10x10x128xbf16, #tpu.memory_space<vmem>>) attributes {dimension_semantics = [#tpu.dimension_semantics<parallel>], iteration_bounds = array<i64: 2>, scalar_prefetch = 0 : i64, scratch_operands = 0 : i64, tpu.core_type = #tpu.core_type<tc>, window_params = [{transform_indices = @transform_0, window_bounds = array<i64: 1, 8, 8, 128>}, {pipeline_mode = #tpu.pipeline_mode<synchronous>, transform_indices = @transform_1, window_bounds = array<i64: 1, 128>}, {pipeline_mode = #tpu.pipeline_mode<synchronous>, transform_indices = @transform_2, window_bounds = array<i64: 1, 128>}, {transform_indices = @transform_3, window_bounds = array<i64: 1, 10, 10, 128>}]} {
    %c0 = arith.constant 0 : index
    %c0_0 = arith.constant 0 : index
    %c0_1 = arith.constant 0 : index
    %c0_2 = arith.constant 0 : index
    %0 = vector.load %arg1[%c0, %c0_0, %c0_1, %c0_2] : memref<1x8x8x128xbf16, #tpu.memory_space<vmem>>, vector<1x8x8x128xbf16>
    %1 = arith.extf %0 : vector<1x8x8x128xbf16> to vector<1x8x8x128xf32>
    %c0_3 = arith.constant 0 : index
    %c0_4 = arith.constant 0 : index
    %2 = vector.load %arg2[%c0_3, %c0_4] : memref<1x128xf32, #tpu.memory_space<vmem>>, vector<1x128xf32>
    %3 = vector.shape_cast %2 : vector<1x128xf32> to vector<1x1x1x128xf32>
    %4 = vector.broadcast %3 : vector<1x1x1x128xf32> to vector<1x8x8x128xf32>
    %5 = arith.mulf %1, %4 : vector<1x8x8x128xf32>
    %c0_5 = arith.constant 0 : index
    %c0_6 = arith.constant 0 : index
    %6 = vector.load %arg3[%c0_5, %c0_6] : memref<1x128xf32, #tpu.memory_space<vmem>>, vector<1x128xf32>
    %7 = vector.shape_cast %6 : vector<1x128xf32> to vector<1x1x1x128xf32>
    %8 = vector.broadcast %7 : vector<1x1x1x128xf32> to vector<1x8x8x128xf32>
    %9 = arith.addf %5, %8 : vector<1x8x8x128xf32>
    %cst = arith.constant 0.000000e+00 : f32
    %10 = vector.broadcast %cst : f32 to vector<1x8x8x128xf32>
    %11 = arith.maximumf %9, %10 : vector<1x8x8x128xf32>
    %cst_7 = arith.constant 0.000000e+00 : f32
    %12 = vector.broadcast %cst_7 : f32 to vector<1x8x1x128xf32>
    %13 = tpu.concatenate %12, %11, %12 in 2 : vector<1x8x1x128xf32>, vector<1x8x8x128xf32>, vector<1x8x1x128xf32> -> vector<1x8x10x128xf32>
    %cst_8 = arith.constant 0.000000e+00 : f32
    %14 = vector.broadcast %cst_8 : f32 to vector<1x1x10x128xf32>
    %15 = tpu.concatenate %14, %13, %14 in 1 : vector<1x1x10x128xf32>, vector<1x8x10x128xf32>, vector<1x1x10x128xf32> -> vector<1x10x10x128xf32>
    %16 = arith.truncf %15 : vector<1x10x10x128xf32> to vector<1x10x10x128xbf16>
    %c0_9 = arith.constant 0 : index
    %c0_10 = arith.constant 0 : index
    %c0_11 = arith.constant 0 : index
    %c0_12 = arith.constant 0 : index
    %17 = vector.load %arg4[%c0_9, %c0_10, %c0_11, %c0_12] : memref<1x10x10x128xbf16, #tpu.memory_space<vmem>>, vector<1x10x10x128xbf16>
    tpu.vector_store %arg4[%c0_9, %c0_10, %c0_11, %c0_12], %16 {strides = array<i32>} : memref<1x10x10x128xbf16, #tpu.memory_space<vmem>>, vector<1x10x10x128xbf16>,
    return
  }
  func.func @transform_0(%arg0: i32) -> (i32, i32, i32, i32) {
    %c0_i32 = arith.constant 0 : i32
    %c0_i32_0 = arith.constant 0 : i32
    %c0_i32_1 = arith.constant 0 : i32
    %c0_i32_2 = arith.constant 0 : i32
    return %arg0, %c0_i32, %c0_i32_0, %c0_i32_1 : i32, i32, i32, i32
  }
  func.func @transform_1(%arg0: i32) -> (i32, i32) {
    %c0_i32 = arith.constant 0 : i32
    %c0_i32_0 = arith.constant 0 : i32
    %c0_i32_1 = arith.constant 0 : i32
    return %c0_i32, %c0_i32_0 : i32, i32
  }
  func.func @transform_2(%arg0: i32) -> (i32, i32) {
    %c0_i32 = arith.constant 0 : i32
    %c0_i32_0 = arith.constant 0 : i32
    %c0_i32_1 = arith.constant 0 : i32
    return %c0_i32, %c0_i32_0 : i32, i32
  }
  func.func @transform_3(%arg0: i32) -> (i32, i32, i32, i32) {
    %c0_i32 = arith.constant 0 : i32
    %c0_i32_0 = arith.constant 0 : i32
    %c0_i32_1 = arith.constant 0 : i32
    %c0_i32_2 = arith.constant 0 : i32
    return %arg0, %c0_i32, %c0_i32_0, %c0_i32_1 : i32, i32, i32, i32
  }
}

module attributes {stable_mosaic.version = 11 : i64} {
  func.func @_conv_stats_kernel(%arg0: i32, %arg1: memref<1x10x10x128xbf16, #tpu.memory_space<vmem>>, %arg2: memref<9x128x128xbf16, #tpu.memory_space<vmem>>, %arg3: memref<1x8x8x128xbf16, #tpu.memory_space<vmem>>, %arg4: memref<1x2x128xf32, #tpu.memory_space<vmem>>) attributes {dimension_semantics = [#tpu.dimension_semantics<parallel>], iteration_bounds = array<i64: 2>, scalar_prefetch = 0 : i64, scratch_operands = 0 : i64, tpu.core_type = #tpu.core_type<tc>, window_params = [{transform_indices = @transform_0, window_bounds = array<i64: 1, 10, 10, 128>}, {pipeline_mode = #tpu.pipeline_mode<synchronous>, transform_indices = @transform_1, window_bounds = array<i64: 9, 128, 128>}, {transform_indices = @transform_2, window_bounds = array<i64: 1, 8, 8, 128>}, {transform_indices = @transform_3, window_bounds = array<i64: 1, 2, 128>}]} {
    %c0 = arith.constant 0 : index
    %c0_0 = arith.constant 0 : index
    %c0_1 = arith.constant 0 : index
    %c0_2 = arith.constant 0 : index
    %0 = vector.load %arg1[%c0, %c0_0, %c0_1, %c0_2] : memref<1x10x10x128xbf16, #tpu.memory_space<vmem>>, vector<1x10x10x128xbf16>
    %1 = arith.extf %0 : vector<1x10x10x128xbf16> to vector<1x10x10x128xf32>
    %cst = arith.constant 0.000000e+00 : f32
    %2 = vector.broadcast %cst : f32 to vector<64x128xf32>
    %3 = vector.extract_strided_slice %1 {offsets = [0, 0, 0, 0], sizes = [1, 8, 8, 128], strides = [1, 1, 1, 1]} : vector<1x10x10x128xf32> to vector<1x8x8x128xf32>
    %4 = vector.shape_cast %3 : vector<1x8x8x128xf32> to vector<8x8x128xf32>
    %5 = vector.shape_cast %4 : vector<8x8x128xf32> to vector<64x128xf32>
    %6 = arith.truncf %5 : vector<64x128xf32> to vector<64x128xbf16>
    %c0_3 = arith.constant 0 : index
    %c0_4 = arith.constant 0 : index
    %c0_5 = arith.constant 0 : index
    %7 = vector.load %arg2[%c0_3, %c0_4, %c0_5] : memref<9x128x128xbf16, #tpu.memory_space<vmem>>, vector<1x128x128xbf16>
    %8 = vector.shape_cast %7 : vector<1x128x128xbf16> to vector<128x128xbf16>
    %cst_6 = arith.constant dense<0.000000e+00> : vector<64x128xf32>
    %9 = tpu.matmul %6, %8, %cst_6 {dimension_numbers = #tpu.dot_dimension_numbers<[1], [0], [0], [1], [0, 0, 1, 1], [], []>} : vector<64x128xbf16>, vector<128x128xbf16>, vector<64x128xf32> -> vector<64x128xf32>
    %10 = arith.addf %2, %9 : vector<64x128xf32>
    %11 = vector.extract_strided_slice %1 {offsets = [0, 0, 1, 0], sizes = [1, 8, 8, 128], strides = [1, 1, 1, 1]} : vector<1x10x10x128xf32> to vector<1x8x8x128xf32>
    %12 = vector.shape_cast %11 : vector<1x8x8x128xf32> to vector<8x8x128xf32>
    %13 = vector.shape_cast %12 : vector<8x8x128xf32> to vector<64x128xf32>
    %14 = arith.truncf %13 : vector<64x128xf32> to vector<64x128xbf16>
    %c1 = arith.constant 1 : index
    %c0_7 = arith.constant 0 : index
    %c0_8 = arith.constant 0 : index
    %15 = vector.load %arg2[%c1, %c0_7, %c0_8] : memref<9x128x128xbf16, #tpu.memory_space<vmem>>, vector<1x128x128xbf16>
    %16 = vector.shape_cast %15 : vector<1x128x128xbf16> to vector<128x128xbf16>
    %cst_9 = arith.constant dense<0.000000e+00> : vector<64x128xf32>
    %17 = tpu.matmul %14, %16, %cst_9 {dimension_numbers = #tpu.dot_dimension_numbers<[1], [0], [0], [1], [0, 0, 1, 1], [], []>} : vector<64x128xbf16>, vector<128x128xbf16>, vector<64x128xf32> -> vector<64x128xf32>
    %18 = arith.addf %10, %17 : vector<64x128xf32>
    %19 = vector.extract_strided_slice %1 {offsets = [0, 0, 2, 0], sizes = [1, 8, 8, 128], strides = [1, 1, 1, 1]} : vector<1x10x10x128xf32> to vector<1x8x8x128xf32>
    %20 = vector.shape_cast %19 : vector<1x8x8x128xf32> to vector<8x8x128xf32>
    %21 = vector.shape_cast %20 : vector<8x8x128xf32> to vector<64x128xf32>
    %22 = arith.truncf %21 : vector<64x128xf32> to vector<64x128xbf16>
    %c2 = arith.constant 2 : index
    %c0_10 = arith.constant 0 : index
    %c0_11 = arith.constant 0 : index
    %23 = vector.load %arg2[%c2, %c0_10, %c0_11] : memref<9x128x128xbf16, #tpu.memory_space<vmem>>, vector<1x128x128xbf16>
    %24 = vector.shape_cast %23 : vector<1x128x128xbf16> to vector<128x128xbf16>
    %cst_12 = arith.constant dense<0.000000e+00> : vector<64x128xf32>
    %25 = tpu.matmul %22, %24, %cst_12 {dimension_numbers = #tpu.dot_dimension_numbers<[1], [0], [0], [1], [0, 0, 1, 1], [], []>} : vector<64x128xbf16>, vector<128x128xbf16>, vector<64x128xf32> -> vector<64x128xf32>
    %26 = arith.addf %18, %25 : vector<64x128xf32>
    %27 = vector.extract_strided_slice %1 {offsets = [0, 1, 0, 0], sizes = [1, 8, 8, 128], strides = [1, 1, 1, 1]} : vector<1x10x10x128xf32> to vector<1x8x8x128xf32>
    %28 = vector.shape_cast %27 : vector<1x8x8x128xf32> to vector<8x8x128xf32>
    %29 = vector.shape_cast %28 : vector<8x8x128xf32> to vector<64x128xf32>
    %30 = arith.truncf %29 : vector<64x128xf32> to vector<64x128xbf16>
    %c3 = arith.constant 3 : index
    %c0_13 = arith.constant 0 : index
    %c0_14 = arith.constant 0 : index
    %31 = vector.load %arg2[%c3, %c0_13, %c0_14] : memref<9x128x128xbf16, #tpu.memory_space<vmem>>, vector<1x128x128xbf16>
    %32 = vector.shape_cast %31 : vector<1x128x128xbf16> to vector<128x128xbf16>
    %cst_15 = arith.constant dense<0.000000e+00> : vector<64x128xf32>
    %33 = tpu.matmul %30, %32, %cst_15 {dimension_numbers = #tpu.dot_dimension_numbers<[1], [0], [0], [1], [0, 0, 1, 1], [], []>} : vector<64x128xbf16>, vector<128x128xbf16>, vector<64x128xf32> -> vector<64x128xf32>
    %34 = arith.addf %26, %33 : vector<64x128xf32>
    %35 = vector.extract_strided_slice %1 {offsets = [0, 1, 1, 0], sizes = [1, 8, 8, 128], strides = [1, 1, 1, 1]} : vector<1x10x10x128xf32> to vector<1x8x8x128xf32>
    %36 = vector.shape_cast %35 : vector<1x8x8x128xf32> to vector<8x8x128xf32>
    %37 = vector.shape_cast %36 : vector<8x8x128xf32> to vector<64x128xf32>
    %38 = arith.truncf %37 : vector<64x128xf32> to vector<64x128xbf16>
    %c4 = arith.constant 4 : index
    %c0_16 = arith.constant 0 : index
    %c0_17 = arith.constant 0 : index
    %39 = vector.load %arg2[%c4, %c0_16, %c0_17] : memref<9x128x128xbf16, #tpu.memory_space<vmem>>, vector<1x128x128xbf16>
    %40 = vector.shape_cast %39 : vector<1x128x128xbf16> to vector<128x128xbf16>
    %cst_18 = arith.constant dense<0.000000e+00> : vector<64x128xf32>
    %41 = tpu.matmul %38, %40, %cst_18 {dimension_numbers = #tpu.dot_dimension_numbers<[1], [0], [0], [1], [0, 0, 1, 1], [], []>} : vector<64x128xbf16>, vector<128x128xbf16>, vector<64x128xf32> -> vector<64x128xf32>
    %42 = arith.addf %34, %41 : vector<64x128xf32>
    %43 = vector.extract_strided_slice %1 {offsets = [0, 1, 2, 0], sizes = [1, 8, 8, 128], strides = [1, 1, 1, 1]} : vector<1x10x10x128xf32> to vector<1x8x8x128xf32>
    %44 = vector.shape_cast %43 : vector<1x8x8x128xf32> to vector<8x8x128xf32>
    %45 = vector.shape_cast %44 : vector<8x8x128xf32> to vector<64x128xf32>
    %46 = arith.truncf %45 : vector<64x128xf32> to vector<64x128xbf16>
    %c5 = arith.constant 5 : index
    %c0_19 = arith.constant 0 : index
    %c0_20 = arith.constant 0 : index
    %47 = vector.load %arg2[%c5, %c0_19, %c0_20] : memref<9x128x128xbf16, #tpu.memory_space<vmem>>, vector<1x128x128xbf16>
    %48 = vector.shape_cast %47 : vector<1x128x128xbf16> to vector<128x128xbf16>
    %cst_21 = arith.constant dense<0.000000e+00> : vector<64x128xf32>
    %49 = tpu.matmul %46, %48, %cst_21 {dimension_numbers = #tpu.dot_dimension_numbers<[1], [0], [0], [1], [0, 0, 1, 1], [], []>} : vector<64x128xbf16>, vector<128x128xbf16>, vector<64x128xf32> -> vector<64x128xf32>
    %50 = arith.addf %42, %49 : vector<64x128xf32>
    %51 = vector.extract_strided_slice %1 {offsets = [0, 2, 0, 0], sizes = [1, 8, 8, 128], strides = [1, 1, 1, 1]} : vector<1x10x10x128xf32> to vector<1x8x8x128xf32>
    %52 = vector.shape_cast %51 : vector<1x8x8x128xf32> to vector<8x8x128xf32>
    %53 = vector.shape_cast %52 : vector<8x8x128xf32> to vector<64x128xf32>
    %54 = arith.truncf %53 : vector<64x128xf32> to vector<64x128xbf16>
    %c6 = arith.constant 6 : index
    %c0_22 = arith.constant 0 : index
    %c0_23 = arith.constant 0 : index
    %55 = vector.load %arg2[%c6, %c0_22, %c0_23] : memref<9x128x128xbf16, #tpu.memory_space<vmem>>, vector<1x128x128xbf16>
    %56 = vector.shape_cast %55 : vector<1x128x128xbf16> to vector<128x128xbf16>
    %cst_24 = arith.constant dense<0.000000e+00> : vector<64x128xf32>
    %57 = tpu.matmul %54, %56, %cst_24 {dimension_numbers = #tpu.dot_dimension_numbers<[1], [0], [0], [1], [0, 0, 1, 1], [], []>} : vector<64x128xbf16>, vector<128x128xbf16>, vector<64x128xf32> -> vector<64x128xf32>
    %58 = arith.addf %50, %57 : vector<64x128xf32>
    %59 = vector.extract_strided_slice %1 {offsets = [0, 2, 1, 0], sizes = [1, 8, 8, 128], strides = [1, 1, 1, 1]} : vector<1x10x10x128xf32> to vector<1x8x8x128xf32>
    %60 = vector.shape_cast %59 : vector<1x8x8x128xf32> to vector<8x8x128xf32>
    %61 = vector.shape_cast %60 : vector<8x8x128xf32> to vector<64x128xf32>
    %62 = arith.truncf %61 : vector<64x128xf32> to vector<64x128xbf16>
    %c7 = arith.constant 7 : index
    %c0_25 = arith.constant 0 : index
    %c0_26 = arith.constant 0 : index
    %63 = vector.load %arg2[%c7, %c0_25, %c0_26] : memref<9x128x128xbf16, #tpu.memory_space<vmem>>, vector<1x128x128xbf16>
    %64 = vector.shape_cast %63 : vector<1x128x128xbf16> to vector<128x128xbf16>
    %cst_27 = arith.constant dense<0.000000e+00> : vector<64x128xf32>
    %65 = tpu.matmul %62, %64, %cst_27 {dimension_numbers = #tpu.dot_dimension_numbers<[1], [0], [0], [1], [0, 0, 1, 1], [], []>} : vector<64x128xbf16>, vector<128x128xbf16>, vector<64x128xf32> -> vector<64x128xf32>
    %66 = arith.addf %58, %65 : vector<64x128xf32>
    %67 = vector.extract_strided_slice %1 {offsets = [0, 2, 2, 0], sizes = [1, 8, 8, 128], strides = [1, 1, 1, 1]} : vector<1x10x10x128xf32> to vector<1x8x8x128xf32>
    %68 = vector.shape_cast %67 : vector<1x8x8x128xf32> to vector<8x8x128xf32>
    %69 = vector.shape_cast %68 : vector<8x8x128xf32> to vector<64x128xf32>
    %70 = arith.truncf %69 : vector<64x128xf32> to vector<64x128xbf16>
    %c8 = arith.constant 8 : index
    %c0_28 = arith.constant 0 : index
    %c0_29 = arith.constant 0 : index
    %71 = vector.load %arg2[%c8, %c0_28, %c0_29] : memref<9x128x128xbf16, #tpu.memory_space<vmem>>, vector<1x128x128xbf16>
    %72 = vector.shape_cast %71 : vector<1x128x128xbf16> to vector<128x128xbf16>
    %cst_30 = arith.constant dense<0.000000e+00> : vector<64x128xf32>
    %73 = tpu.matmul %70, %72, %cst_30 {dimension_numbers = #tpu.dot_dimension_numbers<[1], [0], [0], [1], [0, 0, 1, 1], [], []>} : vector<64x128xbf16>, vector<128x128xbf16>, vector<64x128xf32> -> vector<64x128xf32>
    %74 = arith.addf %66, %73 : vector<64x128xf32>
    %75 = vector.shape_cast %74 : vector<64x128xf32> to vector<1x8x8x128xf32>
    %76 = arith.truncf %75 : vector<1x8x8x128xf32> to vector<1x8x8x128xbf16>
    %c0_31 = arith.constant 0 : index
    %c0_32 = arith.constant 0 : index
    %c0_33 = arith.constant 0 : index
    %c0_34 = arith.constant 0 : index
    %77 = vector.load %arg3[%c0_31, %c0_32, %c0_33, %c0_34] : memref<1x8x8x128xbf16, #tpu.memory_space<vmem>>, vector<1x8x8x128xbf16>
    tpu.vector_store %arg3[%c0_31, %c0_32, %c0_33, %c0_34], %76 {strides = array<i32>} : memref<1x8x8x128xbf16, #tpu.memory_space<vmem>>, vector<1x8x8x128xbf16>,
    %cst_35 = arith.constant dense<0.000000e+00> : vector<128xf32>
    %78 = vector.multi_reduction <add>, %74, %cst_35 [0] : vector<64x128xf32> to vector<128xf32>
    %79 = vector.shape_cast %78 : vector<128xf32> to vector<1x128xf32>
    %80 = arith.mulf %74, %74 : vector<64x128xf32>
    %cst_36 = arith.constant dense<0.000000e+00> : vector<128xf32>
    %81 = vector.multi_reduction <add>, %80, %cst_36 [0] : vector<64x128xf32> to vector<128xf32>
    %82 = vector.shape_cast %81 : vector<128xf32> to vector<1x128xf32>
    %83 = tpu.concatenate %79, %82 in 0 : vector<1x128xf32>, vector<1x128xf32> -> vector<2x128xf32>
    %c0_37 = arith.constant 0 : index
    %c0_38 = arith.constant 0 : index
    %c0_39 = arith.constant 0 : index
    %84 = vector.load %arg4[%c0_37, %c0_38, %c0_39] : memref<1x2x128xf32, #tpu.memory_space<vmem>>, vector<1x2x128xf32>
    %85 = vector.shape_cast %84 : vector<1x2x128xf32> to vector<2x128xf32>
    %86 = vector.shape_cast %83 : vector<2x128xf32> to vector<1x2x128xf32>
    tpu.vector_store %arg4[%c0_37, %c0_38, %c0_39], %86 {strides = array<i32>} : memref<1x2x128xf32, #tpu.memory_space<vmem>>, vector<1x2x128xf32>,
    return
  }
  func.func @transform_0(%arg0: i32) -> (i32, i32, i32, i32) {
    %c1_i32 = arith.constant 1 : i32
    %0 = arith.muli %arg0, %c1_i32 : i32
    %c0_i32 = arith.constant 0 : i32
    %1 = arith.addi %0, %c0_i32 : i32
    %c0_i32_0 = arith.constant 0 : i32
    %c0_i32_1 = arith.constant 0 : i32
    %c0_i32_2 = arith.constant 0 : i32
    %c0_i32_3 = arith.constant 0 : i32
    return %1, %c0_i32_0, %c0_i32_1, %c0_i32_2 : i32, i32, i32, i32
  }
  func.func @transform_1(%arg0: i32) -> (i32, i32, i32) {
    %c0_i32 = arith.constant 0 : i32
    %c0_i32_0 = arith.constant 0 : i32
    %c0_i32_1 = arith.constant 0 : i32
    %c0_i32_2 = arith.constant 0 : i32
    return %c0_i32, %c0_i32_0, %c0_i32_1 : i32, i32, i32
  }
  func.func @transform_2(%arg0: i32) -> (i32, i32, i32, i32) {
    %c0_i32 = arith.constant 0 : i32
    %c0_i32_0 = arith.constant 0 : i32
    %c0_i32_1 = arith.constant 0 : i32
    %c0_i32_2 = arith.constant 0 : i32
    return %arg0, %c0_i32, %c0_i32_0, %c0_i32_1 : i32, i32, i32, i32
  }
  func.func @transform_3(%arg0: i32) -> (i32, i32, i32) {
    %c0_i32 = arith.constant 0 : i32
    %c0_i32_0 = arith.constant 0 : i32
    %c0_i32_1 = arith.constant 0 : i32
    return %arg0, %c0_i32, %c0_i32_0 : i32, i32, i32
  }
}

module attributes {stable_mosaic.version = 11 : i64} {
  func.func @_fused_proj_kernel(%arg0: i32, %arg1: memref<1x8x8x128xbf16, #tpu.memory_space<vmem>>, %arg2: memref<1x8x8x128xbf16, #tpu.memory_space<vmem>>, %arg3: memref<1x128xf32, #tpu.memory_space<vmem>>, %arg4: memref<1x128xf32, #tpu.memory_space<vmem>>, %arg5: memref<1x128xf32, #tpu.memory_space<vmem>>, %arg6: memref<1x128xf32, #tpu.memory_space<vmem>>, %arg7: memref<1x8x8x128xf32, #tpu.memory_space<vmem>>) attributes {dimension_semantics = [#tpu.dimension_semantics<parallel>], iteration_bounds = array<i64: 2>, scalar_prefetch = 0 : i64, scratch_operands = 0 : i64, tpu.core_type = #tpu.core_type<tc>, window_params = [{transform_indices = @transform_0, window_bounds = array<i64: 1, 8, 8, 128>}, {transform_indices = @transform_1, window_bounds = array<i64: 1, 8, 8, 128>}, {pipeline_mode = #tpu.pipeline_mode<synchronous>, transform_indices = @transform_2, window_bounds = array<i64: 1, 128>}, {pipeline_mode = #tpu.pipeline_mode<synchronous>, transform_indices = @transform_3, window_bounds = array<i64: 1, 128>}, {pipeline_mode = #tpu.pipeline_mode<synchronous>, transform_indices = @transform_4, window_bounds = array<i64: 1, 128>}, {pipeline_mode = #tpu.pipeline_mode<synchronous>, transform_indices = @transform_5, window_bounds = array<i64: 1, 128>}, {transform_indices = @transform_6, window_bounds = array<i64: 1, 8, 8, 128>}]} {
    %c0 = arith.constant 0 : index
    %c0_0 = arith.constant 0 : index
    %c0_1 = arith.constant 0 : index
    %c0_2 = arith.constant 0 : index
    %0 = vector.load %arg1[%c0, %c0_0, %c0_1, %c0_2] : memref<1x8x8x128xbf16, #tpu.memory_space<vmem>>, vector<1x8x8x128xbf16>
    %1 = arith.extf %0 : vector<1x8x8x128xbf16> to vector<1x8x8x128xf32>
    %c0_3 = arith.constant 0 : index
    %c0_4 = arith.constant 0 : index
    %2 = vector.load %arg3[%c0_3, %c0_4] : memref<1x128xf32, #tpu.memory_space<vmem>>, vector<1x128xf32>
    %3 = vector.shape_cast %2 : vector<1x128xf32> to vector<1x1x1x128xf32>
    %4 = vector.broadcast %3 : vector<1x1x1x128xf32> to vector<1x8x8x128xf32>
    %5 = arith.mulf %1, %4 : vector<1x8x8x128xf32>
    %c0_5 = arith.constant 0 : index
    %c0_6 = arith.constant 0 : index
    %6 = vector.load %arg4[%c0_5, %c0_6] : memref<1x128xf32, #tpu.memory_space<vmem>>, vector<1x128xf32>
    %7 = vector.shape_cast %6 : vector<1x128xf32> to vector<1x1x1x128xf32>
    %8 = vector.broadcast %7 : vector<1x1x1x128xf32> to vector<1x8x8x128xf32>
    %9 = arith.addf %5, %8 : vector<1x8x8x128xf32>
    %c0_7 = arith.constant 0 : index
    %c0_8 = arith.constant 0 : index
    %c0_9 = arith.constant 0 : index
    %c0_10 = arith.constant 0 : index
    %10 = vector.load %arg2[%c0_7, %c0_8, %c0_9, %c0_10] : memref<1x8x8x128xbf16, #tpu.memory_space<vmem>>, vector<1x8x8x128xbf16>
    %11 = arith.extf %10 : vector<1x8x8x128xbf16> to vector<1x8x8x128xf32>
    %c0_11 = arith.constant 0 : index
    %c0_12 = arith.constant 0 : index
    %12 = vector.load %arg5[%c0_11, %c0_12] : memref<1x128xf32, #tpu.memory_space<vmem>>, vector<1x128xf32>
    %13 = vector.shape_cast %12 : vector<1x128xf32> to vector<1x1x1x128xf32>
    %14 = vector.broadcast %13 : vector<1x1x1x128xf32> to vector<1x8x8x128xf32>
    %15 = arith.mulf %11, %14 : vector<1x8x8x128xf32>
    %c0_13 = arith.constant 0 : index
    %c0_14 = arith.constant 0 : index
    %16 = vector.load %arg6[%c0_13, %c0_14] : memref<1x128xf32, #tpu.memory_space<vmem>>, vector<1x128xf32>
    %17 = vector.shape_cast %16 : vector<1x128xf32> to vector<1x1x1x128xf32>
    %18 = vector.broadcast %17 : vector<1x1x1x128xf32> to vector<1x8x8x128xf32>
    %19 = arith.addf %15, %18 : vector<1x8x8x128xf32>
    %20 = arith.addf %9, %19 : vector<1x8x8x128xf32>
    %cst = arith.constant 0.000000e+00 : f32
    %21 = vector.broadcast %cst : f32 to vector<1x8x8x128xf32>
    %22 = arith.maximumf %20, %21 : vector<1x8x8x128xf32>
    %c0_15 = arith.constant 0 : index
    %c0_16 = arith.constant 0 : index
    %c0_17 = arith.constant 0 : index
    %c0_18 = arith.constant 0 : index
    %23 = vector.load %arg7[%c0_15, %c0_16, %c0_17, %c0_18] : memref<1x8x8x128xf32, #tpu.memory_space<vmem>>, vector<1x8x8x128xf32>
    tpu.vector_store %arg7[%c0_15, %c0_16, %c0_17, %c0_18], %22 {strides = array<i32>} : memref<1x8x8x128xf32, #tpu.memory_space<vmem>>, vector<1x8x8x128xf32>,
    return
  }
  func.func @transform_0(%arg0: i32) -> (i32, i32, i32, i32) {
    %c0_i32 = arith.constant 0 : i32
    %c0_i32_0 = arith.constant 0 : i32
    %c0_i32_1 = arith.constant 0 : i32
    %c0_i32_2 = arith.constant 0 : i32
    return %arg0, %c0_i32, %c0_i32_0, %c0_i32_1 : i32, i32, i32, i32
  }
  func.func @transform_1(%arg0: i32) -> (i32, i32, i32, i32) {
    %c0_i32 = arith.constant 0 : i32
    %c0_i32_0 = arith.constant 0 : i32
    %c0_i32_1 = arith.constant 0 : i32
    %c0_i32_2 = arith.constant 0 : i32
    return %arg0, %c0_i32, %c0_i32_0, %c0_i32_1 : i32, i32, i32, i32
  }
  func.func @transform_2(%arg0: i32) -> (i32, i32) {
    %c0_i32 = arith.constant 0 : i32
    %c0_i32_0 = arith.constant 0 : i32
    %c0_i32_1 = arith.constant 0 : i32
    return %c0_i32, %c0_i32_0 : i32, i32
  }
  func.func @transform_3(%arg0: i32) -> (i32, i32) {
    %c0_i32 = arith.constant 0 : i32
    %c0_i32_0 = arith.constant 0 : i32
    %c0_i32_1 = arith.constant 0 : i32
    return %c0_i32, %c0_i32_0 : i32, i32
  }
  func.func @transform_4(%arg0: i32) -> (i32, i32) {
    %c0_i32 = arith.constant 0 : i32
    %c0_i32_0 = arith.constant 0 : i32
    %c0_i32_1 = arith.constant 0 : i32
    return %c0_i32, %c0_i32_0 : i32, i32
  }
  func.func @transform_5(%arg0: i32) -> (i32, i32) {
    %c0_i32 = arith.constant 0 : i32
    %c0_i32_0 = arith.constant 0 : i32
    %c0_i32_1 = arith.constant 0 : i32
    return %c0_i32, %c0_i32_0 : i32, i32
  }
  func.func @transform_6(%arg0: i32) -> (i32, i32, i32, i32) {
    %c0_i32 = arith.constant 0 : i32
    %c0_i32_0 = arith.constant 0 : i32
    %c0_i32_1 = arith.constant 0 : i32
    %c0_i32_2 = arith.constant 0 : i32
    return %arg0, %c0_i32, %c0_i32_0, %c0_i32_1 : i32, i32, i32, i32
  }
}

</mosaic_0001>

<llo_original>
// kernel: basic_block_forward.6
$region0: #{basic_block_forward.6}
  #allocation0 [shape = 'u32[]', space=smem, size = 0x4, offset = 0x4, fixed_abs, tag = 'smem constant byte address 0x4 - core index']
  #allocation1 [shape = 'u32[144,128]{1,0:T(1,128)}', space=vmem, size = 0x12000, scoped, tag = 'internal scratch']
  %s0 = inlined_call_operand.vmem [shape: bf16[2,8,8,128], index: 0, kind: input, shape index: {}]
  %s1 = inlined_call_operand.vmem [shape: f32[1,128], index: 1, kind: input, shape index: {}]
  %s2 = inlined_call_operand.vmem [shape: f32[1,128], index: 2, kind: input, shape index: {}]
  %s3 = inlined_call_operand.vmem [shape: bf16[2,10,10,128], index: 3, kind: output, shape index: {}]
  %s4 = sld [smem:[#allocation0]]
  $region45: #{basic_block_forward.6} parent=0
    _
  %s6 = ssub.s32 1, %s4
  %s7 = scalar_select 0, %s6, %s4
  loop: start=0, step=1, limit=4
  $region2: #{basic_block_forward.6} parent=0 // loop_pre_header
    _
  $region3: #{basic_block_forward.6} parent=0 // loop_header
    %s9 = sphi 0, %s13
    %p10 = scmp.ge.s32.totalorder %s9, 4
    %s19 = sphi 0, %s21
    %s22 = sphi 0, %s19
    %s23 = sphi 0, %s22
    %s39 = sphi 0, %s23
    %s43 = sphi 0, %s43
    %s45 = sphi 0, %s43
    %s46 = sphi 0, %s45
    %s60 = sphi 0, %s46
    %s64 = sphi 0, %s64
    %s66 = sphi 0, %s64
    %s67 = sphi 0, %s66
    %s81 = sphi 0, %s67
    %s87 = sphi 0, %s89
    %s90 = sphi 0, %s87
    %s91 = sphi 0, %s90
    %s107 = sphi 0, %s91
  $region4: #{basic_block_forward.6} parent=0 // loop_header_branch
    %12 = sbr.rel (%p10) target = $region8
  $region5: #{basic_block_forward.6} parent=0 // loop_body
    %s14 = ssub.s32 %s9, 1
    %s15 = ssub.s32 %s9, 2
    %s16 = sadd.s32 %s9, 1
    %s17 = ssub.s32 %s9, %s16
    %p18 = scmp.eq.s32.totalorder %s17, 0
    %s20 = sadd.s32 %s19, 1
    %s21 = scalar_select %p18, %s19, %s20
    %p24 = pneg %p18
    %p25 = scmp.eq.s32.totalorder %s9, 1
    %p26 = por %p24, %p25
    %p27 = scmp.ne.s32.totalorder %s19, %s22
    %p28 = scmp.eq.s32.totalorder %s9, 0
    %p29 = por %p27, %p28
    %p30 = scmp.ne.s32.totalorder %s19, %s22
    %p31 = scmp.eq.s32.totalorder %s14, 1
    %p32 = por %p30, %p31
    %p33 = scmp.ne.s32.totalorder %s22, %s23
    %p34 = scmp.eq.s32.totalorder %s14, 0
    %p35 = por %p33, %p34
    %p36 = scmp.ne.s32.totalorder %s22, %s23
    %p37 = scmp.eq.s32.totalorder %s15, 1
    %p38 = por %p36, %p37
    %p40 = scmp.ne.s32.totalorder %s23, %s39
    %p41 = scmp.eq.s32.totalorder %s15, 0
    %p42 = por %p40, %p41
    %s44 = sadd.s32 %s43, 1
    %p47 = scmp.eq.s32.totalorder %s9, 1
    %p48 = scmp.ne.s32.totalorder %s43, %s45
    %p49 = scmp.eq.s32.totalorder %s9, 0
    %p50 = por %p48, %p49
    %p51 = scmp.ne.s32.totalorder %s43, %s45
    %p52 = scmp.eq.s32.totalorder %s14, 1
    %p53 = por %p51, %p52
    %p54 = scmp.ne.s32.totalorder %s45, %s46
    %p55 = scmp.eq.s32.totalorder %s14, 0
    %p56 = por %p54, %p55
    %p57 = scmp.ne.s32.totalorder %s45, %s46
    %p58 = scmp.eq.s32.totalorder %s15, 1
    %p59 = por %p57, %p58
    %p61 = scmp.ne.s32.totalorder %s46, %s60
    %p62 = scmp.eq.s32.totalorder %s15, 0
    %p63 = por %p61, %p62
    %s65 = sadd.s32 %s64, 1
    %p68 = scmp.eq.s32.totalorder %s9, 1
    %p69 = scmp.ne.s32.totalorder %s64, %s66
    %p70 = scmp.eq.s32.totalorder %s9, 0
    %p71 = por %p69, %p70
    %p72 = scmp.ne.s32.totalorder %s64, %s66
    %p73 = scmp.eq.s32.totalorder %s14, 1
    %p74 = por %p72, %p73
    %p75 = scmp.ne.s32.totalorder %s66, %s67
    %p76 = scmp.eq.s32.totalorder %s14, 0
    %p77 = por %p75, %p76
    %p78 = scmp.ne.s32.totalorder %s66, %s67
    %p79 = scmp.eq.s32.totalorder %s15, 1
    %p80 = por %p78, %p79
    %p82 = scmp.ne.s32.totalorder %s67, %s81
    %p83 = scmp.eq.s32.totalorder %s15, 0
    %p84 = por %p82, %p83
    %s85 = ssub.s32 %s9, %s16
    %p86 = scmp.eq.s32.totalorder %s85, 0
    %s88 = sadd.s32 %s87, 1
    %s89 = scalar_select %p86, %s87, %s88
    %p92 = pneg %p86
    %p93 = scmp.eq.s32.totalorder %s9, 1
    %p94 = por %p92, %p93
    %p95 = scmp.ne.s32.totalorder %s87, %s90
    %p96 = scmp.eq.s32.totalorder %s9, 0
    %p97 = por %p95, %p96
    %p98 = scmp.ne.s32.totalorder %s87, %s90
    %p99 = scmp.eq.s32.totalorder %s14, 1
    %p100 = por %p98, %p99
    %p101 = scmp.ne.s32.totalorder %s90, %s91
    %p102 = scmp.eq.s32.totalorder %s14, 0
    %p103 = por %p101, %p102
    %p104 = scmp.ne.s32.totalorder %s90, %s91
    %p105 = scmp.eq.s32.totalorder %s15, 1
    %p106 = por %p104, %p105
    %p108 = scmp.ne.s32.totalorder %s91, %s107
    %p109 = scmp.eq.s32.totalorder %s15, 0
    %p110 = por %p108, %p109
    %p111 = scmp.le.s32.totalorder 1, %s9
    %p112 = scmp.lt.s32.totalorder %s9, 3
    %p113 = pnand %p111, %p112
    %p114 = pneg %p113
    // Predicated region
    $region9: #{basic_block_forward.6} parent=5 // pred_check
      _
    $region10: #{basic_block_forward.6} parent=5 // pred_check_branch
      %116 = sbr.rel (%p113) target = $region12
    $region11: #{basic_block_forward.6} parent=5 // pred_region
      %s117 = ssub.s32 %s9, 1
      // Predicated region
      $region13: #{basic_block_forward.6} parent=11 // pred_check
        %p118 = pneg %p56
      $region14: #{basic_block_forward.6} parent=11 // pred_check_branch
        %120 = sbr.rel (%p118) target = $region16
      $region15: #{basic_block_forward.6} parent=11 // pred_region
        _
      $region16: #{basic_block_forward.6} parent=11 // pred_fallthru
        _
      // Predicated region
      $region17: #{basic_block_forward.6} parent=11 // pred_check
        %p121 = pneg %p77
      $region18: #{basic_block_forward.6} parent=11 // pred_check_branch
        %123 = sbr.rel (%p121) target = $region20
      $region19: #{basic_block_forward.6} parent=11 // pred_region
        _
      $region20: #{basic_block_forward.6} parent=11 // pred_fallthru
        _
    $region12: #{basic_block_forward.6} parent=5 // pred_fallthru
      _
    %p124 = scmp.lt.s32.totalorder %s9, 2
    // Predicated region
    $region21: #{basic_block_forward.6} parent=5 // pred_check
      %p125 = pneg %p124
    $region22: #{basic_block_forward.6} parent=5 // pred_check_branch
      %127 = sbr.rel (%p125) target = $region24
    $region23: #{basic_block_forward.6} parent=5 // pred_region
      // Predicated region
      $region25: #{basic_block_forward.6} parent=23 // pred_check
        %p128 = pneg %p29
      $region26: #{basic_block_forward.6} parent=23 // pred_check_branch
        %130 = sbr.rel (%p128) target = $region28
      $region27: #{basic_block_forward.6} parent=23 // pred_region
        %p131 = scmp.lt.s32.totalorder %s9, 1
        %s132 = scalar_select %p131, %s9, 1
        %s133 = smul.addr %s132, 8
        %s134 = smul.addr %s133, 4
        %s135 = scalar_lea.vmem %s0, %s134
      $region28: #{basic_block_forward.6} parent=23 // pred_fallthru
        _
    $region24: #{basic_block_forward.6} parent=5 // pred_fallthru
      _
    %p136 = scmp.le.s32.totalorder 1, %s9
    %p137 = scmp.lt.s32.totalorder %s9, 3
    %p138 = pnand %p136, %p137
    %p139 = pneg %p138
    // Predicated region
    $region29: #{basic_block_forward.6} parent=5 // pred_check
      _
    $region30: #{basic_block_forward.6} parent=5 // pred_check_branch
      %141 = sbr.rel (%p138) target = $region32
    $region31: #{basic_block_forward.6} parent=5 // pred_region
      %s142 = ssub.s32 %s9, 1
      %p143 = scmp.lt.s32.totalorder %s14, 1
      %s144 = scalar_select %p143, %s14, 1
      %s145 = smul.addr %s144, 8
      %s146 = smul.addr %s145, 4
      %s147 = scalar_lea.vmem %s0, %s146
      %p148 = pneg %p35
      %p149 = pneg %p32
      %p150 = pneg %p56
      %p151 = pneg %p53
      %p152 = pneg %p77
      %p153 = pneg %p74
      %p154 = pneg %p103
      %p155 = pneg %p100
      %p156 = scmp.lt.s32.totalorder %s14, 1
      %s157 = scalar_select %p156, %s14, 1
      %s158 = smul.addr %s157, 20
      %s159 = smul.addr %s158, 4
      %s160 = scalar_lea.vmem %s3, %s159
      %p161 = scmp.lt.s32.totalorder %s14, 1
      %s162 = scalar_select %p161, %s14, 1
      %s163 = smul.addr %s162, 8
      %s164 = smul.addr %s163, 4
      %s165 = scalar_lea.vmem %s0, %s164
      %p166 = scmp.lt.s32.totalorder %s14, 1
      %s167 = scalar_select %p166, %s14, 1
      %s168 = smul.addr %s167, 20
      %s169 = smul.addr %s168, 4
      %s170 = scalar_lea.vmem %s3, %s169
      %v171 = vld [vmem:[%s165] sm:$0xf]
      %v172 = vld [vmem:[%s165 + $0x4] sm:$0xf]
      %v173 = vld [vmem:[%s165 + $0x8] sm:$0xf]
      %v174 = vld [vmem:[%s165 + $0xc] sm:$0xf]
      %v175 = vld [vmem:[%s165 + $0x10] sm:$0xf]
      %v176 = vld [vmem:[%s165 + $0x14] sm:$0xf]
      %v177 = vld [vmem:[%s165 + $0x18] sm:$0xf]
      %v178 = vld [vmem:[%s165 + $0x1c] sm:$0xf]
      %v179 = vunpack.c.l.bf16 %v171
      %v180 = vunpack.c.l.bf16 %v172
      %v181 = vunpack.c.l.bf16 %v173
      %v182 = vunpack.c.l.bf16 %v174
      %v183 = vunpack.c.l.bf16 %v175
      %v184 = vunpack.c.l.bf16 %v176
      %v185 = vunpack.c.l.bf16 %v177
      %v186 = vunpack.c.l.bf16 %v178
      %v187 = vld [vmem:[%s1] sm:$0x1]
      %v189 = vlaneseq
      %v190 = vshrl.u32 %v189, 7
      %v191 = vsub.s32 0, %v190
      %v192 = vrot.slane %v187, %v191
      %v194 = vmul.f32 %v179, %v192
      %v195 = vmul.f32 %v180, %v192
      %v196 = vmul.f32 %v181, %v192
      %v197 = vmul.f32 %v182, %v192
      %v198 = vmul.f32 %v183, %v192
      %v199 = vmul.f32 %v184, %v192
      %v200 = vmul.f32 %v185, %v192
      %v201 = vmul.f32 %v186, %v192
      %v202 = vld [vmem:[%s2] sm:$0x1]
      %v204 = vlaneseq
      %v205 = vshrl.u32 %v204, 7
      %v206 = vsub.s32 0, %v205
      %v207 = vrot.slane %v202, %v206
      %v209 = vadd.f32 %v194, %v207
      %v210 = vadd.f32 %v195, %v207
      %v211 = vadd.f32 %v196, %v207
      %v212 = vadd.f32 %v197, %v207
      %v213 = vadd.f32 %v198, %v207
      %v214 = vadd.f32 %v199, %v207
      %v215 = vadd.f32 %v200, %v207
      %v216 = vadd.f32 %v201, %v207
      %v217 = vmax.f32 %v209, 0.0
      %v218 = vmax.f32 %v210, 0.0
      %v219 = vmax.f32 %v211, 0.0
      %v220 = vmax.f32 %v212, 0.0
      %v221 = vmax.f32 %v213, 0.0
      %v222 = vmax.f32 %v214, 0.0
      %v223 = vmax.f32 %v215, 0.0
      %v224 = vmax.f32 %v216, 0.0
      %v233 = vrot.slane %v217, 7
      %v234 = vrot.slane %v218, 7
      %v235 = vrot.slane %v219, 7
      %v236 = vrot.slane %v220, 7
      %v237 = vrot.slane %v221, 7
      %v238 = vrot.slane %v222, 7
      %v239 = vrot.slane %v223, 7
      %v240 = vrot.slane %v224, 7
      %vm249 = vcmask 1040384
      %v250 = vsel %vm249, 0.0, %v233
      %v251 = vsel %vm249, 0.0, %v234
      %v252 = vsel %vm249, 0.0, %v235
      %v253 = vsel %vm249, 0.0, %v236
      %v254 = vsel %vm249, 0.0, %v237
      %v255 = vsel %vm249, 0.0, %v238
      %v256 = vsel %vm249, 0.0, %v239
      %v257 = vsel %vm249, 0.0, %v240
      %v258 = vsel %vm249, %v233, 0.0
      %v259 = vsel %vm249, %v234, 0.0
      %v260 = vsel %vm249, %v235, 0.0
      %v261 = vsel %vm249, %v236, 0.0
      %v262 = vsel %vm249, %v237, 0.0
      %v263 = vsel %vm249, %v238, 0.0
      %v264 = vsel %vm249, %v239, 0.0
      %v265 = vsel %vm249, %v240, 0.0
      %v266 = vpack.c.bf16 0.0, 0.0
      %v267 = vpack.c.bf16 %v258, %v250
      %v268 = vpack.c.bf16 %v259, %v251
      %v269 = vpack.c.bf16 %v260, %v252
      %v270 = vpack.c.bf16 %v261, %v253
      %v271 = vpack.c.bf16 %v262, %v254
      %v272 = vpack.c.bf16 %v263, %v255
      %v273 = vpack.c.bf16 %v264, %v256
      %v274 = vpack.c.bf16 %v265, %v257
      %v284 = vunpack.c.l.b16 %v266
      %v285 = vunpack.c.h.b16 %v266
      %v286 = vunpack.c.l.b16 %v267
      %v287 = vunpack.c.h.b16 %v267
      %v288 = vunpack.c.l.b16 %v268
      %v289 = vunpack.c.h.b16 %v268
      %v290 = vunpack.c.l.b16 %v269
      %v291 = vunpack.c.h.b16 %v269
      %v292 = vunpack.c.l.b16 %v270
      %v293 = vunpack.c.h.b16 %v270
      %v294 = vunpack.c.l.b16 %v271
      %v295 = vunpack.c.h.b16 %v271
      %v296 = vunpack.c.l.b16 %v272
      %v297 = vunpack.c.h.b16 %v272
      %v298 = vunpack.c.l.b16 %v273
      %v299 = vunpack.c.h.b16 %v273
      %v300 = vunpack.c.l.b16 %v274
      %v301 = vunpack.c.h.b16 %v274
      %v302 = vpack.c.b16 %v284, %v284
      %v303 = vpack.c.b16 %v285, %v285
      %v304 = vpack.c.b16 %v286, %v286
      %v305 = vpack.c.b16 %v287, %v287
      %v306 = vpack.c.b16 %v288, %v288
      %v307 = vpack.c.b16 %v289, %v289
      %v308 = vpack.c.b16 %v290, %v290
      %v309 = vpack.c.b16 %v291, %v291
      %v310 = vpack.c.b16 %v292, %v292
      %v311 = vpack.c.b16 %v293, %v293
      %v312 = vpack.c.b16 %v294, %v294
      %v313 = vpack.c.b16 %v295, %v295
      %v314 = vpack.c.b16 %v296, %v296
      %v315 = vpack.c.b16 %v297, %v297
      %v316 = vpack.c.b16 %v298, %v298
      %v317 = vpack.c.b16 %v299, %v299
      %v318 = vpack.c.b16 %v300, %v300
      %v319 = vpack.c.b16 %v301, %v301
      %338 = vst [vmem:[%s170] sm:$0xf] %v302
      %339 = vst [vmem:[%s170 + $0x4] sm:$0x1] %v303
      %340 = vst [vmem:[%s170 + $0x8] sm:$0xf] %v304
      %341 = vst [vmem:[%s170 + $0xc] sm:$0x1] %v305
      %342 = vst [vmem:[%s170 + $0x10] sm:$0xf] %v306
      %343 = vst [vmem:[%s170 + $0x14] sm:$0x1] %v307
      %344 = vst [vmem:[%s170 + $0x18] sm:$0xf] %v308
      %345 = vst [vmem:[%s170 + $0x1c] sm:$0x1] %v309
      %346 = vst [vmem:[%s170 + $0x20] sm:$0xf] %v310
      %347 = vst [vmem:[%s170 + $0x24] sm:$0x1] %v311
      %348 = vst [vmem:[%s170 + $0x28] sm:$0xf] %v312
      %349 = vst [vmem:[%s170 + $0x2c] sm:$0x1] %v313
      %350 = vst [vmem:[%s170 + $0x30] sm:$0xf] %v314
      %351 = vst [vmem:[%s170 + $0x34] sm:$0x1] %v315
      %352 = vst [vmem:[%s170 + $0x38] sm:$0xf] %v316
      %353 = vst [vmem:[%s170 + $0x3c] sm:$0x1] %v317
      %354 = vst [vmem:[%s170 + $0x40] sm:$0xf] %v318
      %355 = vst [vmem:[%s170 + $0x44] sm:$0x1] %v319
      %356 = vst [vmem:[%s170 + $0x48] sm:$0xf] %v302
      %357 = vst [vmem:[%s170 + $0x4c] sm:$0x1] %v303
      %p358 = scmp.lt.s32.totalorder %s14, 1
      %s359 = scalar_select %p358, %s14, 1
      %s360 = smul.addr %s359, 20
      %s361 = smul.addr %s360, 4
      %s362 = scalar_lea.vmem %s3, %s361
      // Predicated region
      $region33: #{basic_block_forward.6} parent=31 // pred_check
        %p363 = pneg %p100
      $region34: #{basic_block_forward.6} parent=31 // pred_check_branch
        %365 = sbr.rel (%p363) target = $region36
      $region35: #{basic_block_forward.6} parent=31 // pred_region
        _
      $region36: #{basic_block_forward.6} parent=31 // pred_fallthru
        _
    $region32: #{basic_block_forward.6} parent=5 // pred_fallthru
      _
    %p366 = scmp.le.s32.totalorder 2, %s9
    // Predicated region
    $region37: #{basic_block_forward.6} parent=5 // pred_check
      %p367 = pneg %p366
    $region38: #{basic_block_forward.6} parent=5 // pred_check_branch
      %369 = sbr.rel (%p367) target = $region40
    $region39: #{basic_block_forward.6} parent=5 // pred_region
      %s370 = ssub.s32 %s9, 2
      // Predicated region
      $region41: #{basic_block_forward.6} parent=39 // pred_check
        %p371 = pneg %p106
      $region42: #{basic_block_forward.6} parent=39 // pred_check_branch
        %373 = sbr.rel (%p371) target = $region44
      $region43: #{basic_block_forward.6} parent=39 // pred_region
        %p374 = scmp.lt.s32.totalorder %s15, 1
        %s375 = scalar_select %p374, %s15, 1
        %s376 = smul.addr %s375, 20
        %s377 = smul.addr %s376, 4
        %s378 = scalar_lea.vmem %s3, %s377
      $region44: #{basic_block_forward.6} parent=39 // pred_fallthru
        _
    $region40: #{basic_block_forward.6} parent=5 // pred_fallthru
      _
  $region6: #{basic_block_forward.6} parent=0 // loop_footer
    %s13 = sadd.s32 1, %s9
  $region7: #{basic_block_forward.6} parent=0 // loop_footer_branch
    %8 = sbr.rel target = $region3
  $region8: #{basic_block_forward.6} parent=0 // loop_exit
    _

// kernel: basic_block_forward.8
$region0: #{basic_block_forward.8}
  #allocation0 [shape = 'u32[]', space=smem, size = 0x4, offset = 0x4, fixed_abs, tag = 'smem constant byte address 0x4 - core index']
  #allocation1 [shape = 'u32[144,128]{1,0:T(1,128)}', space=vmem, size = 0x12000, scoped, tag = 'internal scratch']
  %s0 = inlined_call_operand.vmem [shape: bf16[8,9,9,4], index: 0, kind: input, shape index: {}]
  %s1 = inlined_call_operand.vmem [shape: bf16[1,4,128], index: 1, kind: input, shape index: {}]
  %s2 = inlined_call_operand.vmem [shape: bf16[2,8,8,128], index: 2, kind: output, shape index: {0}]
  %s3 = inlined_call_operand.vmem [shape: f32[2,2,128], index: 3, kind: output, shape index: {1}]
  %4 = xla_tuple %s2, %s3
  %s5 = sld [smem:[#allocation0]]
  $region49: #{basic_block_forward.8} parent=0
    _
  %s7 = ssub.s32 1, %s5
  %s8 = scalar_select 0, %s7, %s5
  loop: start=0, step=1, limit=4
  $region2: #{basic_block_forward.8} parent=0 // loop_pre_header
    _
  $region3: #{basic_block_forward.8} parent=0 // loop_header
    %s10 = sphi 0, %s14
    %p11 = scmp.ge.s32.totalorder %s10, 4
    %s24 = sphi 0, %s26
    %s27 = sphi 0, %s24
    %s28 = sphi 0, %s27
    %s44 = sphi 0, %s28
    %s48 = sphi 0, %s48
    %s50 = sphi 0, %s48
    %s51 = sphi 0, %s50
    %s65 = sphi 0, %s51
    %s71 = sphi 0, %s73
    %s74 = sphi 0, %s71
    %s75 = sphi 0, %s74
    %s91 = sphi 0, %s75
    %s97 = sphi 0, %s99
    %s100 = sphi 0, %s97
    %s101 = sphi 0, %s100
    %s117 = sphi 0, %s101
  $region4: #{basic_block_forward.8} parent=0 // loop_header_branch
    %13 = sbr.rel (%p11) target = $region8
  $region5: #{basic_block_forward.8} parent=0 // loop_body
    %s15 = ssub.s32 %s10, 1
    %s16 = ssub.s32 %s10, 2
    %s17 = sadd.s32 %s10, 1
    %s18 = smul.u32 %s10, 4
    %s19 = sadd.s32 %s18, 3
    %s20 = smul.u32 %s17, 4
    %s21 = sadd.s32 %s20, 3
    %s22 = ssub.s32 %s19, %s21
    %p23 = scmp.eq.s32.totalorder %s22, 0
    %s25 = sadd.s32 %s24, 1
    %s26 = scalar_select %p23, %s24, %s25
    %p29 = pneg %p23
    %p30 = scmp.eq.s32.totalorder %s10, 1
    %p31 = por %p29, %p30
    %p32 = scmp.ne.s32.totalorder %s24, %s27
    %p33 = scmp.eq.s32.totalorder %s10, 0
    %p34 = por %p32, %p33
    %p35 = scmp.ne.s32.totalorder %s24, %s27
    %p36 = scmp.eq.s32.totalorder %s15, 1
    %p37 = por %p35, %p36
    %p38 = scmp.ne.s32.totalorder %s27, %s28
    %p39 = scmp.eq.s32.totalorder %s15, 0
    %p40 = por %p38, %p39
    %p41 = scmp.ne.s32.totalorder %s27, %s28
    %p42 = scmp.eq.s32.totalorder %s16, 1
    %p43 = por %p41, %p42
    %p45 = scmp.ne.s32.totalorder %s28, %s44
    %p46 = scmp.eq.s32.totalorder %s16, 0
    %p47 = por %p45, %p46
    %s49 = sadd.s32 %s48, 1
    %p52 = scmp.eq.s32.totalorder %s10, 1
    %p53 = scmp.ne.s32.totalorder %s48, %s50
    %p54 = scmp.eq.s32.totalorder %s10, 0
    %p55 = por %p53, %p54
    %p56 = scmp.ne.s32.totalorder %s48, %s50
    %p57 = scmp.eq.s32.totalorder %s15, 1
    %p58 = por %p56, %p57
    %p59 = scmp.ne.s32.totalorder %s50, %s51
    %p60 = scmp.eq.s32.totalorder %s15, 0
    %p61 = por %p59, %p60
    %p62 = scmp.ne.s32.totalorder %s50, %s51
    %p63 = scmp.eq.s32.totalorder %s16, 1
    %p64 = por %p62, %p63
    %p66 = scmp.ne.s32.totalorder %s51, %s65
    %p67 = scmp.eq.s32.totalorder %s16, 0
    %p68 = por %p66, %p67
    %s69 = ssub.s32 %s10, %s17
    %p70 = scmp.eq.s32.totalorder %s69, 0
    %s72 = sadd.s32 %s71, 1
    %s73 = scalar_select %p70, %s71, %s72
    %p76 = pneg %p70
    %p77 = scmp.eq.s32.totalorder %s10, 1
    %p78 = por %p76, %p77
    %p79 = scmp.ne.s32.totalorder %s71, %s74
    %p80 = scmp.eq.s32.totalorder %s10, 0
    %p81 = por %p79, %p80
    %p82 = scmp.ne.s32.totalorder %s71, %s74
    %p83 = scmp.eq.s32.totalorder %s15, 1
    %p84 = por %p82, %p83
    %p85 = scmp.ne.s32.totalorder %s74, %s75
    %p86 = scmp.eq.s32.totalorder %s15, 0
    %p87 = por %p85, %p86
    %p88 = scmp.ne.s32.totalorder %s74, %s75
    %p89 = scmp.eq.s32.totalorder %s16, 1
    %p90 = por %p88, %p89
    %p92 = scmp.ne.s32.totalorder %s75, %s91
    %p93 = scmp.eq.s32.totalorder %s16, 0
    %p94 = por %p92, %p93
    %s95 = ssub.s32 %s10, %s17
    %p96 = scmp.eq.s32.totalorder %s95, 0
    %s98 = sadd.s32 %s97, 1
    %s99 = scalar_select %p96, %s97, %s98
    %p102 = pneg %p96
    %p103 = scmp.eq.s32.totalorder %s10, 1
    %p104 = por %p102, %p103
    %p105 = scmp.ne.s32.totalorder %s97, %s100
    %p106 = scmp.eq.s32.totalorder %s10, 0
    %p107 = por %p105, %p106
    %p108 = scmp.ne.s32.totalorder %s97, %s100
    %p109 = scmp.eq.s32.totalorder %s15, 1
    %p110 = por %p108, %p109
    %p111 = scmp.ne.s32.totalorder %s100, %s101
    %p112 = scmp.eq.s32.totalorder %s15, 0
    %p113 = por %p111, %p112
    %p114 = scmp.ne.s32.totalorder %s100, %s101
    %p115 = scmp.eq.s32.totalorder %s16, 1
    %p116 = por %p114, %p115
    %p118 = scmp.ne.s32.totalorder %s101, %s117
    %p119 = scmp.eq.s32.totalorder %s16, 0
    %p120 = por %p118, %p119
    %p121 = scmp.le.s32.totalorder 1, %s10
    %p122 = scmp.lt.s32.totalorder %s10, 3
    %p123 = pnand %p121, %p122
    %p124 = pneg %p123
    // Predicated region
    $region9: #{basic_block_forward.8} parent=5 // pred_check
      _
    $region10: #{basic_block_forward.8} parent=5 // pred_check_branch
      %126 = sbr.rel (%p123) target = $region12
    $region11: #{basic_block_forward.8} parent=5 // pred_region
      %s127 = ssub.s32 %s10, 1
      // Predicated region
      $region13: #{basic_block_forward.8} parent=11 // pred_check
        %p128 = pneg %p61
      $region14: #{basic_block_forward.8} parent=11 // pred_check_branch
        %130 = sbr.rel (%p128) target = $region16
      $region15: #{basic_block_forward.8} parent=11 // pred_region
        _
      $region16: #{basic_block_forward.8} parent=11 // pred_fallthru
        _
    $region12: #{basic_block_forward.8} parent=5 // pred_fallthru
      _
    %p131 = scmp.lt.s32.totalorder %s10, 2
    // Predicated region
    $region17: #{basic_block_forward.8} parent=5 // pred_check
      %p132 = pneg %p131
    $region18: #{basic_block_forward.8} parent=5 // pred_check_branch
      %134 = sbr.rel (%p132) target = $region20
    $region19: #{basic_block_forward.8} parent=5 // pred_region
      // Predicated region
      $region21: #{basic_block_forward.8} parent=19 // pred_check
        %p135 = pneg %p34
      $region22: #{basic_block_forward.8} parent=19 // pred_check_branch
        %137 = sbr.rel (%p135) target = $region24
      $region23: #{basic_block_forward.8} parent=19 // pred_region
        %s138 = smul.u32 %s10, 4
        %s139 = sadd.s32 %s138, 3
        %p140 = scmp.lt.s32.totalorder %s139, 7
        %s141 = scalar_select %p140, %s139, 7
        %s142 = smul.addr %s141, 18
        %s143 = smul.addr %s142, 4
        %s144 = scalar_lea.vmem %s0, %s143
        %s145 = smul.u32 %s10, 4
        %s146 = sadd.s32 %s145, 3
      $region24: #{basic_block_forward.8} parent=19 // pred_fallthru
        _
    $region20: #{basic_block_forward.8} parent=5 // pred_fallthru
      _
    %p147 = scmp.le.s32.totalorder 1, %s10
    %p148 = scmp.lt.s32.totalorder %s10, 3
    %p149 = pnand %p147, %p148
    %p150 = pneg %p149
    // Predicated region
    $region25: #{basic_block_forward.8} parent=5 // pred_check
      _
    $region26: #{basic_block_forward.8} parent=5 // pred_check_branch
      %152 = sbr.rel (%p149) target = $region28
    $region27: #{basic_block_forward.8} parent=5 // pred_region
      %s153 = ssub.s32 %s10, 1
      %s154 = smul.u32 %s15, 4
      %s155 = sadd.s32 %s154, 3
      %p156 = scmp.lt.s32.totalorder %s155, 7
      %s157 = scalar_select %p156, %s155, 7
      %s158 = smul.addr %s157, 18
      %s159 = smul.addr %s158, 4
      %s160 = scalar_lea.vmem %s0, %s159
      %p161 = pneg %p40
      %p162 = pneg %p37
      %p163 = pneg %p61
      %p164 = pneg %p58
      %p165 = pneg %p87
      %p166 = pneg %p84
      %p167 = scmp.lt.s32.totalorder %s15, 1
      %s168 = scalar_select %p167, %s15, 1
      %s169 = smul.addr %s168, 8
      %s170 = smul.addr %s169, 4
      %s171 = scalar_lea.vmem %s2, %s170
      %p172 = pneg %p113
      %p173 = pneg %p110
      %p174 = scmp.lt.s32.totalorder %s15, 1
      %s175 = scalar_select %p174, %s15, 1
      %s176 = smul.addr %s175, 2
      %s177 = scalar_lea.vmem %s3, %s176
      %s178 = smul.u32 %s15, 4
      %s179 = sadd.s32 %s178, 3
      %p180 = scmp.lt.s32.totalorder %s179, 7
      %s181 = scalar_select %p180, %s179, 7
      %s182 = smul.addr %s181, 18
      %s183 = smul.addr %s182, 4
      %s184 = scalar_lea.vmem %s0, %s183
      %s185 = smul.u32 %s15, 4
      %s186 = sadd.s32 %s185, 3
      %p187 = scmp.lt.s32.totalorder %s15, 1
      %s188 = scalar_select %p187, %s15, 1
      %s189 = smul.addr %s188, 8
      %s190 = smul.addr %s189, 4
      %s191 = scalar_lea.vmem %s2, %s190
      %p192 = scmp.lt.s32.totalorder %s15, 1
      %s193 = scalar_select %p192, %s15, 1
      %s194 = smul.addr %s193, 2
      %s195 = scalar_lea.vmem %s3, %s194
      %v197 = vld [vmem:[%s184] sm:$0xf]
      %v198 = vld [vmem:[%s184 + $0x8] sm:$0xf]
      %v199 = vld [vmem:[%s184 + $0x10] sm:$0xf]
      %v200 = vld [vmem:[%s184 + $0x18] sm:$0xf]
      %v201 = vld [vmem:[%s184 + $0x20] sm:$0xf]
      %v202 = vld [vmem:[%s184 + $0x28] sm:$0xf]
      %v203 = vld [vmem:[%s184 + $0x30] sm:$0xf]
      %v204 = vld [vmem:[%s184 + $0x38] sm:$0xf]
      %v205 = vunpack.c.l.bf16 %v197
      %v206 = vunpack.c.l.bf16 %v198
      %v207 = vunpack.c.l.bf16 %v199
      %v208 = vunpack.c.l.bf16 %v200
      %v209 = vunpack.c.l.bf16 %v201
      %v210 = vunpack.c.l.bf16 %v202
      %v211 = vunpack.c.l.bf16 %v203
      %v212 = vunpack.c.l.bf16 %v204
      %v213 = vpack.c.bf16 %v206, %v205
      %v214 = vpack.c.bf16 %v208, %v207
      %v215 = vpack.c.bf16 %v210, %v209
      %v216 = vpack.c.bf16 %v212, %v211
      %v217 = vld [vmem:[%s1] sm:$0x3]
      %vm218 = vcmask 31744
      %v220 = vsel %vm218, %v213, 0
      %v223 = vsel %vm218, %v214, 0
      %v226 = vsel %vm218, %v215, 0
      %v229 = vsel %vm218, %v216, 0
      %vm231 = vcmask 1041408
      %v233 = vsel %vm231, %v217, 0
      %235 = vmatprep.subr.bf16.mxu0 0
      %236 = vmatpush1.bf16.msra.mxu0 %v233
      %237 = vmatprep.subr.bf16.mxu0 0
      %238 = vmatpush1.bf16.msra.mxu0 0
      %239 = vmatprep.subr.bf16.mxu0 0
      %240 = vmatpush1.bf16.msra.mxu0 0
      %241 = vmatprep.subr.bf16.mxu0 0
      %242 = vmatpush1.bf16.msra.mxu0 0
      %243 = vmatprep.subr.bf16.mxu0 0
      %244 = vmatpush1.bf16.msra.mxu0 0
      %245 = vmatprep.subr.bf16.mxu0 0
      %246 = vmatpush1.bf16.msra.mxu0 0
      %247 = vmatprep.subr.bf16.mxu0 0
      %248 = vmatpush1.bf16.msra.mxu0 0
      %249 = vmatprep.subr.bf16.mxu0 0
      %250 = vmatpush1.bf16.msra.mxu0 0
      %251 = vmatprep.subr.bf16.mxu0 0
      %252 = vmatpush1.bf16.msra.mxu0 0
      %253 = vmatprep.subr.bf16.mxu0 0
      %254 = vmatpush1.bf16.msra.mxu0 0
      %255 = vmatprep.subr.bf16.mxu0 0
      %256 = vmatpush1.bf16.msra.mxu0 0
      %257 = vmatprep.subr.bf16.mxu0 0
      %258 = vmatpush1.bf16.msra.mxu0 0
      %259 = vmatprep.subr.bf16.mxu0 0
      %260 = vmatpush1.bf16.msra.mxu0 0
      %261 = vmatprep.subr.bf16.mxu0 0
      %262 = vmatpush1.bf16.msra.mxu0 0
      %263 = vmatprep.subr.bf16.mxu0 0
      %264 = vmatpush1.bf16.msra.mxu0 0
      %265 = vmatprep.subr.bf16.mxu0 0
      %266 = vmatpush1.bf16.msra.mxu0 0
      %267 = vmatprep.mubr.bf16.mxu0 0
      %268 = vmatmul.mubr.bf16.gmra.mrb[0].mxu0 %v220
      %v269 = vpop.f32.mrb[0].mxu0
      %v270 = vadd.f32 0.0, %v269
      %v271 = vpop.f32.mrb[0].mxu0
      %v272 = vpop.f32.mrb[0].mxu0
      %v273 = vadd.f32 0.0, %v272
      %v274 = vpop.f32.mrb[0].mxu0
      %275 = vmatprep.mubr.bf16.mxu0 0
      %276 = vmatmul.mubr.bf16.gmra.mrb[0].mxu0 %v223
      %v277 = vpop.f32.mrb[0].mxu0
      %v278 = vadd.f32 0.0, %v277
      %v279 = vpop.f32.mrb[0].mxu0
      %v280 = vpop.f32.mrb[0].mxu0
      %v281 = vadd.f32 0.0, %v280
      %v282 = vpop.f32.mrb[0].mxu0
      %283 = vmatprep.mubr.bf16.mxu0 0
      %284 = vmatmul.mubr.bf16.gmra.mrb[0].mxu0 %v226
      %v285 = vpop.f32.mrb[0].mxu0
      %v286 = vadd.f32 0.0, %v285
      %v287 = vpop.f32.mrb[0].mxu0
      %v288 = vpop.f32.mrb[0].mxu0
      %v289 = vadd.f32 0.0, %v288
      %v290 = vpop.f32.mrb[0].mxu0
      %291 = vmatprep.mubr.bf16.mxu0 0
      %292 = vmatmul.mubr.bf16.gmra.mrb[0].mxu0 %v229
      %v293 = vpop.f32.mrb[0].mxu0
      %v294 = vadd.f32 0.0, %v293
      %v295 = vpop.f32.mrb[0].mxu0
      %v296 = vpop.f32.mrb[0].mxu0
      %v297 = vadd.f32 0.0, %v296
      %v298 = vpop.f32.mrb[0].mxu0
      %299 = vdwg.mxu0
      %v300 = vpack.c.bf16 %v270, %v270
      %v301 = vpack.c.bf16 %v273, %v273
      %v302 = vpack.c.bf16 %v278, %v278
      %v303 = vpack.c.bf16 %v281, %v281
      %v304 = vpack.c.bf16 %v286, %v286
      %v305 = vpack.c.bf16 %v289, %v289
      %v306 = vpack.c.bf16 %v294, %v294
      %v307 = vpack.c.bf16 %v297, %v297
      %308 = vst [vmem:[%s191] sm:$0xf] %v300
      %309 = vst [vmem:[%s191 + $0x4] sm:$0xf] %v301
      %310 = vst [vmem:[%s191 + $0x8] sm:$0xf] %v302
      %311 = vst [vmem:[%s191 + $0xc] sm:$0xf] %v303
      %312 = vst [vmem:[%s191 + $0x10] sm:$0xf] %v304
      %313 = vst [vmem:[%s191 + $0x14] sm:$0xf] %v305
      %314 = vst [vmem:[%s191 + $0x18] sm:$0xf] %v306
      %315 = vst [vmem:[%s191 + $0x1c] sm:$0xf] %v307
      %v316 = vadd.f32 %v270, %v273
      %v317 = vadd.f32 %v316, %v278
      %v318 = vadd.f32 %v317, %v281
      %v319 = vadd.f32 %v318, %v286
      %v320 = vadd.f32 %v319, %v289
      %v321 = vadd.f32 %v320, %v294
      %v322 = vadd.f32 %v321, %v297
      %v323 = vrot.slane %v322, 4
      %v324 = vadd.f32 %v322, %v323
      %v325 = vrot.slane %v324, 2
      %v326 = vadd.f32 %v324, %v325
      %v327 = vrot.slane %v326, 1
      %v328 = vadd.f32 %v326, %v327
      %v329 = vmul.f32 %v270, %v270
      %v330 = vmul.f32 %v273, %v273
      %v331 = vmul.f32 %v278, %v278
      %v332 = vmul.f32 %v281, %v281
      %v333 = vmul.f32 %v286, %v286
      %v334 = vmul.f32 %v289, %v289
      %v335 = vmul.f32 %v294, %v294
      %v336 = vmul.f32 %v297, %v297
      %v337 = vadd.f32 %v329, %v330
      %v338 = vadd.f32 %v337, %v331
      %v339 = vadd.f32 %v338, %v332
      %v340 = vadd.f32 %v339, %v333
      %v341 = vadd.f32 %v340, %v334
      %v342 = vadd.f32 %v341, %v335
      %v343 = vadd.f32 %v342, %v336
      %v344 = vrot.slane %v343, 4
      %v345 = vadd.f32 %v343, %v344
      %v346 = vrot.slane %v345, 2
      %v347 = vadd.f32 %v345, %v346
      %v348 = vrot.slane %v347, 1
      %v349 = vadd.f32 %v347, %v348
      %vm350 = vcmask 1040384
      %v351 = vsel %vm350, %v328, %v349
      %352 = vst [vmem:[%s195] sm:$0x3] %v351
      %p353 = scmp.lt.s32.totalorder %s15, 1
      %s354 = scalar_select %p353, %s15, 1
      %s355 = smul.addr %s354, 8
      %s356 = smul.addr %s355, 4
      %s357 = scalar_lea.vmem %s2, %s356
      %p358 = scmp.lt.s32.totalorder %s15, 1
      %s359 = scalar_select %p358, %s15, 1
      %s360 = smul.addr %s359, 2
      %s361 = scalar_lea.vmem %s3, %s360
      // Predicated region
      $region29: #{basic_block_forward.8} parent=27 // pred_check
        %p362 = pneg %p84
      $region30: #{basic_block_forward.8} parent=27 // pred_check_branch
        %364 = sbr.rel (%p362) target = $region32
      $region31: #{basic_block_forward.8} parent=27 // pred_region
        _
      $region32: #{basic_block_forward.8} parent=27 // pred_fallthru
        _
      // Predicated region
      $region33: #{basic_block_forward.8} parent=27 // pred_check
        %p365 = pneg %p110
      $region34: #{basic_block_forward.8} parent=27 // pred_check_branch
        %367 = sbr.rel (%p365) target = $region36
      $region35: #{basic_block_forward.8} parent=27 // pred_region
        _
      $region36: #{basic_block_forward.8} parent=27 // pred_fallthru
        _
    $region28: #{basic_block_forward.8} parent=5 // pred_fallthru
      _
    %p368 = scmp.le.s32.totalorder 2, %s10
    // Predicated region
    $region37: #{basic_block_forward.8} parent=5 // pred_check
      %p369 = pneg %p368
    $region38: #{basic_block_forward.8} parent=5 // pred_check_branch
      %371 = sbr.rel (%p369) target = $region40
    $region39: #{basic_block_forward.8} parent=5 // pred_region
      %s372 = ssub.s32 %s10, 2
      // Predicated region
      $region41: #{basic_block_forward.8} parent=39 // pred_check
        %p373 = pneg %p90
      $region42: #{basic_block_forward.8} parent=39 // pred_check_branch
        %375 = sbr.rel (%p373) target = $region44
      $region43: #{basic_block_forward.8} parent=39 // pred_region
        %p376 = scmp.lt.s32.totalorder %s16, 1
        %s377 = scalar_select %p376, %s16, 1
        %s378 = smul.addr %s377, 8
        %s379 = smul.addr %s378, 4
        %s380 = scalar_lea.vmem %s2, %s379
      $region44: #{basic_block_forward.8} parent=39 // pred_fallthru
        _
      // Predicated region
      $region45: #{basic_block_forward.8} parent=39 // pred_check
        %p381 = pneg %p116
      $region46: #{basic_block_forward.8} parent=39 // pred_check_branch
        %383 = sbr.rel (%p381) target = $region48
      $region47: #{basic_block_forward.8} parent=39 // pred_region
        %p384 = scmp.lt.s32.totalorder %s16, 1
        %s385 = scalar_select %p384, %s16, 1
        %s386 = smul.addr %s385, 2
        %s387 = scalar_lea.vmem %s3, %s386
      $region48: #{basic_block_forward.8} parent=39 // pred_fallthru
        _
    $region40: #{basic_block_forward.8} parent=5 // pred_fallthru
      _
  $region6: #{basic_block_forward.8} parent=0 // loop_footer
    %s14 = sadd.s32 1, %s10
  $region7: #{basic_block_forward.8} parent=0 // loop_footer_branch
    %9 = sbr.rel target = $region3
  $region8: #{basic_block_forward.8} parent=0 // loop_exit
    _

// kernel: basic_block_forward.5
$region0: #{basic_block_forward.5}
  #allocation0 [shape = 'u32[]', space=smem, size = 0x4, offset = 0x4, fixed_abs, tag = 'smem constant byte address 0x4 - core index']
  #allocation1 [shape = 'u32[144,128]{1,0:T(1,128)}', space=vmem, size = 0x12000, scoped, tag = 'internal scratch']
  %s0 = inlined_call_operand.vmem [shape: bf16[8,9,9,4], index: 0, kind: input, shape index: {}]
  %s1 = inlined_call_operand.vmem [shape: bf16[9,4,128], index: 1, kind: input, shape index: {}]
  %s2 = inlined_call_operand.vmem [shape: bf16[2,8,8,128], index: 2, kind: output, shape index: {0}]
  %s3 = inlined_call_operand.vmem [shape: f32[2,2,128], index: 3, kind: output, shape index: {1}]
  %4 = xla_tuple %s2, %s3
  %s5 = sld [smem:[#allocation0]]
  $region49: #{basic_block_forward.5} parent=0
    _
  %s7 = ssub.s32 1, %s5
  %s8 = scalar_select 0, %s7, %s5
  loop: start=0, step=1, limit=4
  $region2: #{basic_block_forward.5} parent=0 // loop_pre_header
    _
  $region3: #{basic_block_forward.5} parent=0 // loop_header
    %s10 = sphi 0, %s14
    %p11 = scmp.ge.s32.totalorder %s10, 4
    %s20 = sphi 0, %s22
    %s23 = sphi 0, %s20
    %s24 = sphi 0, %s23
    %s40 = sphi 0, %s24
    %s44 = sphi 0, %s44
    %s46 = sphi 0, %s44
    %s47 = sphi 0, %s46
    %s61 = sphi 0, %s47
    %s67 = sphi 0, %s69
    %s70 = sphi 0, %s67
    %s71 = sphi 0, %s70
    %s87 = sphi 0, %s71
    %s93 = sphi 0, %s95
    %s96 = sphi 0, %s93
    %s97 = sphi 0, %s96
    %s113 = sphi 0, %s97
  $region4: #{basic_block_forward.5} parent=0 // loop_header_branch
    %13 = sbr.rel (%p11) target = $region8
  $region5: #{basic_block_forward.5} parent=0 // loop_body
    %s15 = ssub.s32 %s10, 1
    %s16 = ssub.s32 %s10, 2
    %s17 = sadd.s32 %s10, 1
    %s18 = ssub.s32 %s10, %s17
    %p19 = scmp.eq.s32.totalorder %s18, 0
    %s21 = sadd.s32 %s20, 1
    %s22 = scalar_select %p19, %s20, %s21
    %p25 = pneg %p19
    %p26 = scmp.eq.s32.totalorder %s10, 1
    %p27 = por %p25, %p26
    %p28 = scmp.ne.s32.totalorder %s20, %s23
    %p29 = scmp.eq.s32.totalorder %s10, 0
    %p30 = por %p28, %p29
    %p31 = scmp.ne.s32.totalorder %s20, %s23
    %p32 = scmp.eq.s32.totalorder %s15, 1
    %p33 = por %p31, %p32
    %p34 = scmp.ne.s32.totalorder %s23, %s24
    %p35 = scmp.eq.s32.totalorder %s15, 0
    %p36 = por %p34, %p35
    %p37 = scmp.ne.s32.totalorder %s23, %s24
    %p38 = scmp.eq.s32.totalorder %s16, 1
    %p39 = por %p37, %p38
    %p41 = scmp.ne.s32.totalorder %s24, %s40
    %p42 = scmp.eq.s32.totalorder %s16, 0
    %p43 = por %p41, %p42
    %s45 = sadd.s32 %s44, 1
    %p48 = scmp.eq.s32.totalorder %s10, 1
    %p49 = scmp.ne.s32.totalorder %s44, %s46
    %p50 = scmp.eq.s32.totalorder %s10, 0
    %p51 = por %p49, %p50
    %p52 = scmp.ne.s32.totalorder %s44, %s46
    %p53 = scmp.eq.s32.totalorder %s15, 1
    %p54 = por %p52, %p53
    %p55 = scmp.ne.s32.totalorder %s46, %s47
    %p56 = scmp.eq.s32.totalorder %s15, 0
    %p57 = por %p55, %p56
    %p58 = scmp.ne.s32.totalorder %s46, %s47
    %p59 = scmp.eq.s32.totalorder %s16, 1
    %p60 = por %p58, %p59
    %p62 = scmp.ne.s32.totalorder %s47, %s61
    %p63 = scmp.eq.s32.totalorder %s16, 0
    %p64 = por %p62, %p63
    %s65 = ssub.s32 %s10, %s17
    %p66 = scmp.eq.s32.totalorder %s65, 0
    %s68 = sadd.s32 %s67, 1
    %s69 = scalar_select %p66, %s67, %s68
    %p72 = pneg %p66
    %p73 = scmp.eq.s32.totalorder %s10, 1
    %p74 = por %p72, %p73
    %p75 = scmp.ne.s32.totalorder %s67, %s70
    %p76 = scmp.eq.s32.totalorder %s10, 0
    %p77 = por %p75, %p76
    %p78 = scmp.ne.s32.totalorder %s67, %s70
    %p79 = scmp.eq.s32.totalorder %s15, 1
    %p80 = por %p78, %p79
    %p81 = scmp.ne.s32.totalorder %s70, %s71
    %p82 = scmp.eq.s32.totalorder %s15, 0
    %p83 = por %p81, %p82
    %p84 = scmp.ne.s32.totalorder %s70, %s71
    %p85 = scmp.eq.s32.totalorder %s16, 1
    %p86 = por %p84, %p85
    %p88 = scmp.ne.s32.totalorder %s71, %s87
    %p89 = scmp.eq.s32.totalorder %s16, 0
    %p90 = por %p88, %p89
    %s91 = ssub.s32 %s10, %s17
    %p92 = scmp.eq.s32.totalorder %s91, 0
    %s94 = sadd.s32 %s93, 1
    %s95 = scalar_select %p92, %s93, %s94
    %p98 = pneg %p92
    %p99 = scmp.eq.s32.totalorder %s10, 1
    %p100 = por %p98, %p99
    %p101 = scmp.ne.s32.totalorder %s93, %s96
    %p102 = scmp.eq.s32.totalorder %s10, 0
    %p103 = por %p101, %p102
    %p104 = scmp.ne.s32.totalorder %s93, %s96
    %p105 = scmp.eq.s32.totalorder %s15, 1
    %p106 = por %p104, %p105
    %p107 = scmp.ne.s32.totalorder %s96, %s97
    %p108 = scmp.eq.s32.totalorder %s15, 0
    %p109 = por %p107, %p108
    %p110 = scmp.ne.s32.totalorder %s96, %s97
    %p111 = scmp.eq.s32.totalorder %s16, 1
    %p112 = por %p110, %p111
    %p114 = scmp.ne.s32.totalorder %s97, %s113
    %p115 = scmp.eq.s32.totalorder %s16, 0
    %p116 = por %p114, %p115
    %p117 = scmp.le.s32.totalorder 1, %s10
    %p118 = scmp.lt.s32.totalorder %s10, 3
    %p119 = pnand %p117, %p118
    %p120 = pneg %p119
    // Predicated region
    $region9: #{basic_block_forward.5} parent=5 // pred_check
      _
    $region10: #{basic_block_forward.5} parent=5 // pred_check_branch
      %122 = sbr.rel (%p119) target = $region12
    $region11: #{basic_block_forward.5} parent=5 // pred_region
      %s123 = ssub.s32 %s10, 1
      // Predicated region
      $region13: #{basic_block_forward.5} parent=11 // pred_check
        %p124 = pneg %p57
      $region14: #{basic_block_forward.5} parent=11 // pred_check_branch
        %126 = sbr.rel (%p124) target = $region16
      $region15: #{basic_block_forward.5} parent=11 // pred_region
        _
      $region16: #{basic_block_forward.5} parent=11 // pred_fallthru
        _
    $region12: #{basic_block_forward.5} parent=5 // pred_fallthru
      _
    %p127 = scmp.lt.s32.totalorder %s10, 2
    // Predicated region
    $region17: #{basic_block_forward.5} parent=5 // pred_check
      %p128 = pneg %p127
    $region18: #{basic_block_forward.5} parent=5 // pred_check_branch
      %130 = sbr.rel (%p128) target = $region20
    $region19: #{basic_block_forward.5} parent=5 // pred_region
      // Predicated region
      $region21: #{basic_block_forward.5} parent=19 // pred_check
        %p131 = pneg %p30
      $region22: #{basic_block_forward.5} parent=19 // pred_check_branch
        %133 = sbr.rel (%p131) target = $region24
      $region23: #{basic_block_forward.5} parent=19 // pred_region
        %s134 = smul.u32 4, %s10
        %p135 = scmp.lt.s32.totalorder %s134, 7
        %s136 = scalar_select %p135, %s134, 7
        %s137 = smul.addr %s136, 18
        %s138 = smul.addr %s137, 4
        %s139 = scalar_lea.vmem %s0, %s138
        %s140 = smul.u32 4, %s10
      $region24: #{basic_block_forward.5} parent=19 // pred_fallthru
        _
    $region20: #{basic_block_forward.5} parent=5 // pred_fallthru
      _
    %p141 = scmp.le.s32.totalorder 1, %s10
    %p142 = scmp.lt.s32.totalorder %s10, 3
    %p143 = pnand %p141, %p142
    %p144 = pneg %p143
    // Predicated region
    $region25: #{basic_block_forward.5} parent=5 // pred_check
      _
    $region26: #{basic_block_forward.5} parent=5 // pred_check_branch
      %146 = sbr.rel (%p143) target = $region28
    $region27: #{basic_block_forward.5} parent=5 // pred_region
      %s147 = ssub.s32 %s10, 1
      %s148 = smul.u32 4, %s15
      %p149 = scmp.lt.s32.totalorder %s148, 7
      %s150 = scalar_select %p149, %s148, 7
      %s151 = smul.addr %s150, 18
      %s152 = smul.addr %s151, 4
      %s153 = scalar_lea.vmem %s0, %s152
      %p154 = pneg %p36
      %p155 = pneg %p33
      %p156 = pneg %p57
      %p157 = pneg %p54
      %p158 = pneg %p83
      %p159 = pneg %p80
      %p160 = scmp.lt.s32.totalorder %s15, 1
      %s161 = scalar_select %p160, %s15, 1
      %s162 = smul.addr %s161, 8
      %s163 = smul.addr %s162, 4
      %s164 = scalar_lea.vmem %s2, %s163
      %p165 = pneg %p109
      %p166 = pneg %p106
      %p167 = scmp.lt.s32.totalorder %s15, 1
      %s168 = scalar_select %p167, %s15, 1
      %s169 = smul.addr %s168, 2
      %s170 = scalar_lea.vmem %s3, %s169
      %s171 = smul.u32 4, %s15
      %p172 = scmp.lt.s32.totalorder %s171, 7
      %s173 = scalar_select %p172, %s171, 7
      %s174 = smul.addr %s173, 18
      %s175 = smul.addr %s174, 4
      %s176 = scalar_lea.vmem %s0, %s175
      %s177 = smul.u32 4, %s15
      %p178 = scmp.lt.s32.totalorder %s15, 1
      %s179 = scalar_select %p178, %s15, 1
      %s180 = smul.addr %s179, 8
      %s181 = smul.addr %s180, 4
      %s182 = scalar_lea.vmem %s2, %s181
      %p183 = scmp.lt.s32.totalorder %s15, 1
      %s184 = scalar_select %p183, %s15, 1
      %s185 = smul.addr %s184, 2
      %s186 = scalar_lea.vmem %s3, %s185
      %v188 = vld [vmem:[%s176] sm:$0xf]
      %v189 = vld [vmem:[%s176 + $0x4] sm:$0x1]
      %v190 = vld [vmem:[%s176 + $0x8] sm:$0xf]
      %v191 = vld [vmem:[%s176 + $0xc] sm:$0x1]
      %v192 = vld [vmem:[%s176 + $0x10] sm:$0xf]
      %v193 = vld [vmem:[%s176 + $0x14] sm:$0x1]
      %v194 = vld [vmem:[%s176 + $0x18] sm:$0xf]
      %v195 = vld [vmem:[%s176 + $0x1c] sm:$0x1]
      %v196 = vld [vmem:[%s176 + $0x20] sm:$0xf]
      %v197 = vld [vmem:[%s176 + $0x24] sm:$0x1]
      %v198 = vld [vmem:[%s176 + $0x28] sm:$0xf]
      %v199 = vld [vmem:[%s176 + $0x2c] sm:$0x1]
      %v200 = vld [vmem:[%s176 + $0x30] sm:$0xf]
      %v201 = vld [vmem:[%s176 + $0x34] sm:$0x1]
      %v202 = vld [vmem:[%s176 + $0x38] sm:$0xf]
      %v203 = vld [vmem:[%s176 + $0x3c] sm:$0x1]
      %v204 = vld [vmem:[%s176 + $0x40] sm:$0xf]
      %v205 = vld [vmem:[%s176 + $0x44] sm:$0x1]
      %v206 = vld [vmem:[%s176 + $0x48] sm:$0xf]
      %v207 = vld [vmem:[%s176 + $0x50] sm:$0xf]
      %v208 = vld [vmem:[%s176 + $0x58] sm:$0xf]
      %v209 = vld [vmem:[%s176 + $0x60] sm:$0xf]
      %v210 = vld [vmem:[%s176 + $0x68] sm:$0xf]
      %v211 = vld [vmem:[%s176 + $0x70] sm:$0xf]
      %v212 = vld [vmem:[%s176 + $0x78] sm:$0xf]
      %v213 = vld [vmem:[%s176 + $0x80] sm:$0xf]
      %v214 = vld [vmem:[%s176 + $0x88] sm:$0xf]
      %v215 = vld [vmem:[%s176 + $0x90] sm:$0xf]
      %v216 = vld [vmem:[%s176 + $0x94] sm:$0x1]
      %v217 = vld [vmem:[%s176 + $0x98] sm:$0xf]
      %v218 = vld [vmem:[%s176 + $0x9c] sm:$0x1]
      %v219 = vld [vmem:[%s176 + $0xa0] sm:$0xf]
      %v220 = vld [vmem:[%s176 + $0xa4] sm:$0x1]
      %v221 = vld [vmem:[%s176 + $0xa8] sm:$0xf]
      %v222 = vld [vmem:[%s176 + $0xac] sm:$0x1]
      %v223 = vld [vmem:[%s176 + $0xb0] sm:$0xf]
      %v224 = vld [vmem:[%s176 + $0xb4] sm:$0x1]
      %v225 = vld [vmem:[%s176 + $0xb8] sm:$0xf]
      %v226 = vld [vmem:[%s176 + $0xbc] sm:$0x1]
      %v227 = vld [vmem:[%s176 + $0xc0] sm:$0xf]
      %v228 = vld [vmem:[%s176 + $0xc4] sm:$0x1]
      %v229 = vld [vmem:[%s176 + $0xc8] sm:$0xf]
      %v230 = vld [vmem:[%s176 + $0xcc] sm:$0x1]
      %v231 = vld [vmem:[%s176 + $0xd8] sm:$0xf]
      %v232 = vld [vmem:[%s176 + $0xe0] sm:$0xf]
      %v233 = vld [vmem:[%s176 + $0xe8] sm:$0xf]
      %v234 = vld [vmem:[%s176 + $0xf0] sm:$0xf]
      %v235 = vld [vmem:[%s176 + $0xf8] sm:$0xf]
      %v236 = vld [vmem:[%s176 + $0x100] sm:$0xf]
      %v237 = vld [vmem:[%s176 + $0x108] sm:$0xf]
      %v238 = vld [vmem:[%s176 + $0x110] sm:$0xf]
      %v239 = vunpack.c.l.bf16 %v188
      %v240 = vunpack.c.l.bf16 %v189
      %v241 = vunpack.c.l.bf16 %v190
      %v242 = vunpack.c.l.bf16 %v191
      %v243 = vunpack.c.l.bf16 %v192
      %v244 = vunpack.c.l.bf16 %v193
      %v245 = vunpack.c.l.bf16 %v194
      %v246 = vunpack.c.l.bf16 %v195
      %v247 = vunpack.c.l.bf16 %v196
      %v248 = vunpack.c.l.bf16 %v197
      %v249 = vunpack.c.l.bf16 %v198
      %v250 = vunpack.c.l.bf16 %v199
      %v251 = vunpack.c.l.bf16 %v200
      %v252 = vunpack.c.l.bf16 %v201
      %v253 = vunpack.c.l.bf16 %v202
      %v254 = vunpack.c.l.bf16 %v203
      %v255 = vunpack.c.l.bf16 %v204
      %v256 = vunpack.c.l.bf16 %v205
      %v257 = vunpack.c.l.bf16 %v206
      %v258 = vunpack.c.l.bf16 %v207
      %v259 = vunpack.c.l.bf16 %v208
      %v260 = vunpack.c.l.bf16 %v209
      %v261 = vunpack.c.l.bf16 %v210
      %v262 = vunpack.c.l.bf16 %v211
      %v263 = vunpack.c.l.bf16 %v212
      %v264 = vunpack.c.l.bf16 %v213
      %v265 = vunpack.c.l.bf16 %v214
      %v266 = vunpack.c.l.bf16 %v215
      %v267 = vunpack.c.l.bf16 %v216
      %v268 = vunpack.c.l.bf16 %v217
      %v269 = vunpack.c.l.bf16 %v218
      %v270 = vunpack.c.l.bf16 %v219
      %v271 = vunpack.c.l.bf16 %v220
      %v272 = vunpack.c.l.bf16 %v221
      %v273 = vunpack.c.l.bf16 %v222
      %v274 = vunpack.c.l.bf16 %v223
      %v275 = vunpack.c.l.bf16 %v224
      %v276 = vunpack.c.l.bf16 %v225
      %v277 = vunpack.c.l.bf16 %v226
      %v278 = vunpack.c.l.bf16 %v227
      %v279 = vunpack.c.l.bf16 %v228
      %v280 = vunpack.c.l.bf16 %v229
      %v281 = vunpack.c.l.bf16 %v230
      %v282 = vunpack.c.l.bf16 %v231
      %v283 = vunpack.c.l.bf16 %v232
      %v284 = vunpack.c.l.bf16 %v233
      %v285 = vunpack.c.l.bf16 %v234
      %v286 = vunpack.c.l.bf16 %v235
      %v287 = vunpack.c.l.bf16 %v236
      %v288 = vunpack.c.l.bf16 %v237
      %v289 = vunpack.c.l.bf16 %v238
      %v290 = vpack.c.bf16 %v241, %v239
      %v291 = vpack.c.bf16 %v245, %v243
      %v292 = vpack.c.bf16 %v249, %v247
      %v293 = vpack.c.bf16 %v253, %v251
      %v294 = vld [vmem:[%s1] sm:$0x3]
      %v295 = vpack.c.bf16 %v258, %v257
      %v296 = vpack.c.bf16 %v260, %v259
      %v297 = vpack.c.bf16 %v262, %v261
      %v298 = vpack.c.bf16 %v264, %v263
      %s299 = scalar_lea.vmem %s1, 2
      %v300 = vld [vmem:[%s299] sm:$0x3]
      %vm301 = vcmask 31744
      %v303 = vsel %vm301, %v295, 0
      %v306 = vsel %vm301, %v296, 0
      %v309 = vsel %vm301, %v297, 0
      %v312 = vsel %vm301, %v298, 0
      %vm314 = vcmask 1041408
      %v316 = vsel %vm314, %v300, 0
      %318 = vmatprep.subr.bf16.mxu0 0
      %319 = vmatpush1.bf16.msra.mxu0 %v316
      %320 = vmatprep.subr.bf16.mxu0 0
      %321 = vmatpush1.bf16.msra.mxu0 0
      %322 = vmatprep.subr.bf16.mxu0 0
      %323 = vmatpush1.bf16.msra.mxu0 0
      %324 = vmatprep.subr.bf16.mxu0 0
      %325 = vmatpush1.bf16.msra.mxu0 0
      %326 = vmatprep.subr.bf16.mxu0 0
      %327 = vmatpush1.bf16.msra.mxu0 0
      %328 = vmatprep.subr.bf16.mxu0 0
      %329 = vmatpush1.bf16.msra.mxu0 0
      %330 = vmatprep.subr.bf16.mxu0 0
      %331 = vmatpush1.bf16.msra.mxu0 0
      %332 = vmatprep.subr.bf16.mxu0 0
      %333 = vmatpush1.bf16.msra.mxu0 0
      %334 = vmatprep.subr.bf16.mxu0 0
      %335 = vmatpush1.bf16.msra.mxu0 0
      %336 = vmatprep.subr.bf16.mxu0 0
      %337 = vmatpush1.bf16.msra.mxu0 0
      %338 = vmatprep.subr.bf16.mxu0 0
      %339 = vmatpush1.bf16.msra.mxu0 0
      %340 = vmatprep.subr.bf16.mxu0 0
      %341 = vmatpush1.bf16.msra.mxu0 0
      %342 = vmatprep.subr.bf16.mxu0 0
      %343 = vmatpush1.bf16.msra.mxu0 0
      %344 = vmatprep.subr.bf16.mxu0 0
      %345 = vmatpush1.bf16.msra.mxu0 0
      %346 = vmatprep.subr.bf16.mxu0 0
      %347 = vmatpush1.bf16.msra.mxu0 0
      %348 = vmatprep.subr.bf16.mxu0 0
      %349 = vmatpush1.bf16.msra.mxu0 0
      %350 = vmatprep.mubr.bf16.mxu0 0
      %351 = vmatmul.mubr.bf16.gmra.mrb[0].mxu0 %v303
      %v352 = vpop.f32.mrb[0].mxu0
      %v353 = vadd.f32 0.0, %v352
      %v354 = vpop.f32.mrb[0].mxu0
      %v355 = vpop.f32.mrb[0].mxu0
      %v356 = vadd.f32 0.0, %v355
      %v357 = vpop.f32.mrb[0].mxu0
      %358 = vmatprep.mubr.bf16.mxu0 0
      %359 = vmatmul.mubr.bf16.gmra.mrb[0].mxu0 %v306
      %v360 = vpop.f32.mrb[0].mxu0
      %v361 = vadd.f32 0.0, %v360
      %v362 = vpop.f32.mrb[0].mxu0
      %v363 = vpop.f32.mrb[0].mxu0
      %v364 = vadd.f32 0.0, %v363
      %v365 = vpop.f32.mrb[0].mxu0
      %366 = vmatprep.mubr.bf16.mxu0 0
      %367 = vmatmul.mubr.bf16.gmra.mrb[0].mxu0 %v309
      %v368 = vpop.f32.mrb[0].mxu0
      %v369 = vadd.f32 0.0, %v368
      %v370 = vpop.f32.mrb[0].mxu0
      %v371 = vpop.f32.mrb[0].mxu0
      %v372 = vadd.f32 0.0, %v371
      %v373 = vpop.f32.mrb[0].mxu0
      %374 = vmatprep.mubr.bf16.mxu0 0
      %375 = vmatmul.mubr.bf16.gmra.mrb[0].mxu0 %v312
      %v376 = vpop.f32.mrb[0].mxu0
      %v377 = vadd.f32 0.0, %v376
      %v378 = vpop.f32.mrb[0].mxu0
      %v379 = vpop.f32.mrb[0].mxu0
      %v380 = vadd.f32 0.0, %v379
      %v381 = vpop.f32.mrb[0].mxu0
      %382 = vdwg.mxu0
      %v384 = vsel %vm301, %v290, 0
      %v387 = vsel %vm301, %v291, 0
      %v390 = vsel %vm301, %v292, 0
      %v393 = vsel %vm301, %v293, 0
      %v396 = vsel %vm314, %v294, 0
      %398 = vmatprep.subr.bf16.mxu0 0
      %399 = vmatpush1.bf16.msra.mxu0 %v396
      %400 = vmatprep.subr.bf16.mxu0 0
      %401 = vmatpush1.bf16.msra.mxu0 0
      %402 = vmatprep.subr.bf16.mxu0 0
      %403 = vmatpush1.bf16.msra.mxu0 0
      %404 = vmatprep.subr.bf16.mxu0 0
      %405 = vmatpush1.bf16.msra.mxu0 0
      %406 = vmatprep.subr.bf16.mxu0 0
      %407 = vmatpush1.bf16.msra.mxu0 0
      %408 = vmatprep.subr.bf16.mxu0 0
      %409 = vmatpush1.bf16.msra.mxu0 0
      %410 = vmatprep.subr.bf16.mxu0 0
      %411 = vmatpush1.bf16.msra.mxu0 0
      %412 = vmatprep.subr.bf16.mxu0 0
      %413 = vmatpush1.bf16.msra.mxu0 0
      %414 = vmatprep.subr.bf16.mxu0 0
      %415 = vmatpush1.bf16.msra.mxu0 0
      %416 = vmatprep.subr.bf16.mxu0 0
      %417 = vmatpush1.bf16.msra.mxu0 0
      %418 = vmatprep.subr.bf16.mxu0 0
      %419 = vmatpush1.bf16.msra.mxu0 0
      %420 = vmatprep.subr.bf16.mxu0 0
      %421 = vmatpush1.bf16.msra.mxu0 0
      %422 = vmatprep.subr.bf16.mxu0 0
      %423 = vmatpush1.bf16.msra.mxu0 0
      %424 = vmatprep.subr.bf16.mxu0 0
      %425 = vmatpush1.bf16.msra.mxu0 0
      %426 = vmatprep.subr.bf16.mxu0 0
      %427 = vmatpush1.bf16.msra.mxu0 0
      %428 = vmatprep.subr.bf16.mxu0 0
      %429 = vmatpush1.bf16.msra.mxu0 0
      %430 = vmatprep.mubr.bf16.mxu0 0
      %431 = vmatmul.mubr.bf16.gmra.mrb[0].mxu0 %v384
      %v432 = vpop.f32.mrb[0].mxu0
      %v433 = vadd.f32 %v353, %v432
      %v434 = vpop.f32.mrb[0].mxu0
      %v435 = vpop.f32.mrb[0].mxu0
      %v436 = vadd.f32 %v356, %v435
      %v437 = vpop.f32.mrb[0].mxu0
      %438 = vmatprep.mubr.bf16.mxu0 0
      %439 = vmatmul.mubr.bf16.gmra.mrb[0].mxu0 %v387
      %v440 = vpop.f32.mrb[0].mxu0
      %v441 = vadd.f32 %v361, %v440
      %v442 = vpop.f32.mrb[0].mxu0
      %v443 = vpop.f32.mrb[0].mxu0
      %v444 = vadd.f32 %v364, %v443
      %v445 = vpop.f32.mrb[0].mxu0
      %446 = vmatprep.mubr.bf16.mxu0 0
      %447 = vmatmul.mubr.bf16.gmra.mrb[0].mxu0 %v390
      %v448 = vpop.f32.mrb[0].mxu0
      %v449 = vadd.f32 %v369, %v448
      %v450 = vpop.f32.mrb[0].mxu0
      %v451 = vpop.f32.mrb[0].mxu0
      %v452 = vadd.f32 %v372, %v451
      %v453 = vpop.f32.mrb[0].mxu0
      %454 = vmatprep.mubr.bf16.mxu0 0
      %455 = vmatmul.mubr.bf16.gmra.mrb[0].mxu0 %v393
      %v456 = vpop.f32.mrb[0].mxu0
      %v457 = vadd.f32 %v377, %v456
      %v458 = vpop.f32.mrb[0].mxu0
      %v459 = vpop.f32.mrb[0].mxu0
      %v460 = vadd.f32 %v380, %v459
      %v461 = vpop.f32.mrb[0].mxu0
      %462 = vdwg.mxu0
      %vm479 = vcmask 1046528
      %v480 = vrot.slane %v239, 1
      %v481 = vrot.slane %v240, 1
      %v482 = vsel %vm479, %v480, %v481
      %v483 = vrot.slane %v241, 1
      %v484 = vrot.slane %v242, 1
      %v485 = vsel %vm479, %v483, %v484
      %v486 = vrot.slane %v243, 1
      %v487 = vrot.slane %v244, 1
      %v488 = vsel %vm479, %v486, %v487
      %v489 = vrot.slane %v245, 1
      %v490 = vrot.slane %v246, 1
      %v491 = vsel %vm479, %v489, %v490
      %v492 = vrot.slane %v247, 1
      %v493 = vrot.slane %v248, 1
      %v494 = vsel %vm479, %v492, %v493
      %v495 = vrot.slane %v249, 1
      %v496 = vrot.slane %v250, 1
      %v497 = vsel %vm479, %v495, %v496
      %v498 = vrot.slane %v251, 1
      %v499 = vrot.slane %v252, 1
      %v500 = vsel %vm479, %v498, %v499
      %v501 = vrot.slane %v253, 1
      %v502 = vrot.slane %v254, 1
      %v503 = vsel %vm479, %v501, %v502
      %v512 = vpack.c.bf16 %v485, %v482
      %v513 = vpack.c.bf16 %v491, %v488
      %v514 = vpack.c.bf16 %v497, %v494
      %v515 = vpack.c.bf16 %v503, %v500
      %s516 = scalar_lea.vmem %s1, 4
      %v517 = vld [vmem:[%s516] sm:$0x3]
      %v519 = vsel %vm301, %v512, 0
      %v522 = vsel %vm301, %v513, 0
      %v525 = vsel %vm301, %v514, 0
      %v528 = vsel %vm301, %v515, 0
      %v531 = vsel %vm314, %v517, 0
      %533 = vmatprep.subr.bf16.mxu0 0
      %534 = vmatpush1.bf16.msra.mxu0 %v531
      %535 = vmatprep.subr.bf16.mxu0 0
      %536 = vmatpush1.bf16.msra.mxu0 0
      %537 = vmatprep.subr.bf16.mxu0 0
      %538 = vmatpush1.bf16.msra.mxu0 0
      %539 = vmatprep.subr.bf16.mxu0 0
      %540 = vmatpush1.bf16.msra.mxu0 0
      %541 = vmatprep.subr.bf16.mxu0 0
      %542 = vmatpush1.bf16.msra.mxu0 0
      %543 = vmatprep.subr.bf16.mxu0 0
      %544 = vmatpush1.bf16.msra.mxu0 0
      %545 = vmatprep.subr.bf16.mxu0 0
      %546 = vmatpush1.bf16.msra.mxu0 0
      %547 = vmatprep.subr.bf16.mxu0 0
      %548 = vmatpush1.bf16.msra.mxu0 0
      %549 = vmatprep.subr.bf16.mxu0 0
      %550 = vmatpush1.bf16.msra.mxu0 0
      %551 = vmatprep.subr.bf16.mxu0 0
      %552 = vmatpush1.bf16.msra.mxu0 0
      %553 = vmatprep.subr.bf16.mxu0 0
      %554 = vmatpush1.bf16.msra.mxu0 0
      %555 = vmatprep.subr.bf16.mxu0 0
      %556 = vmatpush1.bf16.msra.mxu0 0
      %557 = vmatprep.subr.bf16.mxu0 0
      %558 = vmatpush1.bf16.msra.mxu0 0
      %559 = vmatprep.subr.bf16.mxu0 0
      %560 = vmatpush1.bf16.msra.mxu0 0
      %561 = vmatprep.subr.bf16.mxu0 0
      %562 = vmatpush1.bf16.msra.mxu0 0
      %563 = vmatprep.subr.bf16.mxu0 0
      %564 = vmatpush1.bf16.msra.mxu0 0
      %565 = vmatprep.mubr.bf16.mxu0 0
      %566 = vmatmul.mubr.bf16.gmra.mrb[0].mxu0 %v519
      %v567 = vpop.f32.mrb[0].mxu0
      %v568 = vadd.f32 0.0, %v567
      %v569 = vpop.f32.mrb[0].mxu0
      %v570 = vpop.f32.mrb[0].mxu0
      %v571 = vadd.f32 0.0, %v570
      %v572 = vpop.f32.mrb[0].mxu0
      %573 = vmatprep.mubr.bf16.mxu0 0
      %574 = vmatmul.mubr.bf16.gmra.mrb[0].mxu0 %v522
      %v575 = vpop.f32.mrb[0].mxu0
      %v576 = vadd.f32 0.0, %v575
      %v577 = vpop.f32.mrb[0].mxu0
      %v578 = vpop.f32.mrb[0].mxu0
      %v579 = vadd.f32 0.0, %v578
      %v580 = vpop.f32.mrb[0].mxu0
      %581 = vmatprep.mubr.bf16.mxu0 0
      %582 = vmatmul.mubr.bf16.gmra.mrb[0].mxu0 %v525
      %v583 = vpop.f32.mrb[0].mxu0
      %v584 = vadd.f32 0.0, %v583
      %v585 = vpop.f32.mrb[0].mxu0
      %v586 = vpop.f32.mrb[0].mxu0
      %v587 = vadd.f32 0.0, %v586
      %v588 = vpop.f32.mrb[0].mxu0
      %589 = vmatprep.mubr.bf16.mxu0 0
      %590 = vmatmul.mubr.bf16.gmra.mrb[0].mxu0 %v528
      %v591 = vpop.f32.mrb[0].mxu0
      %v592 = vadd.f32 0.0, %v591
      %v593 = vpop.f32.mrb[0].mxu0
      %v594 = vpop.f32.mrb[0].mxu0
      %v595 = vadd.f32 0.0, %v594
      %v596 = vpop.f32.mrb[0].mxu0
      %597 = vdwg.mxu0
      %v598 = vadd.f32 %v433, %v568
      %v599 = vadd.f32 %v436, %v571
      %v600 = vadd.f32 %v441, %v576
      %v601 = vadd.f32 %v444, %v579
      %v602 = vadd.f32 %v449, %v584
      %v603 = vadd.f32 %v452, %v587
      %v604 = vadd.f32 %v457, %v592
      %v605 = vadd.f32 %v460, %v595
      %v606 = vpack.c.bf16 %v268, %v266
      %v607 = vpack.c.bf16 %v272, %v270
      %v608 = vpack.c.bf16 %v276, %v274
      %v609 = vpack.c.bf16 %v280, %v278
      %s610 = scalar_lea.vmem %s1, 6
      %v611 = vld [vmem:[%s610] sm:$0x3]
      %v613 = vsel %vm301, %v606, 0
      %v616 = vsel %vm301, %v607, 0
      %v619 = vsel %vm301, %v608, 0
      %v622 = vsel %vm301, %v609, 0
      %v625 = vsel %vm314, %v611, 0
      %627 = vmatprep.subr.bf16.mxu0 0
      %628 = vmatpush1.bf16.msra.mxu0 %v625
      %629 = vmatprep.subr.bf16.mxu0 0
      %630 = vmatpush1.bf16.msra.mxu0 0
      %631 = vmatprep.subr.bf16.mxu0 0
      %632 = vmatpush1.bf16.msra.mxu0 0
      %633 = vmatprep.subr.bf16.mxu0 0
      %634 = vmatpush1.bf16.msra.mxu0 0
      %635 = vmatprep.subr.bf16.mxu0 0
      %636 = vmatpush1.bf16.msra.mxu0 0
      %637 = vmatprep.subr.bf16.mxu0 0
      %638 = vmatpush1.bf16.msra.mxu0 0
      %639 = vmatprep.subr.bf16.mxu0 0
      %640 = vmatpush1.bf16.msra.mxu0 0
      %641 = vmatprep.subr.bf16.mxu0 0
      %642 = vmatpush1.bf16.msra.mxu0 0
      %643 = vmatprep.subr.bf16.mxu0 0
      %644 = vmatpush1.bf16.msra.mxu0 0
      %645 = vmatprep.subr.bf16.mxu0 0
      %646 = vmatpush1.bf16.msra.mxu0 0
      %647 = vmatprep.subr.bf16.mxu0 0
      %648 = vmatpush1.bf16.msra.mxu0 0
      %649 = vmatprep.subr.bf16.mxu0 0
      %650 = vmatpush1.bf16.msra.mxu0 0
      %651 = vmatprep.subr.bf16.mxu0 0
      %652 = vmatpush1.bf16.msra.mxu0 0
      %653 = vmatprep.subr.bf16.mxu0 0
      %654 = vmatpush1.bf16.msra.mxu0 0
      %655 = vmatprep.subr.bf16.mxu0 0
      %656 = vmatpush1.bf16.msra.mxu0 0
      %657 = vmatprep.subr.bf16.mxu0 0
      %658 = vmatpush1.bf16.msra.mxu0 0
      %659 = vmatprep.mubr.bf16.mxu0 0
      %660 = vmatmul.mubr.bf16.gmra.mrb[0].mxu0 %v613
      %v661 = vpop.f32.mrb[0].mxu0
      %v662 = vadd.f32 0.0, %v661
      %v663 = vpop.f32.mrb[0].mxu0
      %v664 = vpop.f32.mrb[0].mxu0
      %v665 = vadd.f32 0.0, %v664
      %v666 = vpop.f32.mrb[0].mxu0
      %667 = vmatprep.mubr.bf16.mxu0 0
      %668 = vmatmul.mubr.bf16.gmra.mrb[0].mxu0 %v616
      %v669 = vpop.f32.mrb[0].mxu0
      %v670 = vadd.f32 0.0, %v669
      %v671 = vpop.f32.mrb[0].mxu0
      %v672 = vpop.f32.mrb[0].mxu0
      %v673 = vadd.f32 0.0, %v672
      %v674 = vpop.f32.mrb[0].mxu0
      %675 = vmatprep.mubr.bf16.mxu0 0
      %676 = vmatmul.mubr.bf16.gmra.mrb[0].mxu0 %v619
      %v677 = vpop.f32.mrb[0].mxu0
      %v678 = vadd.f32 0.0, %v677
      %v679 = vpop.f32.mrb[0].mxu0
      %v680 = vpop.f32.mrb[0].mxu0
      %v681 = vadd.f32 0.0, %v680
      %v682 = vpop.f32.mrb[0].mxu0
      %683 = vmatprep.mubr.bf16.mxu0 0
      %684 = vmatmul.mubr.bf16.gmra.mrb[0].mxu0 %v622
      %v685 = vpop.f32.mrb[0].mxu0
      %v686 = vadd.f32 0.0, %v685
      %v687 = vpop.f32.mrb[0].mxu0
      %v688 = vpop.f32.mrb[0].mxu0
      %v689 = vadd.f32 0.0, %v688
      %v690 = vpop.f32.mrb[0].mxu0
      %691 = vdwg.mxu0
      %v692 = vadd.f32 %v598, %v662
      %v693 = vadd.f32 %v599, %v665
      %v694 = vadd.f32 %v600, %v670
      %v695 = vadd.f32 %v601, %v673
      %v696 = vadd.f32 %v602, %v678
      %v697 = vadd.f32 %v603, %v681
      %v698 = vadd.f32 %v604, %v686
      %v699 = vadd.f32 %v605, %v689
      %v700 = vpack.c.bf16 %v283, %v282
      %v701 = vpack.c.bf16 %v285, %v284
      %v702 = vpack.c.bf16 %v287, %v286
      %v703 = vpack.c.bf16 %v289, %v288
      %s704 = scalar_lea.vmem %s1, 8
      %v705 = vld [vmem:[%s704] sm:$0x3]
      %v707 = vsel %vm301, %v700, 0
      %v710 = vsel %vm301, %v701, 0
      %v713 = vsel %vm301, %v702, 0
      %v716 = vsel %vm301, %v703, 0
      %v719 = vsel %vm314, %v705, 0
      %721 = vmatprep.subr.bf16.mxu0 0
      %722 = vmatpush1.bf16.msra.mxu0 %v719
      %723 = vmatprep.subr.bf16.mxu0 0
      %724 = vmatpush1.bf16.msra.mxu0 0
      %725 = vmatprep.subr.bf16.mxu0 0
      %726 = vmatpush1.bf16.msra.mxu0 0
      %727 = vmatprep.subr.bf16.mxu0 0
      %728 = vmatpush1.bf16.msra.mxu0 0
      %729 = vmatprep.subr.bf16.mxu0 0
      %730 = vmatpush1.bf16.msra.mxu0 0
      %731 = vmatprep.subr.bf16.mxu0 0
      %732 = vmatpush1.bf16.msra.mxu0 0
      %733 = vmatprep.subr.bf16.mxu0 0
      %734 = vmatpush1.bf16.msra.mxu0 0
      %735 = vmatprep.subr.bf16.mxu0 0
      %736 = vmatpush1.bf16.msra.mxu0 0
      %737 = vmatprep.subr.bf16.mxu0 0
      %738 = vmatpush1.bf16.msra.mxu0 0
      %739 = vmatprep.subr.bf16.mxu0 0
      %740 = vmatpush1.bf16.msra.mxu0 0
      %741 = vmatprep.subr.bf16.mxu0 0
      %742 = vmatpush1.bf16.msra.mxu0 0
      %743 = vmatprep.subr.bf16.mxu0 0
      %744 = vmatpush1.bf16.msra.mxu0 0
      %745 = vmatprep.subr.bf16.mxu0 0
      %746 = vmatpush1.bf16.msra.mxu0 0
      %747 = vmatprep.subr.bf16.mxu0 0
      %748 = vmatpush1.bf16.msra.mxu0 0
      %749 = vmatprep.subr.bf16.mxu0 0
      %750 = vmatpush1.bf16.msra.mxu0 0
      %751 = vmatprep.subr.bf16.mxu0 0
      %752 = vmatpush1.bf16.msra.mxu0 0
      %753 = vmatprep.mubr.bf16.mxu0 0
      %754 = vmatmul.mubr.bf16.gmra.mrb[0].mxu0 %v707
      %v755 = vpop.f32.mrb[0].mxu0
      %v756 = vadd.f32 0.0, %v755
      %v757 = vpop.f32.mrb[0].mxu0
      %v758 = vpop.f32.mrb[0].mxu0
      %v759 = vadd.f32 0.0, %v758
      %v760 = vpop.f32.mrb[0].mxu0
      %761 = vmatprep.mubr.bf16.mxu0 0
      %762 = vmatmul.mubr.bf16.gmra.mrb[0].mxu0 %v710
      %v763 = vpop.f32.mrb[0].mxu0
      %v764 = vadd.f32 0.0, %v763
      %v765 = vpop.f32.mrb[0].mxu0
      %v766 = vpop.f32.mrb[0].mxu0
      %v767 = vadd.f32 0.0, %v766
      %v768 = vpop.f32.mrb[0].mxu0
      %769 = vmatprep.mubr.bf16.mxu0 0
      %770 = vmatmul.mubr.bf16.gmra.mrb[0].mxu0 %v713
      %v771 = vpop.f32.mrb[0].mxu0
      %v772 = vadd.f32 0.0, %v771
      %v773 = vpop.f32.mrb[0].mxu0
      %v774 = vpop.f32.mrb[0].mxu0
      %v775 = vadd.f32 0.0, %v774
      %v776 = vpop.f32.mrb[0].mxu0
      %777 = vmatprep.mubr.bf16.mxu0 0
      %778 = vmatmul.mubr.bf16.gmra.mrb[0].mxu0 %v716
      %v779 = vpop.f32.mrb[0].mxu0
      %v780 = vadd.f32 0.0, %v779
      %v781 = vpop.f32.mrb[0].mxu0
      %v782 = vpop.f32.mrb[0].mxu0
      %v783 = vadd.f32 0.0, %v782
      %v784 = vpop.f32.mrb[0].mxu0
      %785 = vdwg.mxu0
      %v786 = vadd.f32 %v692, %v756
      %v787 = vadd.f32 %v693, %v759
      %v788 = vadd.f32 %v694, %v764
      %v789 = vadd.f32 %v695, %v767
      %v790 = vadd.f32 %v696, %v772
      %v791 = vadd.f32 %v697, %v775
      %v792 = vadd.f32 %v698, %v780
      %v793 = vadd.f32 %v699, %v783
      %v810 = vrot.slane %v266, 1
      %v811 = vrot.slane %v267, 1
      %v812 = vsel %vm479, %v810, %v811
      %v813 = vrot.slane %v268, 1
      %v814 = vrot.slane %v269, 1
      %v815 = vsel %vm479, %v813, %v814
      %v816 = vrot.slane %v270, 1
      %v817 = vrot.slane %v271, 1
      %v818 = vsel %vm479, %v816, %v817
      %v819 = vrot.slane %v272, 1
      %v820 = vrot.slane %v273, 1
      %v821 = vsel %vm479, %v819, %v820
      %v822 = vrot.slane %v274, 1
      %v823 = vrot.slane %v275, 1
      %v824 = vsel %vm479, %v822, %v823
      %v825 = vrot.slane %v276, 1
      %v826 = vrot.slane %v277, 1
      %v827 = vsel %vm479, %v825, %v826
      %v828 = vrot.slane %v278, 1
      %v829 = vrot.slane %v279, 1
      %v830 = vsel %vm479, %v828, %v829
      %v831 = vrot.slane %v280, 1
      %v832 = vrot.slane %v281, 1
      %v833 = vsel %vm479, %v831, %v832
      %v842 = vpack.c.bf16 %v815, %v812
      %v843 = vpack.c.bf16 %v821, %v818
      %v844 = vpack.c.bf16 %v827, %v824
      %v845 = vpack.c.bf16 %v833, %v830
      %s846 = scalar_lea.vmem %s1, 10
      %v847 = vld [vmem:[%s846] sm:$0x3]
      %v849 = vsel %vm301, %v842, 0
      %v852 = vsel %vm301, %v843, 0
      %v855 = vsel %vm301, %v844, 0
      %v858 = vsel %vm301, %v845, 0
      %v861 = vsel %vm314, %v847, 0
      %863 = vmatprep.subr.bf16.mxu0 0
      %864 = vmatpush1.bf16.msra.mxu0 %v861
      %865 = vmatprep.subr.bf16.mxu0 0
      %866 = vmatpush1.bf16.msra.mxu0 0
      %867 = vmatprep.subr.bf16.mxu0 0
      %868 = vmatpush1.bf16.msra.mxu0 0
      %869 = vmatprep.subr.bf16.mxu0 0
      %870 = vmatpush1.bf16.msra.mxu0 0
      %871 = vmatprep.subr.bf16.mxu0 0
      %872 = vmatpush1.bf16.msra.mxu0 0
      %873 = vmatprep.subr.bf16.mxu0 0
      %874 = vmatpush1.bf16.msra.mxu0 0
      %875 = vmatprep.subr.bf16.mxu0 0
      %876 = vmatpush1.bf16.msra.mxu0 0
      %877 = vmatprep.subr.bf16.mxu0 0
      %878 = vmatpush1.bf16.msra.mxu0 0
      %879 = vmatprep.subr.bf16.mxu0 0
      %880 = vmatpush1.bf16.msra.mxu0 0
      %881 = vmatprep.subr.bf16.mxu0 0
      %882 = vmatpush1.bf16.msra.mxu0 0
      %883 = vmatprep.subr.bf16.mxu0 0
      %884 = vmatpush1.bf16.msra.mxu0 0
      %885 = vmatprep.subr.bf16.mxu0 0
      %886 = vmatpush1.bf16.msra.mxu0 0
      %887 = vmatprep.subr.bf16.mxu0 0
      %888 = vmatpush1.bf16.msra.mxu0 0
      %889 = vmatprep.subr.bf16.mxu0 0
      %890 = vmatpush1.bf16.msra.mxu0 0
      %891 = vmatprep.subr.bf16.mxu0 0
      %892 = vmatpush1.bf16.msra.mxu0 0
      %893 = vmatprep.subr.bf16.mxu0 0
      %894 = vmatpush1.bf16.msra.mxu0 0
      %895 = vmatprep.mubr.bf16.mxu0 0
      %896 = vmatmul.mubr.bf16.gmra.mrb[0].mxu0 %v849
      %v897 = vpop.f32.mrb[0].mxu0
      %v898 = vadd.f32 0.0, %v897
      %v899 = vpop.f32.mrb[0].mxu0
      %v900 = vpop.f32.mrb[0].mxu0
      %v901 = vadd.f32 0.0, %v900
      %v902 = vpop.f32.mrb[0].mxu0
      %903 = vmatprep.mubr.bf16.mxu0 0
      %904 = vmatmul.mubr.bf16.gmra.mrb[0].mxu0 %v852
      %v905 = vpop.f32.mrb[0].mxu0
      %v906 = vadd.f32 0.0, %v905
      %v907 = vpop.f32.mrb[0].mxu0
      %v908 = vpop.f32.mrb[0].mxu0
      %v909 = vadd.f32 0.0, %v908
      %v910 = vpop.f32.mrb[0].mxu0
      %911 = vmatprep.mubr.bf16.mxu0 0
      %912 = vmatmul.mubr.bf16.gmra.mrb[0].mxu0 %v855
      %v913 = vpop.f32.mrb[0].mxu0
      %v914 = vadd.f32 0.0, %v913
      %v915 = vpop.f32.mrb[0].mxu0
      %v916 = vpop.f32.mrb[0].mxu0
      %v917 = vadd.f32 0.0, %v916
      %v918 = vpop.f32.mrb[0].mxu0
      %919 = vmatprep.mubr.bf16.mxu0 0
      %920 = vmatmul.mubr.bf16.gmra.mrb[0].mxu0 %v858
      %v921 = vpop.f32.mrb[0].mxu0
      %v922 = vadd.f32 0.0, %v921
      %v923 = vpop.f32.mrb[0].mxu0
      %v924 = vpop.f32.mrb[0].mxu0
      %v925 = vadd.f32 0.0, %v924
      %v926 = vpop.f32.mrb[0].mxu0
      %927 = vdwg.mxu0
      %v928 = vadd.f32 %v786, %v898
      %v929 = vadd.f32 %v787, %v901
      %v930 = vadd.f32 %v788, %v906
      %v931 = vadd.f32 %v789, %v909
      %v932 = vadd.f32 %v790, %v914
      %v933 = vadd.f32 %v791, %v917
      %v934 = vadd.f32 %v792, %v922
      %v935 = vadd.f32 %v793, %v925
      %v936 = vpack.c.bf16 %v243, %v241
      %v937 = vpack.c.bf16 %v247, %v245
      %v938 = vpack.c.bf16 %v251, %v249
      %v939 = vpack.c.bf16 %v255, %v253
      %s940 = scalar_lea.vmem %s1, 12
      %v941 = vld [vmem:[%s940] sm:$0x3]
      %v943 = vsel %vm301, %v936, 0
      %v946 = vsel %vm301, %v937, 0
      %v949 = vsel %vm301, %v938, 0
      %v952 = vsel %vm301, %v939, 0
      %v955 = vsel %vm314, %v941, 0
      %957 = vmatprep.subr.bf16.mxu0 0
      %958 = vmatpush1.bf16.msra.mxu0 %v955
      %959 = vmatprep.subr.bf16.mxu0 0
      %960 = vmatpush1.bf16.msra.mxu0 0
      %961 = vmatprep.subr.bf16.mxu0 0
      %962 = vmatpush1.bf16.msra.mxu0 0
      %963 = vmatprep.subr.bf16.mxu0 0
      %964 = vmatpush1.bf16.msra.mxu0 0
      %965 = vmatprep.subr.bf16.mxu0 0
      %966 = vmatpush1.bf16.msra.mxu0 0
      %967 = vmatprep.subr.bf16.mxu0 0
      %968 = vmatpush1.bf16.msra.mxu0 0
      %969 = vmatprep.subr.bf16.mxu0 0
      %970 = vmatpush1.bf16.msra.mxu0 0
      %971 = vmatprep.subr.bf16.mxu0 0
      %972 = vmatpush1.bf16.msra.mxu0 0
      %973 = vmatprep.subr.bf16.mxu0 0
      %974 = vmatpush1.bf16.msra.mxu0 0
      %975 = vmatprep.subr.bf16.mxu0 0
      %976 = vmatpush1.bf16.msra.mxu0 0
      %977 = vmatprep.subr.bf16.mxu0 0
      %978 = vmatpush1.bf16.msra.mxu0 0
      %979 = vmatprep.subr.bf16.mxu0 0
      %980 = vmatpush1.bf16.msra.mxu0 0
      %981 = vmatprep.subr.bf16.mxu0 0
      %982 = vmatpush1.bf16.msra.mxu0 0
      %983 = vmatprep.subr.bf16.mxu0 0
      %984 = vmatpush1.bf16.msra.mxu0 0
      %985 = vmatprep.subr.bf16.mxu0 0
      %986 = vmatpush1.bf16.msra.mxu0 0
      %987 = vmatprep.subr.bf16.mxu0 0
      %988 = vmatpush1.bf16.msra.mxu0 0
      %989 = vmatprep.mubr.bf16.mxu0 0
      %990 = vmatmul.mubr.bf16.gmra.mrb[0].mxu0 %v943
      %v991 = vpop.f32.mrb[0].mxu0
      %v992 = vadd.f32 0.0, %v991
      %v993 = vpop.f32.mrb[0].mxu0
      %v994 = vpop.f32.mrb[0].mxu0
      %v995 = vadd.f32 0.0, %v994
      %v996 = vpop.f32.mrb[0].mxu0
      %997 = vmatprep.mubr.bf16.mxu0 0
      %998 = vmatmul.mubr.bf16.gmra.mrb[0].mxu0 %v946
      %v999 = vpop.f32.mrb[0].mxu0
      %v1000 = vadd.f32 0.0, %v999
      %v1001 = vpop.f32.mrb[0].mxu0
      %v1002 = vpop.f32.mrb[0].mxu0
      %v1003 = vadd.f32 0.0, %v1002
      %v1004 = vpop.f32.mrb[0].mxu0
      %1005 = vmatprep.mubr.bf16.mxu0 0
      %1006 = vmatmul.mubr.bf16.gmra.mrb[0].mxu0 %v949
      %v1007 = vpop.f32.mrb[0].mxu0
      %v1008 = vadd.f32 0.0, %v1007
      %v1009 = vpop.f32.mrb[0].mxu0
      %v1010 = vpop.f32.mrb[0].mxu0
      %v1011 = vadd.f32 0.0, %v1010
      %v1012 = vpop.f32.mrb[0].mxu0
      %1013 = vmatprep.mubr.bf16.mxu0 0
      %1014 = vmatmul.mubr.bf16.gmra.mrb[0].mxu0 %v952
      %v1015 = vpop.f32.mrb[0].mxu0
      %v1016 = vadd.f32 0.0, %v1015
      %v1017 = vpop.f32.mrb[0].mxu0
      %v1018 = vpop.f32.mrb[0].mxu0
      %v1019 = vadd.f32 0.0, %v1018
      %v1020 = vpop.f32.mrb[0].mxu0
      %1021 = vdwg.mxu0
      %v1022 = vadd.f32 %v928, %v992
      %v1023 = vadd.f32 %v929, %v995
      %v1024 = vadd.f32 %v930, %v1000
      %v1025 = vadd.f32 %v931, %v1003
      %v1026 = vadd.f32 %v932, %v1008
      %v1027 = vadd.f32 %v933, %v1011
      %v1028 = vadd.f32 %v934, %v1016
      %v1029 = vadd.f32 %v935, %v1019
      %v1030 = vpack.c.bf16 %v259, %v258
      %v1031 = vpack.c.bf16 %v261, %v260
      %v1032 = vpack.c.bf16 %v263, %v262
      %v1033 = vpack.c.bf16 %v265, %v264
      %s1034 = scalar_lea.vmem %s1, 14
      %v1035 = vld [vmem:[%s1034] sm:$0x3]
      %v1037 = vsel %vm301, %v1030, 0
      %v1040 = vsel %vm301, %v1031, 0
      %v1043 = vsel %vm301, %v1032, 0
      %v1046 = vsel %vm301, %v1033, 0
      %v1049 = vsel %vm314, %v1035, 0
      %1051 = vmatprep.subr.bf16.mxu0 0
      %1052 = vmatpush1.bf16.msra.mxu0 %v1049
      %1053 = vmatprep.subr.bf16.mxu0 0
      %1054 = vmatpush1.bf16.msra.mxu0 0
      %1055 = vmatprep.subr.bf16.mxu0 0
      %1056 = vmatpush1.bf16.msra.mxu0 0
      %1057 = vmatprep.subr.bf16.mxu0 0
      %1058 = vmatpush1.bf16.msra.mxu0 0
      %1059 = vmatprep.subr.bf16.mxu0 0
      %1060 = vmatpush1.bf16.msra.mxu0 0
      %1061 = vmatprep.subr.bf16.mxu0 0
      %1062 = vmatpush1.bf16.msra.mxu0 0
      %1063 = vmatprep.subr.bf16.mxu0 0
      %1064 = vmatpush1.bf16.msra.mxu0 0
      %1065 = vmatprep.subr.bf16.mxu0 0
      %1066 = vmatpush1.bf16.msra.mxu0 0
      %1067 = vmatprep.subr.bf16.mxu0 0
      %1068 = vmatpush1.bf16.msra.mxu0 0
      %1069 = vmatprep.subr.bf16.mxu0 0
      %1070 = vmatpush1.bf16.msra.mxu0 0
      %1071 = vmatprep.subr.bf16.mxu0 0
      %1072 = vmatpush1.bf16.msra.mxu0 0
      %1073 = vmatprep.subr.bf16.mxu0 0
      %1074 = vmatpush1.bf16.msra.mxu0 0
      %1075 = vmatprep.subr.bf16.mxu0 0
      %1076 = vmatpush1.bf16.msra.mxu0 0
      %1077 = vmatprep.subr.bf16.mxu0 0
      %1078 = vmatpush1.bf16.msra.mxu0 0
      %1079 = vmatprep.subr.bf16.mxu0 0
      %1080 = vmatpush1.bf16.msra.mxu0 0
      %1081 = vmatprep.subr.bf16.mxu0 0
      %1082 = vmatpush1.bf16.msra.mxu0 0
      %1083 = vmatprep.mubr.bf16.mxu0 0
      %1084 = vmatmul.mubr.bf16.gmra.mrb[0].mxu0 %v1037
      %v1085 = vpop.f32.mrb[0].mxu0
      %v1086 = vadd.f32 0.0, %v1085
      %v1087 = vpop.f32.mrb[0].mxu0
      %v1088 = vpop.f32.mrb[0].mxu0
      %v1089 = vadd.f32 0.0, %v1088
      %v1090 = vpop.f32.mrb[0].mxu0
      %1091 = vmatprep.mubr.bf16.mxu0 0
      %1092 = vmatmul.mubr.bf16.gmra.mrb[0].mxu0 %v1040
      %v1093 = vpop.f32.mrb[0].mxu0
      %v1094 = vadd.f32 0.0, %v1093
      %v1095 = vpop.f32.mrb[0].mxu0
      %v1096 = vpop.f32.mrb[0].mxu0
      %v1097 = vadd.f32 0.0, %v1096
      %v1098 = vpop.f32.mrb[0].mxu0
      %1099 = vmatprep.mubr.bf16.mxu0 0
      %1100 = vmatmul.mubr.bf16.gmra.mrb[0].mxu0 %v1043
      %v1101 = vpop.f32.mrb[0].mxu0
      %v1102 = vadd.f32 0.0, %v1101
      %v1103 = vpop.f32.mrb[0].mxu0
      %v1104 = vpop.f32.mrb[0].mxu0
      %v1105 = vadd.f32 0.0, %v1104
      %v1106 = vpop.f32.mrb[0].mxu0
      %1107 = vmatprep.mubr.bf16.mxu0 0
      %1108 = vmatmul.mubr.bf16.gmra.mrb[0].mxu0 %v1046
      %v1109 = vpop.f32.mrb[0].mxu0
      %v1110 = vadd.f32 0.0, %v1109
      %v1111 = vpop.f32.mrb[0].mxu0
      %v1112 = vpop.f32.mrb[0].mxu0
      %v1113 = vadd.f32 0.0, %v1112
      %v1114 = vpop.f32.mrb[0].mxu0
      %1115 = vdwg.mxu0
      %v1116 = vadd.f32 %v1022, %v1086
      %v1117 = vadd.f32 %v1023, %v1089
      %v1118 = vadd.f32 %v1024, %v1094
      %v1119 = vadd.f32 %v1025, %v1097
      %v1120 = vadd.f32 %v1026, %v1102
      %v1121 = vadd.f32 %v1027, %v1105
      %v1122 = vadd.f32 %v1028, %v1110
      %v1123 = vadd.f32 %v1029, %v1113
      %v1126 = vrot.slane %v255, 1
      %v1127 = vrot.slane %v256, 1
      %v1128 = vsel %vm479, %v1126, %v1127
      %v1130 = vpack.c.bf16 %v488, %v485
      %v1131 = vpack.c.bf16 %v494, %v491
      %v1132 = vpack.c.bf16 %v500, %v497
      %v1133 = vpack.c.bf16 %v1128, %v503
      %s1134 = scalar_lea.vmem %s1, 16
      %v1135 = vld [vmem:[%s1134] sm:$0x3]
      %v1137 = vsel %vm301, %v1130, 0
      %v1140 = vsel %vm301, %v1131, 0
      %v1143 = vsel %vm301, %v1132, 0
      %v1146 = vsel %vm301, %v1133, 0
      %v1149 = vsel %vm314, %v1135, 0
      %1151 = vmatprep.subr.bf16.mxu0 0
      %1152 = vmatpush1.bf16.msra.mxu0 %v1149
      %1153 = vmatprep.subr.bf16.mxu0 0
      %1154 = vmatpush1.bf16.msra.mxu0 0
      %1155 = vmatprep.subr.bf16.mxu0 0
      %1156 = vmatpush1.bf16.msra.mxu0 0
      %1157 = vmatprep.subr.bf16.mxu0 0
      %1158 = vmatpush1.bf16.msra.mxu0 0
      %1159 = vmatprep.subr.bf16.mxu0 0
      %1160 = vmatpush1.bf16.msra.mxu0 0
      %1161 = vmatprep.subr.bf16.mxu0 0
      %1162 = vmatpush1.bf16.msra.mxu0 0
      %1163 = vmatprep.subr.bf16.mxu0 0
      %1164 = vmatpush1.bf16.msra.mxu0 0
      %1165 = vmatprep.subr.bf16.mxu0 0
      %1166 = vmatpush1.bf16.msra.mxu0 0
      %1167 = vmatprep.subr.bf16.mxu0 0
      %1168 = vmatpush1.bf16.msra.mxu0 0
      %1169 = vmatprep.subr.bf16.mxu0 0
      %1170 = vmatpush1.bf16.msra.mxu0 0
      %1171 = vmatprep.subr.bf16.mxu0 0
      %1172 = vmatpush1.bf16.msra.mxu0 0
      %1173 = vmatprep.subr.bf16.mxu0 0
      %1174 = vmatpush1.bf16.msra.mxu0 0
      %1175 = vmatprep.subr.bf16.mxu0 0
      %1176 = vmatpush1.bf16.msra.mxu0 0
      %1177 = vmatprep.subr.bf16.mxu0 0
      %1178 = vmatpush1.bf16.msra.mxu0 0
      %1179 = vmatprep.subr.bf16.mxu0 0
      %1180 = vmatpush1.bf16.msra.mxu0 0
      %1181 = vmatprep.subr.bf16.mxu0 0
      %1182 = vmatpush1.bf16.msra.mxu0 0
      %1183 = vmatprep.mubr.bf16.mxu0 0
      %1184 = vmatmul.mubr.bf16.gmra.mrb[0].mxu0 %v1137
      %v1185 = vpop.f32.mrb[0].mxu0
      %v1186 = vadd.f32 0.0, %v1185
      %v1187 = vpop.f32.mrb[0].mxu0
      %v1188 = vpop.f32.mrb[0].mxu0
      %v1189 = vadd.f32 0.0, %v1188
      %v1190 = vpop.f32.mrb[0].mxu0
      %1191 = vmatprep.mubr.bf16.mxu0 0
      %1192 = vmatmul.mubr.bf16.gmra.mrb[0].mxu0 %v1140
      %v1193 = vpop.f32.mrb[0].mxu0
      %v1194 = vadd.f32 0.0, %v1193
      %v1195 = vpop.f32.mrb[0].mxu0
      %v1196 = vpop.f32.mrb[0].mxu0
      %v1197 = vadd.f32 0.0, %v1196
      %v1198 = vpop.f32.mrb[0].mxu0
      %1199 = vmatprep.mubr.bf16.mxu0 0
      %1200 = vmatmul.mubr.bf16.gmra.mrb[0].mxu0 %v1143
      %v1201 = vpop.f32.mrb[0].mxu0
      %v1202 = vadd.f32 0.0, %v1201
      %v1203 = vpop.f32.mrb[0].mxu0
      %v1204 = vpop.f32.mrb[0].mxu0
      %v1205 = vadd.f32 0.0, %v1204
      %v1206 = vpop.f32.mrb[0].mxu0
      %1207 = vmatprep.mubr.bf16.mxu0 0
      %1208 = vmatmul.mubr.bf16.gmra.mrb[0].mxu0 %v1146
      %v1209 = vpop.f32.mrb[0].mxu0
      %v1210 = vadd.f32 0.0, %v1209
      %v1211 = vpop.f32.mrb[0].mxu0
      %v1212 = vpop.f32.mrb[0].mxu0
      %v1213 = vadd.f32 0.0, %v1212
      %v1214 = vpop.f32.mrb[0].mxu0
      %1215 = vdwg.mxu0
      %v1216 = vadd.f32 %v1116, %v1186
      %v1217 = vadd.f32 %v1117, %v1189
      %v1218 = vadd.f32 %v1118, %v1194
      %v1219 = vadd.f32 %v1119, %v1197
      %v1220 = vadd.f32 %v1120, %v1202
      %v1221 = vadd.f32 %v1121, %v1205
      %v1222 = vadd.f32 %v1122, %v1210
      %v1223 = vadd.f32 %v1123, %v1213
      %v1224 = vpack.c.bf16 %v1216, %v1216
      %v1225 = vpack.c.bf16 %v1217, %v1217
      %v1226 = vpack.c.bf16 %v1218, %v1218
      %v1227 = vpack.c.bf16 %v1219, %v1219
      %v1228 = vpack.c.bf16 %v1220, %v1220
      %v1229 = vpack.c.bf16 %v1221, %v1221
      %v1230 = vpack.c.bf16 %v1222, %v1222
      %v1231 = vpack.c.bf16 %v1223, %v1223
      %1232 = vst [vmem:[%s182] sm:$0xf] %v1224
      %1233 = vst [vmem:[%s182 + $0x4] sm:$0xf] %v1225
      %1234 = vst [vmem:[%s182 + $0x8] sm:$0xf] %v1226
      %1235 = vst [vmem:[%s182 + $0xc] sm:$0xf] %v1227
      %1236 = vst [vmem:[%s182 + $0x10] sm:$0xf] %v1228
      %1237 = vst [vmem:[%s182 + $0x14] sm:$0xf] %v1229
      %1238 = vst [vmem:[%s182 + $0x18] sm:$0xf] %v1230
      %1239 = vst [vmem:[%s182 + $0x1c] sm:$0xf] %v1231
      %v1240 = vadd.f32 %v1216, %v1217
      %v1241 = vadd.f32 %v1240, %v1218
      %v1242 = vadd.f32 %v1241, %v1219
      %v1243 = vadd.f32 %v1242, %v1220
      %v1244 = vadd.f32 %v1243, %v1221
      %v1245 = vadd.f32 %v1244, %v1222
      %v1246 = vadd.f32 %v1245, %v1223
      %v1247 = vrot.slane %v1246, 4
      %v1248 = vadd.f32 %v1246, %v1247
      %v1249 = vrot.slane %v1248, 2
      %v1250 = vadd.f32 %v1248, %v1249
      %v1251 = vrot.slane %v1250, 1
      %v1252 = vadd.f32 %v1250, %v1251
      %v1253 = vmul.f32 %v1216, %v1216
      %v1254 = vmul.f32 %v1217, %v1217
      %v1255 = vmul.f32 %v1218, %v1218
      %v1256 = vmul.f32 %v1219, %v1219
      %v1257 = vmul.f32 %v1220, %v1220
      %v1258 = vmul.f32 %v1221, %v1221
      %v1259 = vmul.f32 %v1222, %v1222
      %v1260 = vmul.f32 %v1223, %v1223
      %v1261 = vadd.f32 %v1253, %v1254
      %v1262 = vadd.f32 %v1261, %v1255
      %v1263 = vadd.f32 %v1262, %v1256
      %v1264 = vadd.f32 %v1263, %v1257
      %v1265 = vadd.f32 %v1264, %v1258
      %v1266 = vadd.f32 %v1265, %v1259
      %v1267 = vadd.f32 %v1266, %v1260
      %v1268 = vrot.slane %v1267, 4
      %v1269 = vadd.f32 %v1267, %v1268
      %v1270 = vrot.slane %v1269, 2
      %v1271 = vadd.f32 %v1269, %v1270
      %v1272 = vrot.slane %v1271, 1
      %v1273 = vadd.f32 %v1271, %v1272
      %vm1274 = vcmask 1040384
      %v1275 = vsel %vm1274, %v1252, %v1273
      %1276 = vst [vmem:[%s186] sm:$0x3] %v1275
      %p1277 = scmp.lt.s32.totalorder %s15, 1
      %s1278 = scalar_select %p1277, %s15, 1
      %s1279 = smul.addr %s1278, 8
      %s1280 = smul.addr %s1279, 4
      %s1281 = scalar_lea.vmem %s2, %s1280
      %p1282 = scmp.lt.s32.totalorder %s15, 1
      %s1283 = scalar_select %p1282, %s15, 1
      %s1284 = smul.addr %s1283, 2
      %s1285 = scalar_lea.vmem %s3, %s1284
      // Predicated region
      $region29: #{basic_block_forward.5} parent=27 // pred_check
        %p1286 = pneg %p80
      $region30: #{basic_block_forward.5} parent=27 // pred_check_branch
        %1288 = sbr.rel (%p1286) target = $region32
      $region31: #{basic_block_forward.5} parent=27 // pred_region
        _
      $region32: #{basic_block_forward.5} parent=27 // pred_fallthru
        _
      // Predicated region
      $region33: #{basic_block_forward.5} parent=27 // pred_check
        %p1289 = pneg %p106
      $region34: #{basic_block_forward.5} parent=27 // pred_check_branch
        %1291 = sbr.rel (%p1289) target = $region36
      $region35: #{basic_block_forward.5} parent=27 // pred_region
        _
      $region36: #{basic_block_forward.5} parent=27 // pred_fallthru
        _
    $region28: #{basic_block_forward.5} parent=5 // pred_fallthru
      _
    %p1292 = scmp.le.s32.totalorder 2, %s10
    // Predicated region
    $region37: #{basic_block_forward.5} parent=5 // pred_check
      %p1293 = pneg %p1292
    $region38: #{basic_block_forward.5} parent=5 // pred_check_branch
      %1295 = sbr.rel (%p1293) target = $region40
    $region39: #{basic_block_forward.5} parent=5 // pred_region
      %s1296 = ssub.s32 %s10, 2
      // Predicated region
      $region41: #{basic_block_forward.5} parent=39 // pred_check
        %p1297 = pneg %p86
      $region42: #{basic_block_forward.5} parent=39 // pred_check_branch
        %1299 = sbr.rel (%p1297) target = $region44
      $region43: #{basic_block_forward.5} parent=39 // pred_region
        %p1300 = scmp.lt.s32.totalorder %s16, 1
        %s1301 = scalar_select %p1300, %s16, 1
        %s1302 = smul.addr %s1301, 8
        %s1303 = smul.addr %s1302, 4
        %s1304 = scalar_lea.vmem %s2, %s1303
      $region44: #{basic_block_forward.5} parent=39 // pred_fallthru
        _
      // Predicated region
      $region45: #{basic_block_forward.5} parent=39 // pred_check
        %p1305 = pneg %p112
      $region46: #{basic_block_forward.5} parent=39 // pred_check_branch
        %1307 = sbr.rel (%p1305) target = $region48
      $region47: #{basic_block_forward.5} parent=39 // pred_region
        %p1308 = scmp.lt.s32.totalorder %s16, 1
        %s1309 = scalar_select %p1308, %s16, 1
        %s1310 = smul.addr %s1309, 2
        %s1311 = scalar_lea.vmem %s3, %s1310
      $region48: #{basic_block_forward.5} parent=39 // pred_fallthru
        _
    $region40: #{basic_block_forward.5} parent=5 // pred_fallthru
      _
  $region6: #{basic_block_forward.5} parent=0 // loop_footer
    %s14 = sadd.s32 1, %s10
  $region7: #{basic_block_forward.5} parent=0 // loop_footer_branch
    %9 = sbr.rel target = $region3
  $region8: #{basic_block_forward.5} parent=0 // loop_exit
    _

// kernel: basic_block_forward.9
$region0: #{basic_block_forward.9}
  #allocation0 [shape = 'u32[]', space=smem, size = 0x4, offset = 0x4, fixed_abs, tag = 'smem constant byte address 0x4 - core index']
  #allocation1 [shape = 'u32[144,128]{1,0:T(1,128)}', space=vmem, size = 0x12000, scoped, tag = 'internal scratch']
  %s0 = inlined_call_operand.vmem [shape: bf16[2,8,8,128], index: 0, kind: input, shape index: {}]
  %s1 = inlined_call_operand.vmem [shape: bf16[2,8,8,128], index: 1, kind: input, shape index: {}]
  %s2 = inlined_call_operand.vmem [shape: f32[1,128], index: 2, kind: input, shape index: {}]
  %s3 = inlined_call_operand.vmem [shape: f32[1,128], index: 3, kind: input, shape index: {}]
  %s4 = inlined_call_operand.vmem [shape: f32[1,128], index: 4, kind: input, shape index: {}]
  %s5 = inlined_call_operand.vmem [shape: f32[1,128], index: 5, kind: input, shape index: {}]
  %s6 = inlined_call_operand.vmem [shape: f32[2,8,8,128], index: 6, kind: output, shape index: {}]
  %s7 = sld [smem:[#allocation0]]
  $region57: #{basic_block_forward.9} parent=0
    _
  %s9 = ssub.s32 1, %s7
  %s10 = scalar_select 0, %s9, %s7
  loop: start=0, step=1, limit=4
  $region2: #{basic_block_forward.9} parent=0 // loop_pre_header
    _
  $region3: #{basic_block_forward.9} parent=0 // loop_header
    %s12 = sphi 0, %s16
    %p13 = scmp.ge.s32.totalorder %s12, 4
    %s22 = sphi 0, %s24
    %s25 = sphi 0, %s22
    %s26 = sphi 0, %s25
    %s42 = sphi 0, %s26
    %s48 = sphi 0, %s50
    %s51 = sphi 0, %s48
    %s52 = sphi 0, %s51
    %s68 = sphi 0, %s52
    %s72 = sphi 0, %s72
    %s74 = sphi 0, %s72
    %s75 = sphi 0, %s74
    %s89 = sphi 0, %s75
    %s93 = sphi 0, %s93
    %s95 = sphi 0, %s93
    %s96 = sphi 0, %s95
    %s110 = sphi 0, %s96
    %s114 = sphi 0, %s114
    %s116 = sphi 0, %s114
    %s117 = sphi 0, %s116
    %s131 = sphi 0, %s117
    %s135 = sphi 0, %s135
    %s137 = sphi 0, %s135
    %s138 = sphi 0, %s137
    %s152 = sphi 0, %s138
    %s158 = sphi 0, %s160
    %s161 = sphi 0, %s158
    %s162 = sphi 0, %s161
    %s178 = sphi 0, %s162
  $region4: #{basic_block_forward.9} parent=0 // loop_header_branch
    %15 = sbr.rel (%p13) target = $region8
  $region5: #{basic_block_forward.9} parent=0 // loop_body
    %s17 = ssub.s32 %s12, 1
    %s18 = ssub.s32 %s12, 2
    %s19 = sadd.s32 %s12, 1
    %s20 = ssub.s32 %s12, %s19
    %p21 = scmp.eq.s32.totalorder %s20, 0
    %s23 = sadd.s32 %s22, 1
    %s24 = scalar_select %p21, %s22, %s23
    %p27 = pneg %p21
    %p28 = scmp.eq.s32.totalorder %s12, 1
    %p29 = por %p27, %p28
    %p30 = scmp.ne.s32.totalorder %s22, %s25
    %p31 = scmp.eq.s32.totalorder %s12, 0
    %p32 = por %p30, %p31
    %p33 = scmp.ne.s32.totalorder %s22, %s25
    %p34 = scmp.eq.s32.totalorder %s17, 1
    %p35 = por %p33, %p34
    %p36 = scmp.ne.s32.totalorder %s25, %s26
    %p37 = scmp.eq.s32.totalorder %s17, 0
    %p38 = por %p36, %p37
    %p39 = scmp.ne.s32.totalorder %s25, %s26
    %p40 = scmp.eq.s32.totalorder %s18, 1
    %p41 = por %p39, %p40
    %p43 = scmp.ne.s32.totalorder %s26, %s42
    %p44 = scmp.eq.s32.totalorder %s18, 0
    %p45 = por %p43, %p44
    %s46 = ssub.s32 %s12, %s19
    %p47 = scmp.eq.s32.totalorder %s46, 0
    %s49 = sadd.s32 %s48, 1
    %s50 = scalar_select %p47, %s48, %s49
    %p53 = pneg %p47
    %p54 = scmp.eq.s32.totalorder %s12, 1
    %p55 = por %p53, %p54
    %p56 = scmp.ne.s32.totalorder %s48, %s51
    %p57 = scmp.eq.s32.totalorder %s12, 0
    %p58 = por %p56, %p57
    %p59 = scmp.ne.s32.totalorder %s48, %s51
    %p60 = scmp.eq.s32.totalorder %s17, 1
    %p61 = por %p59, %p60
    %p62 = scmp.ne.s32.totalorder %s51, %s52
    %p63 = scmp.eq.s32.totalorder %s17, 0
    %p64 = por %p62, %p63
    %p65 = scmp.ne.s32.totalorder %s51, %s52
    %p66 = scmp.eq.s32.totalorder %s18, 1
    %p67 = por %p65, %p66
    %p69 = scmp.ne.s32.totalorder %s52, %s68
    %p70 = scmp.eq.s32.totalorder %s18, 0
    %p71 = por %p69, %p70
    %s73 = sadd.s32 %s72, 1
    %p76 = scmp.eq.s32.totalorder %s12, 1
    %p77 = scmp.ne.s32.totalorder %s72, %s74
    %p78 = scmp.eq.s32.totalorder %s12, 0
    %p79 = por %p77, %p78
    %p80 = scmp.ne.s32.totalorder %s72, %s74
    %p81 = scmp.eq.s32.totalorder %s17, 1
    %p82 = por %p80, %p81
    %p83 = scmp.ne.s32.totalorder %s74, %s75
    %p84 = scmp.eq.s32.totalorder %s17, 0
    %p85 = por %p83, %p84
    %p86 = scmp.ne.s32.totalorder %s74, %s75
    %p87 = scmp.eq.s32.totalorder %s18, 1
    %p88 = por %p86, %p87
    %p90 = scmp.ne.s32.totalorder %s75, %s89
    %p91 = scmp.eq.s32.totalorder %s18, 0
    %p92 = por %p90, %p91
    %s94 = sadd.s32 %s93, 1
    %p97 = scmp.eq.s32.totalorder %s12, 1
    %p98 = scmp.ne.s32.totalorder %s93, %s95
    %p99 = scmp.eq.s32.totalorder %s12, 0
    %p100 = por %p98, %p99
    %p101 = scmp.ne.s32.totalorder %s93, %s95
    %p102 = scmp.eq.s32.totalorder %s17, 1
    %p103 = por %p101, %p102
    %p104 = scmp.ne.s32.totalorder %s95, %s96
    %p105 = scmp.eq.s32.totalorder %s17, 0
    %p106 = por %p104, %p105
    %p107 = scmp.ne.s32.totalorder %s95, %s96
    %p108 = scmp.eq.s32.totalorder %s18, 1
    %p109 = por %p107, %p108
    %p111 = scmp.ne.s32.totalorder %s96, %s110
    %p112 = scmp.eq.s32.totalorder %s18, 0
    %p113 = por %p111, %p112
    %s115 = sadd.s32 %s114, 1
    %p118 = scmp.eq.s32.totalorder %s12, 1
    %p119 = scmp.ne.s32.totalorder %s114, %s116
    %p120 = scmp.eq.s32.totalorder %s12, 0
    %p121 = por %p119, %p120
    %p122 = scmp.ne.s32.totalorder %s114, %s116
    %p123 = scmp.eq.s32.totalorder %s17, 1
    %p124 = por %p122, %p123
    %p125 = scmp.ne.s32.totalorder %s116, %s117
    %p126 = scmp.eq.s32.totalorder %s17, 0
    %p127 = por %p125, %p126
    %p128 = scmp.ne.s32.totalorder %s116, %s117
    %p129 = scmp.eq.s32.totalorder %s18, 1
    %p130 = por %p128, %p129
    %p132 = scmp.ne.s32.totalorder %s117, %s131
    %p133 = scmp.eq.s32.totalorder %s18, 0
    %p134 = por %p132, %p133
    %s136 = sadd.s32 %s135, 1
    %p139 = scmp.eq.s32.totalorder %s12, 1
    %p140 = scmp.ne.s32.totalorder %s135, %s137
    %p141 = scmp.eq.s32.totalorder %s12, 0
    %p142 = por %p140, %p141
    %p143 = scmp.ne.s32.totalorder %s135, %s137
    %p144 = scmp.eq.s32.totalorder %s17, 1
    %p145 = por %p143, %p144
    %p146 = scmp.ne.s32.totalorder %s137, %s138
    %p147 = scmp.eq.s32.totalorder %s17, 0
    %p148 = por %p146, %p147
    %p149 = scmp.ne.s32.totalorder %s137, %s138
    %p150 = scmp.eq.s32.totalorder %s18, 1
    %p151 = por %p149, %p150
    %p153 = scmp.ne.s32.totalorder %s138, %s152
    %p154 = scmp.eq.s32.totalorder %s18, 0
    %p155 = por %p153, %p154
    %s156 = ssub.s32 %s12, %s19
    %p157 = scmp.eq.s32.totalorder %s156, 0
    %s159 = sadd.s32 %s158, 1
    %s160 = scalar_select %p157, %s158, %s159
    %p163 = pneg %p157
    %p164 = scmp.eq.s32.totalorder %s12, 1
    %p165 = por %p163, %p164
    %p166 = scmp.ne.s32.totalorder %s158, %s161
    %p167 = scmp.eq.s32.totalorder %s12, 0
    %p168 = por %p166, %p167
    %p169 = scmp.ne.s32.totalorder %s158, %s161
    %p170 = scmp.eq.s32.totalorder %s17, 1
    %p171 = por %p169, %p170
    %p172 = scmp.ne.s32.totalorder %s161, %s162
    %p173 = scmp.eq.s32.totalorder %s17, 0
    %p174 = por %p172, %p173
    %p175 = scmp.ne.s32.totalorder %s161, %s162
    %p176 = scmp.eq.s32.totalorder %s18, 1
    %p177 = por %p175, %p176
    %p179 = scmp.ne.s32.totalorder %s162, %s178
    %p180 = scmp.eq.s32.totalorder %s18, 0
    %p181 = por %p179, %p180
    %p182 = scmp.le.s32.totalorder 1, %s12
    %p183 = scmp.lt.s32.totalorder %s12, 3
    %p184 = pnand %p182, %p183
    %p185 = pneg %p184
    // Predicated region
    $region9: #{basic_block_forward.9} parent=5 // pred_check
      _
    $region10: #{basic_block_forward.9} parent=5 // pred_check_branch
      %187 = sbr.rel (%p184) target = $region12
    $region11: #{basic_block_forward.9} parent=5 // pred_region
      %s188 = ssub.s32 %s12, 1
      // Predicated region
      $region13: #{basic_block_forward.9} parent=11 // pred_check
        %p189 = pneg %p85
      $region14: #{basic_block_forward.9} parent=11 // pred_check_branch
        %191 = sbr.rel (%p189) target = $region16
      $region15: #{basic_block_forward.9} parent=11 // pred_region
        _
      $region16: #{basic_block_forward.9} parent=11 // pred_fallthru
        _
      // Predicated region
      $region17: #{basic_block_forward.9} parent=11 // pred_check
        %p192 = pneg %p106
      $region18: #{basic_block_forward.9} parent=11 // pred_check_branch
        %194 = sbr.rel (%p192) target = $region20
      $region19: #{basic_block_forward.9} parent=11 // pred_region
        _
      $region20: #{basic_block_forward.9} parent=11 // pred_fallthru
        _
      // Predicated region
      $region21: #{basic_block_forward.9} parent=11 // pred_check
        %p195 = pneg %p127
      $region22: #{basic_block_forward.9} parent=11 // pred_check_branch
        %197 = sbr.rel (%p195) target = $region24
      $region23: #{basic_block_forward.9} parent=11 // pred_region
        _
      $region24: #{basic_block_forward.9} parent=11 // pred_fallthru
        _
      // Predicated region
      $region25: #{basic_block_forward.9} parent=11 // pred_check
        %p198 = pneg %p148
      $region26: #{basic_block_forward.9} parent=11 // pred_check_branch
        %200 = sbr.rel (%p198) target = $region28
      $region27: #{basic_block_forward.9} parent=11 // pred_region
        _
      $region28: #{basic_block_forward.9} parent=11 // pred_fallthru
        _
    $region12: #{basic_block_forward.9} parent=5 // pred_fallthru
      _
    %p201 = scmp.lt.s32.totalorder %s12, 2
    // Predicated region
    $region29: #{basic_block_forward.9} parent=5 // pred_check
      %p202 = pneg %p201
    $region30: #{basic_block_forward.9} parent=5 // pred_check_branch
      %204 = sbr.rel (%p202) target = $region32
    $region31: #{basic_block_forward.9} parent=5 // pred_region
      // Predicated region
      $region33: #{basic_block_forward.9} parent=31 // pred_check
        %p205 = pneg %p32
      $region34: #{basic_block_forward.9} parent=31 // pred_check_branch
        %207 = sbr.rel (%p205) target = $region36
      $region35: #{basic_block_forward.9} parent=31 // pred_region
        %p208 = scmp.lt.s32.totalorder %s12, 1
        %s209 = scalar_select %p208, %s12, 1
        %s210 = smul.addr %s209, 8
        %s211 = smul.addr %s210, 4
        %s212 = scalar_lea.vmem %s0, %s211
      $region36: #{basic_block_forward.9} parent=31 // pred_fallthru
        _
      // Predicated region
      $region37: #{basic_block_forward.9} parent=31 // pred_check
        %p213 = pneg %p58
      $region38: #{basic_block_forward.9} parent=31 // pred_check_branch
        %215 = sbr.rel (%p213) target = $region40
      $region39: #{basic_block_forward.9} parent=31 // pred_region
        %p216 = scmp.lt.s32.totalorder %s12, 1
        %s217 = scalar_select %p216, %s12, 1
        %s218 = smul.addr %s217, 8
        %s219 = smul.addr %s218, 4
        %s220 = scalar_lea.vmem %s1, %s219
      $region40: #{basic_block_forward.9} parent=31 // pred_fallthru
        _
    $region32: #{basic_block_forward.9} parent=5 // pred_fallthru
      _
    %p221 = scmp.le.s32.totalorder 1, %s12
    %p222 = scmp.lt.s32.totalorder %s12, 3
    %p223 = pnand %p221, %p222
    %p224 = pneg %p223
    // Predicated region
    $region41: #{basic_block_forward.9} parent=5 // pred_check
      _
    $region42: #{basic_block_forward.9} parent=5 // pred_check_branch
      %226 = sbr.rel (%p223) target = $region44
    $region43: #{basic_block_forward.9} parent=5 // pred_region
      %s227 = ssub.s32 %s12, 1
      %p228 = scmp.lt.s32.totalorder %s17, 1
      %s229 = scalar_select %p228, %s17, 1
      %s230 = smul.addr %s229, 8
      %s231 = smul.addr %s230, 4
      %s232 = scalar_lea.vmem %s0, %s231
      %p233 = pneg %p38
      %p234 = pneg %p35
      %p235 = scmp.lt.s32.totalorder %s17, 1
      %s236 = scalar_select %p235, %s17, 1
      %s237 = smul.addr %s236, 8
      %s238 = smul.addr %s237, 4
      %s239 = scalar_lea.vmem %s1, %s238
      %p240 = pneg %p64
      %p241 = pneg %p61
      %p242 = pneg %p85
      %p243 = pneg %p82
      %p244 = pneg %p106
      %p245 = pneg %p103
      %p246 = pneg %p127
      %p247 = pneg %p124
      %p248 = pneg %p148
      %p249 = pneg %p145
      %p250 = pneg %p174
      %p251 = pneg %p171
      %p252 = scmp.lt.s32.totalorder %s17, 1
      %s253 = scalar_select %p252, %s17, 1
      %s254 = smul.addr %s253, 8
      %s255 = smul.addr %s254, 8
      %s256 = scalar_lea.vmem %s6, %s255
      %p257 = scmp.lt.s32.totalorder %s17, 1
      %s258 = scalar_select %p257, %s17, 1
      %s259 = smul.addr %s258, 8
      %s260 = smul.addr %s259, 4
      %s261 = scalar_lea.vmem %s0, %s260
      %p262 = scmp.lt.s32.totalorder %s17, 1
      %s263 = scalar_select %p262, %s17, 1
      %s264 = smul.addr %s263, 8
      %s265 = smul.addr %s264, 4
      %s266 = scalar_lea.vmem %s1, %s265
      %p267 = scmp.lt.s32.totalorder %s17, 1
      %s268 = scalar_select %p267, %s17, 1
      %s269 = smul.addr %s268, 8
      %s270 = smul.addr %s269, 8
      %s271 = scalar_lea.vmem %s6, %s270
      %v272 = vld [vmem:[%s261] sm:$0xf]
      %v273 = vld [vmem:[%s261 + $0x4] sm:$0xf]
      %v274 = vld [vmem:[%s261 + $0x8] sm:$0xf]
      %v275 = vld [vmem:[%s261 + $0xc] sm:$0xf]
      %v276 = vld [vmem:[%s261 + $0x10] sm:$0xf]
      %v277 = vld [vmem:[%s261 + $0x14] sm:$0xf]
      %v278 = vld [vmem:[%s261 + $0x18] sm:$0xf]
      %v279 = vld [vmem:[%s261 + $0x1c] sm:$0xf]
      %v280 = vunpack.c.l.bf16 %v272
      %v281 = vunpack.c.l.bf16 %v273
      %v282 = vunpack.c.l.bf16 %v274
      %v283 = vunpack.c.l.bf16 %v275
      %v284 = vunpack.c.l.bf16 %v276
      %v285 = vunpack.c.l.bf16 %v277
      %v286 = vunpack.c.l.bf16 %v278
      %v287 = vunpack.c.l.bf16 %v279
      %v288 = vld [vmem:[%s2] sm:$0x1]
      %v290 = vlaneseq
      %v291 = vshrl.u32 %v290, 7
      %v292 = vsub.s32 0, %v291
      %v293 = vrot.slane %v288, %v292
      %v295 = vmul.f32 %v280, %v293
      %v296 = vmul.f32 %v281, %v293
      %v297 = vmul.f32 %v282, %v293
      %v298 = vmul.f32 %v283, %v293
      %v299 = vmul.f32 %v284, %v293
      %v300 = vmul.f32 %v285, %v293
      %v301 = vmul.f32 %v286, %v293
      %v302 = vmul.f32 %v287, %v293
      %v303 = vld [vmem:[%s3] sm:$0x1]
      %v305 = vlaneseq
      %v306 = vshrl.u32 %v305, 7
      %v307 = vsub.s32 0, %v306
      %v308 = vrot.slane %v303, %v307
      %v310 = vadd.f32 %v295, %v308
      %v311 = vadd.f32 %v296, %v308
      %v312 = vadd.f32 %v297, %v308
      %v313 = vadd.f32 %v298, %v308
      %v314 = vadd.f32 %v299, %v308
      %v315 = vadd.f32 %v300, %v308
      %v316 = vadd.f32 %v301, %v308
      %v317 = vadd.f32 %v302, %v308
      %v318 = vld [vmem:[%s266] sm:$0xf]
      %v319 = vld [vmem:[%s266 + $0x4] sm:$0xf]
      %v320 = vld [vmem:[%s266 + $0x8] sm:$0xf]
      %v321 = vld [vmem:[%s266 + $0xc] sm:$0xf]
      %v322 = vld [vmem:[%s266 + $0x10] sm:$0xf]
      %v323 = vld [vmem:[%s266 + $0x14] sm:$0xf]
      %v324 = vld [vmem:[%s266 + $0x18] sm:$0xf]
      %v325 = vld [vmem:[%s266 + $0x1c] sm:$0xf]
      %v326 = vunpack.c.l.bf16 %v318
      %v327 = vunpack.c.l.bf16 %v319
      %v328 = vunpack.c.l.bf16 %v320
      %v329 = vunpack.c.l.bf16 %v321
      %v330 = vunpack.c.l.bf16 %v322
      %v331 = vunpack.c.l.bf16 %v323
      %v332 = vunpack.c.l.bf16 %v324
      %v333 = vunpack.c.l.bf16 %v325
      %v334 = vld [vmem:[%s4] sm:$0x1]
      %v336 = vlaneseq
      %v337 = vshrl.u32 %v336, 7
      %v338 = vsub.s32 0, %v337
      %v339 = vrot.slane %v334, %v338
      %v341 = vmul.f32 %v326, %v339
      %v342 = vmul.f32 %v327, %v339
      %v343 = vmul.f32 %v328, %v339
      %v344 = vmul.f32 %v329, %v339
      %v345 = vmul.f32 %v330, %v339
      %v346 = vmul.f32 %v331, %v339
      %v347 = vmul.f32 %v332, %v339
      %v348 = vmul.f32 %v333, %v339
      %v349 = vld [vmem:[%s5] sm:$0x1]
      %v351 = vlaneseq
      %v352 = vshrl.u32 %v351, 7
      %v353 = vsub.s32 0, %v352
      %v354 = vrot.slane %v349, %v353
      %v356 = vadd.f32 %v341, %v354
      %v357 = vadd.f32 %v342, %v354
      %v358 = vadd.f32 %v343, %v354
      %v359 = vadd.f32 %v344, %v354
      %v360 = vadd.f32 %v345, %v354
      %v361 = vadd.f32 %v346, %v354
      %v362 = vadd.f32 %v347, %v354
      %v363 = vadd.f32 %v348, %v354
      %v364 = vadd.f32 %v310, %v356
      %v365 = vadd.f32 %v311, %v357
      %v366 = vadd.f32 %v312, %v358
      %v367 = vadd.f32 %v313, %v359
      %v368 = vadd.f32 %v314, %v360
      %v369 = vadd.f32 %v315, %v361
      %v370 = vadd.f32 %v316, %v362
      %v371 = vadd.f32 %v317, %v363
      %v372 = vmax.f32 %v364, 0.0
      %v373 = vmax.f32 %v365, 0.0
      %v374 = vmax.f32 %v366, 0.0
      %v375 = vmax.f32 %v367, 0.0
      %v376 = vmax.f32 %v368, 0.0
      %v377 = vmax.f32 %v369, 0.0
      %v378 = vmax.f32 %v370, 0.0
      %v379 = vmax.f32 %v371, 0.0
      %380 = vst [vmem:[%s271] sm:$0xff] %v372
      %381 = vst [vmem:[%s271 + $0x8] sm:$0xff] %v373
      %382 = vst [vmem:[%s271 + $0x10] sm:$0xff] %v374
      %383 = vst [vmem:[%s271 + $0x18] sm:$0xff] %v375
      %384 = vst [vmem:[%s271 + $0x20] sm:$0xff] %v376
      %385 = vst [vmem:[%s271 + $0x28] sm:$0xff] %v377
      %386 = vst [vmem:[%s271 + $0x30] sm:$0xff] %v378
      %387 = vst [vmem:[%s271 + $0x38] sm:$0xff] %v379
      %p388 = scmp.lt.s32.totalorder %s17, 1
      %s389 = scalar_select %p388, %s17, 1
      %s390 = smul.addr %s389, 8
      %s391 = smul.addr %s390, 8
      %s392 = scalar_lea.vmem %s6, %s391
      // Predicated region
      $region45: #{basic_block_forward.9} parent=43 // pred_check
        %p393 = pneg %p171
      $region46: #{basic_block_forward.9} parent=43 // pred_check_branch
        %395 = sbr.rel (%p393) target = $region48
      $region47: #{basic_block_forward.9} parent=43 // pred_region
        _
      $region48: #{basic_block_forward.9} parent=43 // pred_fallthru
        _
    $region44: #{basic_block_forward.9} parent=5 // pred_fallthru
      _
    %p396 = scmp.le.s32.totalorder 2, %s12
    // Predicated region
    $region49: #{basic_block_forward.9} parent=5 // pred_check
      %p397 = pneg %p396
    $region50: #{basic_block_forward.9} parent=5 // pred_check_branch
      %399 = sbr.rel (%p397) target = $region52
    $region51: #{basic_block_forward.9} parent=5 // pred_region
      %s400 = ssub.s32 %s12, 2
      // Predicated region
      $region53: #{basic_block_forward.9} parent=51 // pred_check
        %p401 = pneg %p177
      $region54: #{basic_block_forward.9} parent=51 // pred_check_branch
        %403 = sbr.rel (%p401) target = $region56
      $region55: #{basic_block_forward.9} parent=51 // pred_region
        %p404 = scmp.lt.s32.totalorder %s18, 1
        %s405 = scalar_select %p404, %s18, 1
        %s406 = smul.addr %s405, 8
        %s407 = smul.addr %s406, 8
        %s408 = scalar_lea.vmem %s6, %s407
      $region56: #{basic_block_forward.9} parent=51 // pred_fallthru
        _
    $region52: #{basic_block_forward.9} parent=5 // pred_fallthru
      _
  $region6: #{basic_block_forward.9} parent=0 // loop_footer
    %s16 = sadd.s32 1, %s12
  $region7: #{basic_block_forward.9} parent=0 // loop_footer_branch
    %11 = sbr.rel target = $region3
  $region8: #{basic_block_forward.9} parent=0 // loop_exit
    _

// kernel: basic_block_forward.7
$region0: #{basic_block_forward.7}
  #allocation0 [shape = 'u32[]', space=smem, size = 0x4, offset = 0x4, fixed_abs, tag = 'smem constant byte address 0x4 - core index']
  #allocation1 [shape = 'u32[144,128]{1,0:T(1,128)}', space=vmem, size = 0x12000, scoped, tag = 'internal scratch']
  %s0 = inlined_call_operand.vmem [shape: bf16[2,10,10,128], index: 0, kind: input, shape index: {}]
  %s1 = inlined_call_operand.vmem [shape: bf16[9,128,128], index: 1, kind: input, shape index: {}]
  %s2 = inlined_call_operand.vmem [shape: bf16[2,8,8,128], index: 2, kind: output, shape index: {0}]
  %s3 = inlined_call_operand.vmem [shape: f32[2,2,128], index: 3, kind: output, shape index: {1}]
  %4 = xla_tuple %s2, %s3
  %s5 = sld [smem:[#allocation0]]
  $region49: #{basic_block_forward.7} parent=0
    _
  %s7 = ssub.s32 1, %s5
  %s8 = scalar_select 0, %s7, %s5
  loop: start=0, step=1, limit=4
  $region2: #{basic_block_forward.7} parent=0 // loop_pre_header
    _
  $region3: #{basic_block_forward.7} parent=0 // loop_header
    %s10 = sphi 0, %s14
    %p11 = scmp.ge.s32.totalorder %s10, 4
    %s20 = sphi 0, %s22
    %s23 = sphi 0, %s20
    %s24 = sphi 0, %s23
    %s40 = sphi 0, %s24
    %s44 = sphi 0, %s44
    %s46 = sphi 0, %s44
    %s47 = sphi 0, %s46
    %s61 = sphi 0, %s47
    %s67 = sphi 0, %s69
    %s70 = sphi 0, %s67
    %s71 = sphi 0, %s70
    %s87 = sphi 0, %s71
    %s93 = sphi 0, %s95
    %s96 = sphi 0, %s93
    %s97 = sphi 0, %s96
    %s113 = sphi 0, %s97
  $region4: #{basic_block_forward.7} parent=0 // loop_header_branch
    %13 = sbr.rel (%p11) target = $region8
  $region5: #{basic_block_forward.7} parent=0 // loop_body
    %s15 = ssub.s32 %s10, 1
    %s16 = ssub.s32 %s10, 2
    %s17 = sadd.s32 %s10, 1
    %s18 = ssub.s32 %s10, %s17
    %p19 = scmp.eq.s32.totalorder %s18, 0
    %s21 = sadd.s32 %s20, 1
    %s22 = scalar_select %p19, %s20, %s21
    %p25 = pneg %p19
    %p26 = scmp.eq.s32.totalorder %s10, 1
    %p27 = por %p25, %p26
    %p28 = scmp.ne.s32.totalorder %s20, %s23
    %p29 = scmp.eq.s32.totalorder %s10, 0
    %p30 = por %p28, %p29
    %p31 = scmp.ne.s32.totalorder %s20, %s23
    %p32 = scmp.eq.s32.totalorder %s15, 1
    %p33 = por %p31, %p32
    %p34 = scmp.ne.s32.totalorder %s23, %s24
    %p35 = scmp.eq.s32.totalorder %s15, 0
    %p36 = por %p34, %p35
    %p37 = scmp.ne.s32.totalorder %s23, %s24
    %p38 = scmp.eq.s32.totalorder %s16, 1
    %p39 = por %p37, %p38
    %p41 = scmp.ne.s32.totalorder %s24, %s40
    %p42 = scmp.eq.s32.totalorder %s16, 0
    %p43 = por %p41, %p42
    %s45 = sadd.s32 %s44, 1
    %p48 = scmp.eq.s32.totalorder %s10, 1
    %p49 = scmp.ne.s32.totalorder %s44, %s46
    %p50 = scmp.eq.s32.totalorder %s10, 0
    %p51 = por %p49, %p50
    %p52 = scmp.ne.s32.totalorder %s44, %s46
    %p53 = scmp.eq.s32.totalorder %s15, 1
    %p54 = por %p52, %p53
    %p55 = scmp.ne.s32.totalorder %s46, %s47
    %p56 = scmp.eq.s32.totalorder %s15, 0
    %p57 = por %p55, %p56
    %p58 = scmp.ne.s32.totalorder %s46, %s47
    %p59 = scmp.eq.s32.totalorder %s16, 1
    %p60 = por %p58, %p59
    %p62 = scmp.ne.s32.totalorder %s47, %s61
    %p63 = scmp.eq.s32.totalorder %s16, 0
    %p64 = por %p62, %p63
    %s65 = ssub.s32 %s10, %s17
    %p66 = scmp.eq.s32.totalorder %s65, 0
    %s68 = sadd.s32 %s67, 1
    %s69 = scalar_select %p66, %s67, %s68
    %p72 = pneg %p66
    %p73 = scmp.eq.s32.totalorder %s10, 1
    %p74 = por %p72, %p73
    %p75 = scmp.ne.s32.totalorder %s67, %s70
    %p76 = scmp.eq.s32.totalorder %s10, 0
    %p77 = por %p75, %p76
    %p78 = scmp.ne.s32.totalorder %s67, %s70
    %p79 = scmp.eq.s32.totalorder %s15, 1
    %p80 = por %p78, %p79
    %p81 = scmp.ne.s32.totalorder %s70, %s71
    %p82 = scmp.eq.s32.totalorder %s15, 0
    %p83 = por %p81, %p82
    %p84 = scmp.ne.s32.totalorder %s70, %s71
    %p85 = scmp.eq.s32.totalorder %s16, 1
    %p86 = por %p84, %p85
    %p88 = scmp.ne.s32.totalorder %s71, %s87
    %p89 = scmp.eq.s32.totalorder %s16, 0
    %p90 = por %p88, %p89
    %s91 = ssub.s32 %s10, %s17
    %p92 = scmp.eq.s32.totalorder %s91, 0
    %s94 = sadd.s32 %s93, 1
    %s95 = scalar_select %p92, %s93, %s94
    %p98 = pneg %p92
    %p99 = scmp.eq.s32.totalorder %s10, 1
    %p100 = por %p98, %p99
    %p101 = scmp.ne.s32.totalorder %s93, %s96
    %p102 = scmp.eq.s32.totalorder %s10, 0
    %p103 = por %p101, %p102
    %p104 = scmp.ne.s32.totalorder %s93, %s96
    %p105 = scmp.eq.s32.totalorder %s15, 1
    %p106 = por %p104, %p105
    %p107 = scmp.ne.s32.totalorder %s96, %s97
    %p108 = scmp.eq.s32.totalorder %s15, 0
    %p109 = por %p107, %p108
    %p110 = scmp.ne.s32.totalorder %s96, %s97
    %p111 = scmp.eq.s32.totalorder %s16, 1
    %p112 = por %p110, %p111
    %p114 = scmp.ne.s32.totalorder %s97, %s113
    %p115 = scmp.eq.s32.totalorder %s16, 0
    %p116 = por %p114, %p115
    %p117 = scmp.le.s32.totalorder 1, %s10
    %p118 = scmp.lt.s32.totalorder %s10, 3
    %p119 = pnand %p117, %p118
    %p120 = pneg %p119
    // Predicated region
    $region9: #{basic_block_forward.7} parent=5 // pred_check
      _
    $region10: #{basic_block_forward.7} parent=5 // pred_check_branch
      %122 = sbr.rel (%p119) target = $region12
    $region11: #{basic_block_forward.7} parent=5 // pred_region
      %s123 = ssub.s32 %s10, 1
      // Predicated region
      $region13: #{basic_block_forward.7} parent=11 // pred_check
        %p124 = pneg %p57
      $region14: #{basic_block_forward.7} parent=11 // pred_check_branch
        %126 = sbr.rel (%p124) target = $region16
      $region15: #{basic_block_forward.7} parent=11 // pred_region
        _
      $region16: #{basic_block_forward.7} parent=11 // pred_fallthru
        _
    $region12: #{basic_block_forward.7} parent=5 // pred_fallthru
      _
    %p127 = scmp.lt.s32.totalorder %s10, 2
    // Predicated region
    $region17: #{basic_block_forward.7} parent=5 // pred_check
      %p128 = pneg %p127
    $region18: #{basic_block_forward.7} parent=5 // pred_check_branch
      %130 = sbr.rel (%p128) target = $region20
    $region19: #{basic_block_forward.7} parent=5 // pred_region
      // Predicated region
      $region21: #{basic_block_forward.7} parent=19 // pred_check
        %p131 = pneg %p30
      $region22: #{basic_block_forward.7} parent=19 // pred_check_branch
        %133 = sbr.rel (%p131) target = $region24
      $region23: #{basic_block_forward.7} parent=19 // pred_region
        %p134 = scmp.lt.s32.totalorder %s10, 1
        %s135 = scalar_select %p134, %s10, 1
        %s136 = smul.addr %s135, 20
        %s137 = smul.addr %s136, 4
        %s138 = scalar_lea.vmem %s0, %s137
      $region24: #{basic_block_forward.7} parent=19 // pred_fallthru
        _
    $region20: #{basic_block_forward.7} parent=5 // pred_fallthru
      _
    %p139 = scmp.le.s32.totalorder 1, %s10
    %p140 = scmp.lt.s32.totalorder %s10, 3
    %p141 = pnand %p139, %p140
    %p142 = pneg %p141
    // Predicated region
    $region25: #{basic_block_forward.7} parent=5 // pred_check
      _
    $region26: #{basic_block_forward.7} parent=5 // pred_check_branch
      %144 = sbr.rel (%p141) target = $region28
    $region27: #{basic_block_forward.7} parent=5 // pred_region
      %s145 = ssub.s32 %s10, 1
      %p146 = scmp.lt.s32.totalorder %s15, 1
      %s147 = scalar_select %p146, %s15, 1
      %s148 = smul.addr %s147, 20
      %s149 = smul.addr %s148, 4
      %s150 = scalar_lea.vmem %s0, %s149
      %p151 = pneg %p36
      %p152 = pneg %p33
      %p153 = pneg %p57
      %p154 = pneg %p54
      %p155 = pneg %p83
      %p156 = pneg %p80
      %p157 = scmp.lt.s32.totalorder %s15, 1
      %s158 = scalar_select %p157, %s15, 1
      %s159 = smul.addr %s158, 8
      %s160 = smul.addr %s159, 4
      %s161 = scalar_lea.vmem %s2, %s160
      %p162 = pneg %p109
      %p163 = pneg %p106
      %p164 = scmp.lt.s32.totalorder %s15, 1
      %s165 = scalar_select %p164, %s15, 1
      %s166 = smul.addr %s165, 2
      %s167 = scalar_lea.vmem %s3, %s166
      %p168 = scmp.lt.s32.totalorder %s15, 1
      %s169 = scalar_select %p168, %s15, 1
      %s170 = smul.addr %s169, 20
      %s171 = smul.addr %s170, 4
      %s172 = scalar_lea.vmem %s0, %s171
      %p173 = scmp.lt.s32.totalorder %s15, 1
      %s174 = scalar_select %p173, %s15, 1
      %s175 = smul.addr %s174, 8
      %s176 = smul.addr %s175, 4
      %s177 = scalar_lea.vmem %s2, %s176
      %p178 = scmp.lt.s32.totalorder %s15, 1
      %s179 = scalar_select %p178, %s15, 1
      %s180 = smul.addr %s179, 2
      %s181 = scalar_lea.vmem %s3, %s180
      %v183 = vld [vmem:[%s172] sm:$0xf]
      %v184 = vld [vmem:[%s172 + $0x4] sm:$0x1]
      %v185 = vld [vmem:[%s172 + $0x8] sm:$0xf]
      %v186 = vld [vmem:[%s172 + $0xc] sm:$0x1]
      %v187 = vld [vmem:[%s172 + $0x10] sm:$0xf]
      %v188 = vld [vmem:[%s172 + $0x14] sm:$0x1]
      %v189 = vld [vmem:[%s172 + $0x18] sm:$0xf]
      %v190 = vld [vmem:[%s172 + $0x1c] sm:$0x1]
      %v191 = vld [vmem:[%s172 + $0x20] sm:$0xf]
      %v192 = vld [vmem:[%s172 + $0x24] sm:$0x1]
      %v193 = vld [vmem:[%s172 + $0x28] sm:$0xf]
      %v194 = vld [vmem:[%s172 + $0x2c] sm:$0x1]
      %v195 = vld [vmem:[%s172 + $0x30] sm:$0xf]
      %v196 = vld [vmem:[%s172 + $0x34] sm:$0x1]
      %v197 = vld [vmem:[%s172 + $0x38] sm:$0xf]
      %v198 = vld [vmem:[%s172 + $0x3c] sm:$0x1]
      %v199 = vld [vmem:[%s172 + $0x40] sm:$0xf]
      %v200 = vld [vmem:[%s172 + $0x44] sm:$0x1]
      %v201 = vld [vmem:[%s172 + $0x48] sm:$0xf]
      %v202 = vld [vmem:[%s172 + $0x4c] sm:$0x1]
      %v203 = vunpack.c.l.bf16 %v183
      %v204 = vunpack.c.l.bf16 %v184
      %v205 = vunpack.c.l.bf16 %v185
      %v206 = vunpack.c.l.bf16 %v186
      %v207 = vunpack.c.l.bf16 %v187
      %v208 = vunpack.c.l.bf16 %v188
      %v209 = vunpack.c.l.bf16 %v189
      %v210 = vunpack.c.l.bf16 %v190
      %v211 = vunpack.c.l.bf16 %v191
      %v212 = vunpack.c.l.bf16 %v192
      %v213 = vunpack.c.l.bf16 %v193
      %v214 = vunpack.c.l.bf16 %v194
      %v215 = vunpack.c.l.bf16 %v195
      %v216 = vunpack.c.l.bf16 %v196
      %v217 = vunpack.c.l.bf16 %v197
      %v218 = vunpack.c.l.bf16 %v198
      %v219 = vunpack.c.l.bf16 %v199
      %v220 = vunpack.c.l.bf16 %v200
      %v221 = vunpack.c.l.bf16 %v201
      %v222 = vunpack.c.l.bf16 %v202
      %v223 = vpack.c.bf16 %v205, %v203
      %v224 = vpack.c.bf16 %v209, %v207
      %v225 = vpack.c.bf16 %v213, %v211
      %v226 = vpack.c.bf16 %v217, %v215
      %v227 = vld [vmem:[%s1] sm:$0xf]
      %v228 = vld [vmem:[%s1 + $0x4] sm:$0xf]
      %v229 = vld [vmem:[%s1 + $0x8] sm:$0xf]
      %v230 = vld [vmem:[%s1 + $0xc] sm:$0xf]
      %v231 = vld [vmem:[%s1 + $0x10] sm:$0xf]
      %v232 = vld [vmem:[%s1 + $0x14] sm:$0xf]
      %v233 = vld [vmem:[%s1 + $0x18] sm:$0xf]
      %v234 = vld [vmem:[%s1 + $0x1c] sm:$0xf]
      %v235 = vld [vmem:[%s1 + $0x20] sm:$0xf]
      %v236 = vld [vmem:[%s1 + $0x24] sm:$0xf]
      %v237 = vld [vmem:[%s1 + $0x28] sm:$0xf]
      %v238 = vld [vmem:[%s1 + $0x2c] sm:$0xf]
      %v239 = vld [vmem:[%s1 + $0x30] sm:$0xf]
      %v240 = vld [vmem:[%s1 + $0x34] sm:$0xf]
      %v241 = vld [vmem:[%s1 + $0x38] sm:$0xf]
      %v242 = vld [vmem:[%s1 + $0x3c] sm:$0xf]
      %vm259 = vcmask 1046528
      %v260 = vrot.slane %v203, 1
      %v261 = vrot.slane %v204, 1
      %v262 = vsel %vm259, %v260, %v261
      %v263 = vrot.slane %v205, 1
      %v264 = vrot.slane %v206, 1
      %v265 = vsel %vm259, %v263, %v264
      %v266 = vrot.slane %v207, 1
      %v267 = vrot.slane %v208, 1
      %v268 = vsel %vm259, %v266, %v267
      %v269 = vrot.slane %v209, 1
      %v270 = vrot.slane %v210, 1
      %v271 = vsel %vm259, %v269, %v270
      %v272 = vrot.slane %v211, 1
      %v273 = vrot.slane %v212, 1
      %v274 = vsel %vm259, %v272, %v273
      %v275 = vrot.slane %v213, 1
      %v276 = vrot.slane %v214, 1
      %v277 = vsel %vm259, %v275, %v276
      %v278 = vrot.slane %v215, 1
      %v279 = vrot.slane %v216, 1
      %v280 = vsel %vm259, %v278, %v279
      %v281 = vrot.slane %v217, 1
      %v282 = vrot.slane %v218, 1
      %v283 = vsel %vm259, %v281, %v282
      %v292 = vpack.c.bf16 %v265, %v262
      %v293 = vpack.c.bf16 %v271, %v268
      %v294 = vpack.c.bf16 %v277, %v274
      %v295 = vpack.c.bf16 %v283, %v280
      %s296 = scalar_lea.vmem %s1, 64
      %v297 = vld [vmem:[%s296] sm:$0xf]
      %v298 = vld [vmem:[%s296 + $0x4] sm:$0xf]
      %v299 = vld [vmem:[%s296 + $0x8] sm:$0xf]
      %v300 = vld [vmem:[%s296 + $0xc] sm:$0xf]
      %v301 = vld [vmem:[%s296 + $0x10] sm:$0xf]
      %v302 = vld [vmem:[%s296 + $0x14] sm:$0xf]
      %v303 = vld [vmem:[%s296 + $0x18] sm:$0xf]
      %v304 = vld [vmem:[%s296 + $0x1c] sm:$0xf]
      %v305 = vld [vmem:[%s296 + $0x20] sm:$0xf]
      %v306 = vld [vmem:[%s296 + $0x24] sm:$0xf]
      %v307 = vld [vmem:[%s296 + $0x28] sm:$0xf]
      %v308 = vld [vmem:[%s296 + $0x2c] sm:$0xf]
      %v309 = vld [vmem:[%s296 + $0x30] sm:$0xf]
      %v310 = vld [vmem:[%s296 + $0x34] sm:$0xf]
      %v311 = vld [vmem:[%s296 + $0x38] sm:$0xf]
      %v312 = vld [vmem:[%s296 + $0x3c] sm:$0xf]
      %v329 = vunpack.c.l.b16 %v297
      %v330 = vunpack.c.l.b16 %v298
      %v331 = vunpack.c.l.b16 %v299
      %v332 = vunpack.c.l.b16 %v300
      %v333 = vunpack.c.l.b16 %v301
      %v334 = vunpack.c.l.b16 %v302
      %v335 = vunpack.c.l.b16 %v303
      %v336 = vunpack.c.l.b16 %v304
      %v337 = vunpack.c.l.b16 %v305
      %v338 = vunpack.c.l.b16 %v306
      %v339 = vunpack.c.l.b16 %v307
      %v340 = vunpack.c.l.b16 %v308
      %v341 = vunpack.c.l.b16 %v309
      %v342 = vunpack.c.l.b16 %v310
      %v343 = vunpack.c.l.b16 %v311
      %v344 = vunpack.c.l.b16 %v312
      %v345 = vpack.c.b16 %v330, %v329
      %v346 = vpack.c.b16 %v332, %v331
      %v347 = vpack.c.b16 %v334, %v333
      %v348 = vpack.c.b16 %v336, %v335
      %v349 = vpack.c.b16 %v338, %v337
      %v350 = vpack.c.b16 %v340, %v339
      %v351 = vpack.c.b16 %v342, %v341
      %v352 = vpack.c.b16 %v344, %v343
      %361 = vmatprep.subr.bf16.mxu0 0
      %362 = vmatpush1.bf16.msra.mxu0 %v345
      %363 = vmatprep.subr.bf16.mxu0 0
      %364 = vmatpush1.bf16.msra.mxu0 %v346
      %365 = vmatprep.subr.bf16.mxu0 0
      %366 = vmatpush1.bf16.msra.mxu0 %v347
      %367 = vmatprep.subr.bf16.mxu0 0
      %368 = vmatpush1.bf16.msra.mxu0 %v348
      %369 = vmatprep.subr.bf16.mxu0 0
      %370 = vmatpush1.bf16.msra.mxu0 %v349
      %371 = vmatprep.subr.bf16.mxu0 0
      %372 = vmatpush1.bf16.msra.mxu0 %v350
      %373 = vmatprep.subr.bf16.mxu0 0
      %374 = vmatpush1.bf16.msra.mxu0 %v351
      %375 = vmatprep.subr.bf16.mxu0 0
      %376 = vmatpush1.bf16.msra.mxu0 %v352
      %377 = vmatprep.subr.bf16.mxu0 0
      %378 = vmatpush1.bf16.msra.mxu0 0
      %379 = vmatprep.subr.bf16.mxu0 0
      %380 = vmatpush1.bf16.msra.mxu0 0
      %381 = vmatprep.subr.bf16.mxu0 0
      %382 = vmatpush1.bf16.msra.mxu0 0
      %383 = vmatprep.subr.bf16.mxu0 0
      %384 = vmatpush1.bf16.msra.mxu0 0
      %385 = vmatprep.subr.bf16.mxu0 0
      %386 = vmatpush1.bf16.msra.mxu0 0
      %387 = vmatprep.subr.bf16.mxu0 0
      %388 = vmatpush1.bf16.msra.mxu0 0
      %389 = vmatprep.subr.bf16.mxu0 0
      %390 = vmatpush1.bf16.msra.mxu0 0
      %391 = vmatprep.subr.bf16.mxu0 0
      %392 = vmatpush1.bf16.msra.mxu0 0
      %393 = vmatprep.mubr.bf16.mxu0 0
      %394 = vmatmul.mubr.bf16.gmra.mrb[0].mxu0 %v292
      %v395 = vpop.f32.mrb[0].mxu0
      %v396 = vadd.f32 0.0, %v395
      %v397 = vpop.f32.mrb[0].mxu0
      %v398 = vpop.f32.mrb[0].mxu0
      %v399 = vadd.f32 0.0, %v398
      %v400 = vpop.f32.mrb[0].mxu0
      %401 = vmatprep.mubr.bf16.mxu0 0
      %402 = vmatmul.mubr.bf16.gmra.mrb[0].mxu0 %v293
      %v403 = vpop.f32.mrb[0].mxu0
      %v404 = vadd.f32 0.0, %v403
      %v405 = vpop.f32.mrb[0].mxu0
      %v406 = vpop.f32.mrb[0].mxu0
      %v407 = vadd.f32 0.0, %v406
      %v408 = vpop.f32.mrb[0].mxu0
      %409 = vmatprep.mubr.bf16.mxu0 0
      %410 = vmatmul.mubr.bf16.gmra.mrb[0].mxu0 %v294
      %v411 = vpop.f32.mrb[0].mxu0
      %v412 = vadd.f32 0.0, %v411
      %v413 = vpop.f32.mrb[0].mxu0
      %v414 = vpop.f32.mrb[0].mxu0
      %v415 = vadd.f32 0.0, %v414
      %v416 = vpop.f32.mrb[0].mxu0
      %417 = vmatprep.mubr.bf16.mxu0 0
      %418 = vmatmul.mubr.bf16.gmra.mrb[0].mxu0 %v295
      %v419 = vpop.f32.mrb[0].mxu0
      %v420 = vadd.f32 0.0, %v419
      %v421 = vpop.f32.mrb[0].mxu0
      %v422 = vpop.f32.mrb[0].mxu0
      %v423 = vadd.f32 0.0, %v422
      %v424 = vpop.f32.mrb[0].mxu0
      %425 = vdwg.mxu0
      %v442 = vunpack.c.l.b16 %v227
      %v443 = vunpack.c.l.b16 %v228
      %v444 = vunpack.c.l.b16 %v229
      %v445 = vunpack.c.l.b16 %v230
      %v446 = vunpack.c.l.b16 %v231
      %v447 = vunpack.c.l.b16 %v232
      %v448 = vunpack.c.l.b16 %v233
      %v449 = vunpack.c.l.b16 %v234
      %v450 = vunpack.c.l.b16 %v235
      %v451 = vunpack.c.l.b16 %v236
      %v452 = vunpack.c.l.b16 %v237
      %v453 = vunpack.c.l.b16 %v238
      %v454 = vunpack.c.l.b16 %v239
      %v455 = vunpack.c.l.b16 %v240
      %v456 = vunpack.c.l.b16 %v241
      %v457 = vunpack.c.l.b16 %v242
      %v458 = vpack.c.b16 %v443, %v442
      %v459 = vpack.c.b16 %v445, %v444
      %v460 = vpack.c.b16 %v447, %v446
      %v461 = vpack.c.b16 %v449, %v448
      %v462 = vpack.c.b16 %v451, %v450
      %v463 = vpack.c.b16 %v453, %v452
      %v464 = vpack.c.b16 %v455, %v454
      %v465 = vpack.c.b16 %v457, %v456
      %474 = vmatprep.subr.bf16.mxu0 0
      %475 = vmatpush1.bf16.msra.mxu0 %v458
      %476 = vmatprep.subr.bf16.mxu0 0
      %477 = vmatpush1.bf16.msra.mxu0 %v459
      %478 = vmatprep.subr.bf16.mxu0 0
      %479 = vmatpush1.bf16.msra.mxu0 %v460
      %480 = vmatprep.subr.bf16.mxu0 0
      %481 = vmatpush1.bf16.msra.mxu0 %v461
      %482 = vmatprep.subr.bf16.mxu0 0
      %483 = vmatpush1.bf16.msra.mxu0 %v462
      %484 = vmatprep.subr.bf16.mxu0 0
      %485 = vmatpush1.bf16.msra.mxu0 %v463
      %486 = vmatprep.subr.bf16.mxu0 0
      %487 = vmatpush1.bf16.msra.mxu0 %v464
      %488 = vmatprep.subr.bf16.mxu0 0
      %489 = vmatpush1.bf16.msra.mxu0 %v465
      %490 = vmatprep.subr.bf16.mxu0 0
      %491 = vmatpush1.bf16.msra.mxu0 0
      %492 = vmatprep.subr.bf16.mxu0 0
      %493 = vmatpush1.bf16.msra.mxu0 0
      %494 = vmatprep.subr.bf16.mxu0 0
      %495 = vmatpush1.bf16.msra.mxu0 0
      %496 = vmatprep.subr.bf16.mxu0 0
      %497 = vmatpush1.bf16.msra.mxu0 0
      %498 = vmatprep.subr.bf16.mxu0 0
      %499 = vmatpush1.bf16.msra.mxu0 0
      %500 = vmatprep.subr.bf16.mxu0 0
      %501 = vmatpush1.bf16.msra.mxu0 0
      %502 = vmatprep.subr.bf16.mxu0 0
      %503 = vmatpush1.bf16.msra.mxu0 0
      %504 = vmatprep.subr.bf16.mxu0 0
      %505 = vmatpush1.bf16.msra.mxu0 0
      %506 = vmatprep.mubr.bf16.mxu0 0
      %507 = vmatmul.mubr.bf16.gmra.mrb[0].mxu0 %v223
      %v508 = vpop.f32.mrb[0].mxu0
      %v509 = vadd.f32 %v396, %v508
      %v510 = vpop.f32.mrb[0].mxu0
      %v511 = vpop.f32.mrb[0].mxu0
      %v512 = vadd.f32 %v399, %v511
      %v513 = vpop.f32.mrb[0].mxu0
      %514 = vmatprep.mubr.bf16.mxu0 0
      %515 = vmatmul.mubr.bf16.gmra.mrb[0].mxu0 %v224
      %v516 = vpop.f32.mrb[0].mxu0
      %v517 = vadd.f32 %v404, %v516
      %v518 = vpop.f32.mrb[0].mxu0
      %v519 = vpop.f32.mrb[0].mxu0
      %v520 = vadd.f32 %v407, %v519
      %v521 = vpop.f32.mrb[0].mxu0
      %522 = vmatprep.mubr.bf16.mxu0 0
      %523 = vmatmul.mubr.bf16.gmra.mrb[0].mxu0 %v225
      %v524 = vpop.f32.mrb[0].mxu0
      %v525 = vadd.f32 %v412, %v524
      %v526 = vpop.f32.mrb[0].mxu0
      %v527 = vpop.f32.mrb[0].mxu0
      %v528 = vadd.f32 %v415, %v527
      %v529 = vpop.f32.mrb[0].mxu0
      %530 = vmatprep.mubr.bf16.mxu0 0
      %531 = vmatmul.mubr.bf16.gmra.mrb[0].mxu0 %v226
      %v532 = vpop.f32.mrb[0].mxu0
      %v533 = vadd.f32 %v420, %v532
      %v534 = vpop.f32.mrb[0].mxu0
      %v535 = vpop.f32.mrb[0].mxu0
      %v536 = vadd.f32 %v423, %v535
      %v537 = vpop.f32.mrb[0].mxu0
      %538 = vdwg.mxu0
      %vm539 = vcmask 1045504
      %v540 = vrot.slane %v203, 2
      %v541 = vrot.slane %v204, 2
      %v542 = vsel %vm539, %v540, %v541
      %v543 = vrot.slane %v205, 2
      %v544 = vrot.slane %v206, 2
      %v545 = vsel %vm539, %v543, %v544
      %v546 = vrot.slane %v207, 2
      %v547 = vrot.slane %v208, 2
      %v548 = vsel %vm539, %v546, %v547
      %v549 = vrot.slane %v209, 2
      %v550 = vrot.slane %v210, 2
      %v551 = vsel %vm539, %v549, %v550
      %v552 = vrot.slane %v211, 2
      %v553 = vrot.slane %v212, 2
      %v554 = vsel %vm539, %v552, %v553
      %v555 = vrot.slane %v213, 2
      %v556 = vrot.slane %v214, 2
      %v557 = vsel %vm539, %v555, %v556
      %v558 = vrot.slane %v215, 2
      %v559 = vrot.slane %v216, 2
      %v560 = vsel %vm539, %v558, %v559
      %v561 = vrot.slane %v217, 2
      %v562 = vrot.slane %v218, 2
      %v563 = vsel %vm539, %v561, %v562
      %v572 = vpack.c.bf16 %v545, %v542
      %v573 = vpack.c.bf16 %v551, %v548
      %v574 = vpack.c.bf16 %v557, %v554
      %v575 = vpack.c.bf16 %v563, %v560
      %s576 = scalar_lea.vmem %s1, 128
      %v577 = vld [vmem:[%s576] sm:$0xf]
      %v578 = vld [vmem:[%s576 + $0x4] sm:$0xf]
      %v579 = vld [vmem:[%s576 + $0x8] sm:$0xf]
      %v580 = vld [vmem:[%s576 + $0xc] sm:$0xf]
      %v581 = vld [vmem:[%s576 + $0x10] sm:$0xf]
      %v582 = vld [vmem:[%s576 + $0x14] sm:$0xf]
      %v583 = vld [vmem:[%s576 + $0x18] sm:$0xf]
      %v584 = vld [vmem:[%s576 + $0x1c] sm:$0xf]
      %v585 = vld [vmem:[%s576 + $0x20] sm:$0xf]
      %v586 = vld [vmem:[%s576 + $0x24] sm:$0xf]
      %v587 = vld [vmem:[%s576 + $0x28] sm:$0xf]
      %v588 = vld [vmem:[%s576 + $0x2c] sm:$0xf]
      %v589 = vld [vmem:[%s576 + $0x30] sm:$0xf]
      %v590 = vld [vmem:[%s576 + $0x34] sm:$0xf]
      %v591 = vld [vmem:[%s576 + $0x38] sm:$0xf]
      %v592 = vld [vmem:[%s576 + $0x3c] sm:$0xf]
      %v609 = vunpack.c.l.b16 %v577
      %v610 = vunpack.c.l.b16 %v578
      %v611 = vunpack.c.l.b16 %v579
      %v612 = vunpack.c.l.b16 %v580
      %v613 = vunpack.c.l.b16 %v581
      %v614 = vunpack.c.l.b16 %v582
      %v615 = vunpack.c.l.b16 %v583
      %v616 = vunpack.c.l.b16 %v584
      %v617 = vunpack.c.l.b16 %v585
      %v618 = vunpack.c.l.b16 %v586
      %v619 = vunpack.c.l.b16 %v587
      %v620 = vunpack.c.l.b16 %v588
      %v621 = vunpack.c.l.b16 %v589
      %v622 = vunpack.c.l.b16 %v590
      %v623 = vunpack.c.l.b16 %v591
      %v624 = vunpack.c.l.b16 %v592
      %v625 = vpack.c.b16 %v610, %v609
      %v626 = vpack.c.b16 %v612, %v611
      %v627 = vpack.c.b16 %v614, %v613
      %v628 = vpack.c.b16 %v616, %v615
      %v629 = vpack.c.b16 %v618, %v617
      %v630 = vpack.c.b16 %v620, %v619
      %v631 = vpack.c.b16 %v622, %v621
      %v632 = vpack.c.b16 %v624, %v623
      %641 = vmatprep.subr.bf16.mxu0 0
      %642 = vmatpush1.bf16.msra.mxu0 %v625
      %643 = vmatprep.subr.bf16.mxu0 0
      %644 = vmatpush1.bf16.msra.mxu0 %v626
      %645 = vmatprep.subr.bf16.mxu0 0
      %646 = vmatpush1.bf16.msra.mxu0 %v627
      %647 = vmatprep.subr.bf16.mxu0 0
      %648 = vmatpush1.bf16.msra.mxu0 %v628
      %649 = vmatprep.subr.bf16.mxu0 0
      %650 = vmatpush1.bf16.msra.mxu0 %v629
      %651 = vmatprep.subr.bf16.mxu0 0
      %652 = vmatpush1.bf16.msra.mxu0 %v630
      %653 = vmatprep.subr.bf16.mxu0 0
      %654 = vmatpush1.bf16.msra.mxu0 %v631
      %655 = vmatprep.subr.bf16.mxu0 0
      %656 = vmatpush1.bf16.msra.mxu0 %v632
      %657 = vmatprep.subr.bf16.mxu0 0
      %658 = vmatpush1.bf16.msra.mxu0 0
      %659 = vmatprep.subr.bf16.mxu0 0
      %660 = vmatpush1.bf16.msra.mxu0 0
      %661 = vmatprep.subr.bf16.mxu0 0
      %662 = vmatpush1.bf16.msra.mxu0 0
      %663 = vmatprep.subr.bf16.mxu0 0
      %664 = vmatpush1.bf16.msra.mxu0 0
      %665 = vmatprep.subr.bf16.mxu0 0
      %666 = vmatpush1.bf16.msra.mxu0 0
      %667 = vmatprep.subr.bf16.mxu0 0
      %668 = vmatpush1.bf16.msra.mxu0 0
      %669 = vmatprep.subr.bf16.mxu0 0
      %670 = vmatpush1.bf16.msra.mxu0 0
      %671 = vmatprep.subr.bf16.mxu0 0
      %672 = vmatpush1.bf16.msra.mxu0 0
      %673 = vmatprep.mubr.bf16.mxu0 0
      %674 = vmatmul.mubr.bf16.gmra.mrb[0].mxu0 %v572
      %v675 = vpop.f32.mrb[0].mxu0
      %v676 = vadd.f32 0.0, %v675
      %v677 = vpop.f32.mrb[0].mxu0
      %v678 = vpop.f32.mrb[0].mxu0
      %v679 = vadd.f32 0.0, %v678
      %v680 = vpop.f32.mrb[0].mxu0
      %681 = vmatprep.mubr.bf16.mxu0 0
      %682 = vmatmul.mubr.bf16.gmra.mrb[0].mxu0 %v573
      %v683 = vpop.f32.mrb[0].mxu0
      %v684 = vadd.f32 0.0, %v683
      %v685 = vpop.f32.mrb[0].mxu0
      %v686 = vpop.f32.mrb[0].mxu0
      %v687 = vadd.f32 0.0, %v686
      %v688 = vpop.f32.mrb[0].mxu0
      %689 = vmatprep.mubr.bf16.mxu0 0
      %690 = vmatmul.mubr.bf16.gmra.mrb[0].mxu0 %v574
      %v691 = vpop.f32.mrb[0].mxu0
      %v692 = vadd.f32 0.0, %v691
      %v693 = vpop.f32.mrb[0].mxu0
      %v694 = vpop.f32.mrb[0].mxu0
      %v695 = vadd.f32 0.0, %v694
      %v696 = vpop.f32.mrb[0].mxu0
      %697 = vmatprep.mubr.bf16.mxu0 0
      %698 = vmatmul.mubr.bf16.gmra.mrb[0].mxu0 %v575
      %v699 = vpop.f32.mrb[0].mxu0
      %v700 = vadd.f32 0.0, %v699
      %v701 = vpop.f32.mrb[0].mxu0
      %v702 = vpop.f32.mrb[0].mxu0
      %v703 = vadd.f32 0.0, %v702
      %v704 = vpop.f32.mrb[0].mxu0
      %705 = vdwg.mxu0
      %v706 = vadd.f32 %v509, %v676
      %v707 = vadd.f32 %v512, %v679
      %v708 = vadd.f32 %v517, %v684
      %v709 = vadd.f32 %v520, %v687
      %v710 = vadd.f32 %v525, %v692
      %v711 = vadd.f32 %v528, %v695
      %v712 = vadd.f32 %v533, %v700
      %v713 = vadd.f32 %v536, %v703
      %v714 = vpack.c.bf16 %v207, %v205
      %v715 = vpack.c.bf16 %v211, %v209
      %v716 = vpack.c.bf16 %v215, %v213
      %v717 = vpack.c.bf16 %v219, %v217
      %s718 = scalar_lea.vmem %s1, 192
      %v719 = vld [vmem:[%s718] sm:$0xf]
      %v720 = vld [vmem:[%s718 + $0x4] sm:$0xf]
      %v721 = vld [vmem:[%s718 + $0x8] sm:$0xf]
      %v722 = vld [vmem:[%s718 + $0xc] sm:$0xf]
      %v723 = vld [vmem:[%s718 + $0x10] sm:$0xf]
      %v724 = vld [vmem:[%s718 + $0x14] sm:$0xf]
      %v725 = vld [vmem:[%s718 + $0x18] sm:$0xf]
      %v726 = vld [vmem:[%s718 + $0x1c] sm:$0xf]
      %v727 = vld [vmem:[%s718 + $0x20] sm:$0xf]
      %v728 = vld [vmem:[%s718 + $0x24] sm:$0xf]
      %v729 = vld [vmem:[%s718 + $0x28] sm:$0xf]
      %v730 = vld [vmem:[%s718 + $0x2c] sm:$0xf]
      %v731 = vld [vmem:[%s718 + $0x30] sm:$0xf]
      %v732 = vld [vmem:[%s718 + $0x34] sm:$0xf]
      %v733 = vld [vmem:[%s718 + $0x38] sm:$0xf]
      %v734 = vld [vmem:[%s718 + $0x3c] sm:$0xf]
      %v751 = vunpack.c.l.b16 %v719
      %v752 = vunpack.c.l.b16 %v720
      %v753 = vunpack.c.l.b16 %v721
      %v754 = vunpack.c.l.b16 %v722
      %v755 = vunpack.c.l.b16 %v723
      %v756 = vunpack.c.l.b16 %v724
      %v757 = vunpack.c.l.b16 %v725
      %v758 = vunpack.c.l.b16 %v726
      %v759 = vunpack.c.l.b16 %v727
      %v760 = vunpack.c.l.b16 %v728
      %v761 = vunpack.c.l.b16 %v729
      %v762 = vunpack.c.l.b16 %v730
      %v763 = vunpack.c.l.b16 %v731
      %v764 = vunpack.c.l.b16 %v732
      %v765 = vunpack.c.l.b16 %v733
      %v766 = vunpack.c.l.b16 %v734
      %v767 = vpack.c.b16 %v752, %v751
      %v768 = vpack.c.b16 %v754, %v753
      %v769 = vpack.c.b16 %v756, %v755
      %v770 = vpack.c.b16 %v758, %v757
      %v771 = vpack.c.b16 %v760, %v759
      %v772 = vpack.c.b16 %v762, %v761
      %v773 = vpack.c.b16 %v764, %v763
      %v774 = vpack.c.b16 %v766, %v765
      %783 = vmatprep.subr.bf16.mxu0 0
      %784 = vmatpush1.bf16.msra.mxu0 %v767
      %785 = vmatprep.subr.bf16.mxu0 0
      %786 = vmatpush1.bf16.msra.mxu0 %v768
      %787 = vmatprep.subr.bf16.mxu0 0
      %788 = vmatpush1.bf16.msra.mxu0 %v769
      %789 = vmatprep.subr.bf16.mxu0 0
      %790 = vmatpush1.bf16.msra.mxu0 %v770
      %791 = vmatprep.subr.bf16.mxu0 0
      %792 = vmatpush1.bf16.msra.mxu0 %v771
      %793 = vmatprep.subr.bf16.mxu0 0
      %794 = vmatpush1.bf16.msra.mxu0 %v772
      %795 = vmatprep.subr.bf16.mxu0 0
      %796 = vmatpush1.bf16.msra.mxu0 %v773
      %797 = vmatprep.subr.bf16.mxu0 0
      %798 = vmatpush1.bf16.msra.mxu0 %v774
      %799 = vmatprep.subr.bf16.mxu0 0
      %800 = vmatpush1.bf16.msra.mxu0 0
      %801 = vmatprep.subr.bf16.mxu0 0
      %802 = vmatpush1.bf16.msra.mxu0 0
      %803 = vmatprep.subr.bf16.mxu0 0
      %804 = vmatpush1.bf16.msra.mxu0 0
      %805 = vmatprep.subr.bf16.mxu0 0
      %806 = vmatpush1.bf16.msra.mxu0 0
      %807 = vmatprep.subr.bf16.mxu0 0
      %808 = vmatpush1.bf16.msra.mxu0 0
      %809 = vmatprep.subr.bf16.mxu0 0
      %810 = vmatpush1.bf16.msra.mxu0 0
      %811 = vmatprep.subr.bf16.mxu0 0
      %812 = vmatpush1.bf16.msra.mxu0 0
      %813 = vmatprep.subr.bf16.mxu0 0
      %814 = vmatpush1.bf16.msra.mxu0 0
      %815 = vmatprep.mubr.bf16.mxu0 0
      %816 = vmatmul.mubr.bf16.gmra.mrb[0].mxu0 %v714
      %v817 = vpop.f32.mrb[0].mxu0
      %v818 = vadd.f32 0.0, %v817
      %v819 = vpop.f32.mrb[0].mxu0
      %v820 = vpop.f32.mrb[0].mxu0
      %v821 = vadd.f32 0.0, %v820
      %v822 = vpop.f32.mrb[0].mxu0
      %823 = vmatprep.mubr.bf16.mxu0 0
      %824 = vmatmul.mubr.bf16.gmra.mrb[0].mxu0 %v715
      %v825 = vpop.f32.mrb[0].mxu0
      %v826 = vadd.f32 0.0, %v825
      %v827 = vpop.f32.mrb[0].mxu0
      %v828 = vpop.f32.mrb[0].mxu0
      %v829 = vadd.f32 0.0, %v828
      %v830 = vpop.f32.mrb[0].mxu0
      %831 = vmatprep.mubr.bf16.mxu0 0
      %832 = vmatmul.mubr.bf16.gmra.mrb[0].mxu0 %v716
      %v833 = vpop.f32.mrb[0].mxu0
      %v834 = vadd.f32 0.0, %v833
      %v835 = vpop.f32.mrb[0].mxu0
      %v836 = vpop.f32.mrb[0].mxu0
      %v837 = vadd.f32 0.0, %v836
      %v838 = vpop.f32.mrb[0].mxu0
      %839 = vmatprep.mubr.bf16.mxu0 0
      %840 = vmatmul.mubr.bf16.gmra.mrb[0].mxu0 %v717
      %v841 = vpop.f32.mrb[0].mxu0
      %v842 = vadd.f32 0.0, %v841
      %v843 = vpop.f32.mrb[0].mxu0
      %v844 = vpop.f32.mrb[0].mxu0
      %v845 = vadd.f32 0.0, %v844
      %v846 = vpop.f32.mrb[0].mxu0
      %847 = vdwg.mxu0
      %v848 = vadd.f32 %v706, %v818
      %v849 = vadd.f32 %v707, %v821
      %v850 = vadd.f32 %v708, %v826
      %v851 = vadd.f32 %v709, %v829
      %v852 = vadd.f32 %v710, %v834
      %v853 = vadd.f32 %v711, %v837
      %v854 = vadd.f32 %v712, %v842
      %v855 = vadd.f32 %v713, %v845
      %v858 = vrot.slane %v219, 1
      %v859 = vrot.slane %v220, 1
      %v860 = vsel %vm259, %v858, %v859
      %v862 = vpack.c.bf16 %v268, %v265
      %v863 = vpack.c.bf16 %v274, %v271
      %v864 = vpack.c.bf16 %v280, %v277
      %v865 = vpack.c.bf16 %v860, %v283
      %s866 = scalar_lea.vmem %s1, 256
      %v867 = vld [vmem:[%s866] sm:$0xf]
      %v868 = vld [vmem:[%s866 + $0x4] sm:$0xf]
      %v869 = vld [vmem:[%s866 + $0x8] sm:$0xf]
      %v870 = vld [vmem:[%s866 + $0xc] sm:$0xf]
      %v871 = vld [vmem:[%s866 + $0x10] sm:$0xf]
      %v872 = vld [vmem:[%s866 + $0x14] sm:$0xf]
      %v873 = vld [vmem:[%s866 + $0x18] sm:$0xf]
      %v874 = vld [vmem:[%s866 + $0x1c] sm:$0xf]
      %v875 = vld [vmem:[%s866 + $0x20] sm:$0xf]
      %v876 = vld [vmem:[%s866 + $0x24] sm:$0xf]
      %v877 = vld [vmem:[%s866 + $0x28] sm:$0xf]
      %v878 = vld [vmem:[%s866 + $0x2c] sm:$0xf]
      %v879 = vld [vmem:[%s866 + $0x30] sm:$0xf]
      %v880 = vld [vmem:[%s866 + $0x34] sm:$0xf]
      %v881 = vld [vmem:[%s866 + $0x38] sm:$0xf]
      %v882 = vld [vmem:[%s866 + $0x3c] sm:$0xf]
      %v899 = vunpack.c.l.b16 %v867
      %v900 = vunpack.c.l.b16 %v868
      %v901 = vunpack.c.l.b16 %v869
      %v902 = vunpack.c.l.b16 %v870
      %v903 = vunpack.c.l.b16 %v871
      %v904 = vunpack.c.l.b16 %v872
      %v905 = vunpack.c.l.b16 %v873
      %v906 = vunpack.c.l.b16 %v874
      %v907 = vunpack.c.l.b16 %v875
      %v908 = vunpack.c.l.b16 %v876
      %v909 = vunpack.c.l.b16 %v877
      %v910 = vunpack.c.l.b16 %v878
      %v911 = vunpack.c.l.b16 %v879
      %v912 = vunpack.c.l.b16 %v880
      %v913 = vunpack.c.l.b16 %v881
      %v914 = vunpack.c.l.b16 %v882
      %v915 = vpack.c.b16 %v900, %v899
      %v916 = vpack.c.b16 %v902, %v901
      %v917 = vpack.c.b16 %v904, %v903
      %v918 = vpack.c.b16 %v906, %v905
      %v919 = vpack.c.b16 %v908, %v907
      %v920 = vpack.c.b16 %v910, %v909
      %v921 = vpack.c.b16 %v912, %v911
      %v922 = vpack.c.b16 %v914, %v913
      %931 = vmatprep.subr.bf16.mxu0 0
      %932 = vmatpush1.bf16.msra.mxu0 %v915
      %933 = vmatprep.subr.bf16.mxu0 0
      %934 = vmatpush1.bf16.msra.mxu0 %v916
      %935 = vmatprep.subr.bf16.mxu0 0
      %936 = vmatpush1.bf16.msra.mxu0 %v917
      %937 = vmatprep.subr.bf16.mxu0 0
      %938 = vmatpush1.bf16.msra.mxu0 %v918
      %939 = vmatprep.subr.bf16.mxu0 0
      %940 = vmatpush1.bf16.msra.mxu0 %v919
      %941 = vmatprep.subr.bf16.mxu0 0
      %942 = vmatpush1.bf16.msra.mxu0 %v920
      %943 = vmatprep.subr.bf16.mxu0 0
      %944 = vmatpush1.bf16.msra.mxu0 %v921
      %945 = vmatprep.subr.bf16.mxu0 0
      %946 = vmatpush1.bf16.msra.mxu0 %v922
      %947 = vmatprep.subr.bf16.mxu0 0
      %948 = vmatpush1.bf16.msra.mxu0 0
      %949 = vmatprep.subr.bf16.mxu0 0
      %950 = vmatpush1.bf16.msra.mxu0 0
      %951 = vmatprep.subr.bf16.mxu0 0
      %952 = vmatpush1.bf16.msra.mxu0 0
      %953 = vmatprep.subr.bf16.mxu0 0
      %954 = vmatpush1.bf16.msra.mxu0 0
      %955 = vmatprep.subr.bf16.mxu0 0
      %956 = vmatpush1.bf16.msra.mxu0 0
      %957 = vmatprep.subr.bf16.mxu0 0
      %958 = vmatpush1.bf16.msra.mxu0 0
      %959 = vmatprep.subr.bf16.mxu0 0
      %960 = vmatpush1.bf16.msra.mxu0 0
      %961 = vmatprep.subr.bf16.mxu0 0
      %962 = vmatpush1.bf16.msra.mxu0 0
      %963 = vmatprep.mubr.bf16.mxu0 0
      %964 = vmatmul.mubr.bf16.gmra.mrb[0].mxu0 %v862
      %v965 = vpop.f32.mrb[0].mxu0
      %v966 = vadd.f32 0.0, %v965
      %v967 = vpop.f32.mrb[0].mxu0
      %v968 = vpop.f32.mrb[0].mxu0
      %v969 = vadd.f32 0.0, %v968
      %v970 = vpop.f32.mrb[0].mxu0
      %971 = vmatprep.mubr.bf16.mxu0 0
      %972 = vmatmul.mubr.bf16.gmra.mrb[0].mxu0 %v863
      %v973 = vpop.f32.mrb[0].mxu0
      %v974 = vadd.f32 0.0, %v973
      %v975 = vpop.f32.mrb[0].mxu0
      %v976 = vpop.f32.mrb[0].mxu0
      %v977 = vadd.f32 0.0, %v976
      %v978 = vpop.f32.mrb[0].mxu0
      %979 = vmatprep.mubr.bf16.mxu0 0
      %980 = vmatmul.mubr.bf16.gmra.mrb[0].mxu0 %v864
      %v981 = vpop.f32.mrb[0].mxu0
      %v982 = vadd.f32 0.0, %v981
      %v983 = vpop.f32.mrb[0].mxu0
      %v984 = vpop.f32.mrb[0].mxu0
      %v985 = vadd.f32 0.0, %v984
      %v986 = vpop.f32.mrb[0].mxu0
      %987 = vmatprep.mubr.bf16.mxu0 0
      %988 = vmatmul.mubr.bf16.gmra.mrb[0].mxu0 %v865
      %v989 = vpop.f32.mrb[0].mxu0
      %v990 = vadd.f32 0.0, %v989
      %v991 = vpop.f32.mrb[0].mxu0
      %v992 = vpop.f32.mrb[0].mxu0
      %v993 = vadd.f32 0.0, %v992
      %v994 = vpop.f32.mrb[0].mxu0
      %995 = vdwg.mxu0
      %v996 = vadd.f32 %v848, %v966
      %v997 = vadd.f32 %v849, %v969
      %v998 = vadd.f32 %v850, %v974
      %v999 = vadd.f32 %v851, %v977
      %v1000 = vadd.f32 %v852, %v982
      %v1001 = vadd.f32 %v853, %v985
      %v1002 = vadd.f32 %v854, %v990
      %v1003 = vadd.f32 %v855, %v993
      %v1004 = vrot.slane %v219, 2
      %v1005 = vrot.slane %v220, 2
      %v1006 = vsel %vm539, %v1004, %v1005
      %v1008 = vpack.c.bf16 %v548, %v545
      %v1009 = vpack.c.bf16 %v554, %v551
      %v1010 = vpack.c.bf16 %v560, %v557
      %v1011 = vpack.c.bf16 %v1006, %v563
      %s1012 = scalar_lea.vmem %s1, 320
      %v1013 = vld [vmem:[%s1012] sm:$0xf]
      %v1014 = vld [vmem:[%s1012 + $0x4] sm:$0xf]
      %v1015 = vld [vmem:[%s1012 + $0x8] sm:$0xf]
      %v1016 = vld [vmem:[%s1012 + $0xc] sm:$0xf]
      %v1017 = vld [vmem:[%s1012 + $0x10] sm:$0xf]
      %v1018 = vld [vmem:[%s1012 + $0x14] sm:$0xf]
      %v1019 = vld [vmem:[%s1012 + $0x18] sm:$0xf]
      %v1020 = vld [vmem:[%s1012 + $0x1c] sm:$0xf]
      %v1021 = vld [vmem:[%s1012 + $0x20] sm:$0xf]
      %v1022 = vld [vmem:[%s1012 + $0x24] sm:$0xf]
      %v1023 = vld [vmem:[%s1012 + $0x28] sm:$0xf]
      %v1024 = vld [vmem:[%s1012 + $0x2c] sm:$0xf]
      %v1025 = vld [vmem:[%s1012 + $0x30] sm:$0xf]
      %v1026 = vld [vmem:[%s1012 + $0x34] sm:$0xf]
      %v1027 = vld [vmem:[%s1012 + $0x38] sm:$0xf]
      %v1028 = vld [vmem:[%s1012 + $0x3c] sm:$0xf]
      %v1045 = vunpack.c.l.b16 %v1013
      %v1046 = vunpack.c.l.b16 %v1014
      %v1047 = vunpack.c.l.b16 %v1015
      %v1048 = vunpack.c.l.b16 %v1016
      %v1049 = vunpack.c.l.b16 %v1017
      %v1050 = vunpack.c.l.b16 %v1018
      %v1051 = vunpack.c.l.b16 %v1019
      %v1052 = vunpack.c.l.b16 %v1020
      %v1053 = vunpack.c.l.b16 %v1021
      %v1054 = vunpack.c.l.b16 %v1022
      %v1055 = vunpack.c.l.b16 %v1023
      %v1056 = vunpack.c.l.b16 %v1024
      %v1057 = vunpack.c.l.b16 %v1025
      %v1058 = vunpack.c.l.b16 %v1026
      %v1059 = vunpack.c.l.b16 %v1027
      %v1060 = vunpack.c.l.b16 %v1028
      %v1061 = vpack.c.b16 %v1046, %v1045
      %v1062 = vpack.c.b16 %v1048, %v1047
      %v1063 = vpack.c.b16 %v1050, %v1049
      %v1064 = vpack.c.b16 %v1052, %v1051
      %v1065 = vpack.c.b16 %v1054, %v1053
      %v1066 = vpack.c.b16 %v1056, %v1055
      %v1067 = vpack.c.b16 %v1058, %v1057
      %v1068 = vpack.c.b16 %v1060, %v1059
      %1077 = vmatprep.subr.bf16.mxu0 0
      %1078 = vmatpush1.bf16.msra.mxu0 %v1061
      %1079 = vmatprep.subr.bf16.mxu0 0
      %1080 = vmatpush1.bf16.msra.mxu0 %v1062
      %1081 = vmatprep.subr.bf16.mxu0 0
      %1082 = vmatpush1.bf16.msra.mxu0 %v1063
      %1083 = vmatprep.subr.bf16.mxu0 0
      %1084 = vmatpush1.bf16.msra.mxu0 %v1064
      %1085 = vmatprep.subr.bf16.mxu0 0
      %1086 = vmatpush1.bf16.msra.mxu0 %v1065
      %1087 = vmatprep.subr.bf16.mxu0 0
      %1088 = vmatpush1.bf16.msra.mxu0 %v1066
      %1089 = vmatprep.subr.bf16.mxu0 0
      %1090 = vmatpush1.bf16.msra.mxu0 %v1067
      %1091 = vmatprep.subr.bf16.mxu0 0
      %1092 = vmatpush1.bf16.msra.mxu0 %v1068
      %1093 = vmatprep.subr.bf16.mxu0 0
      %1094 = vmatpush1.bf16.msra.mxu0 0
      %1095 = vmatprep.subr.bf16.mxu0 0
      %1096 = vmatpush1.bf16.msra.mxu0 0
      %1097 = vmatprep.subr.bf16.mxu0 0
      %1098 = vmatpush1.bf16.msra.mxu0 0
      %1099 = vmatprep.subr.bf16.mxu0 0
      %1100 = vmatpush1.bf16.msra.mxu0 0
      %1101 = vmatprep.subr.bf16.mxu0 0
      %1102 = vmatpush1.bf16.msra.mxu0 0
      %1103 = vmatprep.subr.bf16.mxu0 0
      %1104 = vmatpush1.bf16.msra.mxu0 0
      %1105 = vmatprep.subr.bf16.mxu0 0
      %1106 = vmatpush1.bf16.msra.mxu0 0
      %1107 = vmatprep.subr.bf16.mxu0 0
      %1108 = vmatpush1.bf16.msra.mxu0 0
      %1109 = vmatprep.mubr.bf16.mxu0 0
      %1110 = vmatmul.mubr.bf16.gmra.mrb[0].mxu0 %v1008
      %v1111 = vpop.f32.mrb[0].mxu0
      %v1112 = vadd.f32 0.0, %v1111
      %v1113 = vpop.f32.mrb[0].mxu0
      %v1114 = vpop.f32.mrb[0].mxu0
      %v1115 = vadd.f32 0.0, %v1114
      %v1116 = vpop.f32.mrb[0].mxu0
      %1117 = vmatprep.mubr.bf16.mxu0 0
      %1118 = vmatmul.mubr.bf16.gmra.mrb[0].mxu0 %v1009
      %v1119 = vpop.f32.mrb[0].mxu0
      %v1120 = vadd.f32 0.0, %v1119
      %v1121 = vpop.f32.mrb[0].mxu0
      %v1122 = vpop.f32.mrb[0].mxu0
      %v1123 = vadd.f32 0.0, %v1122
      %v1124 = vpop.f32.mrb[0].mxu0
      %1125 = vmatprep.mubr.bf16.mxu0 0
      %1126 = vmatmul.mubr.bf16.gmra.mrb[0].mxu0 %v1010
      %v1127 = vpop.f32.mrb[0].mxu0
      %v1128 = vadd.f32 0.0, %v1127
      %v1129 = vpop.f32.mrb[0].mxu0
      %v1130 = vpop.f32.mrb[0].mxu0
      %v1131 = vadd.f32 0.0, %v1130
      %v1132 = vpop.f32.mrb[0].mxu0
      %1133 = vmatprep.mubr.bf16.mxu0 0
      %1134 = vmatmul.mubr.bf16.gmra.mrb[0].mxu0 %v1011
      %v1135 = vpop.f32.mrb[0].mxu0
      %v1136 = vadd.f32 0.0, %v1135
      %v1137 = vpop.f32.mrb[0].mxu0
      %v1138 = vpop.f32.mrb[0].mxu0
      %v1139 = vadd.f32 0.0, %v1138
      %v1140 = vpop.f32.mrb[0].mxu0
      %1141 = vdwg.mxu0
      %v1142 = vadd.f32 %v996, %v1112
      %v1143 = vadd.f32 %v997, %v1115
      %v1144 = vadd.f32 %v998, %v1120
      %v1145 = vadd.f32 %v999, %v1123
      %v1146 = vadd.f32 %v1000, %v1128
      %v1147 = vadd.f32 %v1001, %v1131
      %v1148 = vadd.f32 %v1002, %v1136
      %v1149 = vadd.f32 %v1003, %v1139
      %v1150 = vpack.c.bf16 %v221, %v219
      %s1151 = scalar_lea.vmem %s1, 384
      %v1152 = vld [vmem:[%s1151] sm:$0xf]
      %v1153 = vld [vmem:[%s1151 + $0x4] sm:$0xf]
      %v1154 = vld [vmem:[%s1151 + $0x8] sm:$0xf]
      %v1155 = vld [vmem:[%s1151 + $0xc] sm:$0xf]
      %v1156 = vld [vmem:[%s1151 + $0x10] sm:$0xf]
      %v1157 = vld [vmem:[%s1151 + $0x14] sm:$0xf]
      %v1158 = vld [vmem:[%s1151 + $0x18] sm:$0xf]
      %v1159 = vld [vmem:[%s1151 + $0x1c] sm:$0xf]
      %v1160 = vld [vmem:[%s1151 + $0x20] sm:$0xf]
      %v1161 = vld [vmem:[%s1151 + $0x24] sm:$0xf]
      %v1162 = vld [vmem:[%s1151 + $0x28] sm:$0xf]
      %v1163 = vld [vmem:[%s1151 + $0x2c] sm:$0xf]
      %v1164 = vld [vmem:[%s1151 + $0x30] sm:$0xf]
      %v1165 = vld [vmem:[%s1151 + $0x34] sm:$0xf]
      %v1166 = vld [vmem:[%s1151 + $0x38] sm:$0xf]
      %v1167 = vld [vmem:[%s1151 + $0x3c] sm:$0xf]
      %v1184 = vunpack.c.l.b16 %v1152
      %v1185 = vunpack.c.l.b16 %v1153
      %v1186 = vunpack.c.l.b16 %v1154
      %v1187 = vunpack.c.l.b16 %v1155
      %v1188 = vunpack.c.l.b16 %v1156
      %v1189 = vunpack.c.l.b16 %v1157
      %v1190 = vunpack.c.l.b16 %v1158
      %v1191 = vunpack.c.l.b16 %v1159
      %v1192 = vunpack.c.l.b16 %v1160
      %v1193 = vunpack.c.l.b16 %v1161
      %v1194 = vunpack.c.l.b16 %v1162
      %v1195 = vunpack.c.l.b16 %v1163
      %v1196 = vunpack.c.l.b16 %v1164
      %v1197 = vunpack.c.l.b16 %v1165
      %v1198 = vunpack.c.l.b16 %v1166
      %v1199 = vunpack.c.l.b16 %v1167
      %v1200 = vpack.c.b16 %v1185, %v1184
      %v1201 = vpack.c.b16 %v1187, %v1186
      %v1202 = vpack.c.b16 %v1189, %v1188
      %v1203 = vpack.c.b16 %v1191, %v1190
      %v1204 = vpack.c.b16 %v1193, %v1192
      %v1205 = vpack.c.b16 %v1195, %v1194
      %v1206 = vpack.c.b16 %v1197, %v1196
      %v1207 = vpack.c.b16 %v1199, %v1198
      %1216 = vmatprep.subr.bf16.mxu0 0
      %1217 = vmatpush1.bf16.msra.mxu0 %v1200
      %1218 = vmatprep.subr.bf16.mxu0 0
      %1219 = vmatpush1.bf16.msra.mxu0 %v1201
      %1220 = vmatprep.subr.bf16.mxu0 0
      %1221 = vmatpush1.bf16.msra.mxu0 %v1202
      %1222 = vmatprep.subr.bf16.mxu0 0
      %1223 = vmatpush1.bf16.msra.mxu0 %v1203
      %1224 = vmatprep.subr.bf16.mxu0 0
      %1225 = vmatpush1.bf16.msra.mxu0 %v1204
      %1226 = vmatprep.subr.bf16.mxu0 0
      %1227 = vmatpush1.bf16.msra.mxu0 %v1205
      %1228 = vmatprep.subr.bf16.mxu0 0
      %1229 = vmatpush1.bf16.msra.mxu0 %v1206
      %1230 = vmatprep.subr.bf16.mxu0 0
      %1231 = vmatpush1.bf16.msra.mxu0 %v1207
      %1232 = vmatprep.subr.bf16.mxu0 0
      %1233 = vmatpush1.bf16.msra.mxu0 0
      %1234 = vmatprep.subr.bf16.mxu0 0
      %1235 = vmatpush1.bf16.msra.mxu0 0
      %1236 = vmatprep.subr.bf16.mxu0 0
      %1237 = vmatpush1.bf16.msra.mxu0 0
      %1238 = vmatprep.subr.bf16.mxu0 0
      %1239 = vmatpush1.bf16.msra.mxu0 0
      %1240 = vmatprep.subr.bf16.mxu0 0
      %1241 = vmatpush1.bf16.msra.mxu0 0
      %1242 = vmatprep.subr.bf16.mxu0 0
      %1243 = vmatpush1.bf16.msra.mxu0 0
      %1244 = vmatprep.subr.bf16.mxu0 0
      %1245 = vmatpush1.bf16.msra.mxu0 0
      %1246 = vmatprep.subr.bf16.mxu0 0
      %1247 = vmatpush1.bf16.msra.mxu0 0
      %1248 = vmatprep.mubr.bf16.mxu0 0
      %1249 = vmatmul.mubr.bf16.gmra.mrb[0].mxu0 %v224
      %v1250 = vpop.f32.mrb[0].mxu0
      %v1251 = vadd.f32 0.0, %v1250
      %v1252 = vpop.f32.mrb[0].mxu0
      %v1253 = vpop.f32.mrb[0].mxu0
      %v1254 = vadd.f32 0.0, %v1253
      %v1255 = vpop.f32.mrb[0].mxu0
      %1256 = vmatprep.mubr.bf16.mxu0 0
      %1257 = vmatmul.mubr.bf16.gmra.mrb[0].mxu0 %v225
      %v1258 = vpop.f32.mrb[0].mxu0
      %v1259 = vadd.f32 0.0, %v1258
      %v1260 = vpop.f32.mrb[0].mxu0
      %v1261 = vpop.f32.mrb[0].mxu0
      %v1262 = vadd.f32 0.0, %v1261
      %v1263 = vpop.f32.mrb[0].mxu0
      %1264 = vmatprep.mubr.bf16.mxu0 0
      %1265 = vmatmul.mubr.bf16.gmra.mrb[0].mxu0 %v226
      %v1266 = vpop.f32.mrb[0].mxu0
      %v1267 = vadd.f32 0.0, %v1266
      %v1268 = vpop.f32.mrb[0].mxu0
      %v1269 = vpop.f32.mrb[0].mxu0
      %v1270 = vadd.f32 0.0, %v1269
      %v1271 = vpop.f32.mrb[0].mxu0
      %1272 = vmatprep.mubr.bf16.mxu0 0
      %1273 = vmatmul.mubr.bf16.gmra.mrb[0].mxu0 %v1150
      %v1274 = vpop.f32.mrb[0].mxu0
      %v1275 = vadd.f32 0.0, %v1274
      %v1276 = vpop.f32.mrb[0].mxu0
      %v1277 = vpop.f32.mrb[0].mxu0
      %v1278 = vadd.f32 0.0, %v1277
      %v1279 = vpop.f32.mrb[0].mxu0
      %1280 = vdwg.mxu0
      %v1281 = vadd.f32 %v1142, %v1251
      %v1282 = vadd.f32 %v1143, %v1254
      %v1283 = vadd.f32 %v1144, %v1259
      %v1284 = vadd.f32 %v1145, %v1262
      %v1285 = vadd.f32 %v1146, %v1267
      %v1286 = vadd.f32 %v1147, %v1270
      %v1287 = vadd.f32 %v1148, %v1275
      %v1288 = vadd.f32 %v1149, %v1278
      %v1291 = vrot.slane %v221, 1
      %v1292 = vrot.slane %v222, 1
      %v1293 = vsel %vm259, %v1291, %v1292
      %v1295 = vpack.c.bf16 %v1293, %v860
      %s1296 = scalar_lea.vmem %s1, 448
      %v1297 = vld [vmem:[%s1296] sm:$0xf]
      %v1298 = vld [vmem:[%s1296 + $0x4] sm:$0xf]
      %v1299 = vld [vmem:[%s1296 + $0x8] sm:$0xf]
      %v1300 = vld [vmem:[%s1296 + $0xc] sm:$0xf]
      %v1301 = vld [vmem:[%s1296 + $0x10] sm:$0xf]
      %v1302 = vld [vmem:[%s1296 + $0x14] sm:$0xf]
      %v1303 = vld [vmem:[%s1296 + $0x18] sm:$0xf]
      %v1304 = vld [vmem:[%s1296 + $0x1c] sm:$0xf]
      %v1305 = vld [vmem:[%s1296 + $0x20] sm:$0xf]
      %v1306 = vld [vmem:[%s1296 + $0x24] sm:$0xf]
      %v1307 = vld [vmem:[%s1296 + $0x28] sm:$0xf]
      %v1308 = vld [vmem:[%s1296 + $0x2c] sm:$0xf]
      %v1309 = vld [vmem:[%s1296 + $0x30] sm:$0xf]
      %v1310 = vld [vmem:[%s1296 + $0x34] sm:$0xf]
      %v1311 = vld [vmem:[%s1296 + $0x38] sm:$0xf]
      %v1312 = vld [vmem:[%s1296 + $0x3c] sm:$0xf]
      %v1329 = vunpack.c.l.b16 %v1297
      %v1330 = vunpack.c.l.b16 %v1298
      %v1331 = vunpack.c.l.b16 %v1299
      %v1332 = vunpack.c.l.b16 %v1300
      %v1333 = vunpack.c.l.b16 %v1301
      %v1334 = vunpack.c.l.b16 %v1302
      %v1335 = vunpack.c.l.b16 %v1303
      %v1336 = vunpack.c.l.b16 %v1304
      %v1337 = vunpack.c.l.b16 %v1305
      %v1338 = vunpack.c.l.b16 %v1306
      %v1339 = vunpack.c.l.b16 %v1307
      %v1340 = vunpack.c.l.b16 %v1308
      %v1341 = vunpack.c.l.b16 %v1309
      %v1342 = vunpack.c.l.b16 %v1310
      %v1343 = vunpack.c.l.b16 %v1311
      %v1344 = vunpack.c.l.b16 %v1312
      %v1345 = vpack.c.b16 %v1330, %v1329
      %v1346 = vpack.c.b16 %v1332, %v1331
      %v1347 = vpack.c.b16 %v1334, %v1333
      %v1348 = vpack.c.b16 %v1336, %v1335
      %v1349 = vpack.c.b16 %v1338, %v1337
      %v1350 = vpack.c.b16 %v1340, %v1339
      %v1351 = vpack.c.b16 %v1342, %v1341
      %v1352 = vpack.c.b16 %v1344, %v1343
      %1361 = vmatprep.subr.bf16.mxu0 0
      %1362 = vmatpush1.bf16.msra.mxu0 %v1345
      %1363 = vmatprep.subr.bf16.mxu0 0
      %1364 = vmatpush1.bf16.msra.mxu0 %v1346
      %1365 = vmatprep.subr.bf16.mxu0 0
      %1366 = vmatpush1.bf16.msra.mxu0 %v1347
      %1367 = vmatprep.subr.bf16.mxu0 0
      %1368 = vmatpush1.bf16.msra.mxu0 %v1348
      %1369 = vmatprep.subr.bf16.mxu0 0
      %1370 = vmatpush1.bf16.msra.mxu0 %v1349
      %1371 = vmatprep.subr.bf16.mxu0 0
      %1372 = vmatpush1.bf16.msra.mxu0 %v1350
      %1373 = vmatprep.subr.bf16.mxu0 0
      %1374 = vmatpush1.bf16.msra.mxu0 %v1351
      %1375 = vmatprep.subr.bf16.mxu0 0
      %1376 = vmatpush1.bf16.msra.mxu0 %v1352
      %1377 = vmatprep.subr.bf16.mxu0 0
      %1378 = vmatpush1.bf16.msra.mxu0 0
      %1379 = vmatprep.subr.bf16.mxu0 0
      %1380 = vmatpush1.bf16.msra.mxu0 0
      %1381 = vmatprep.subr.bf16.mxu0 0
      %1382 = vmatpush1.bf16.msra.mxu0 0
      %1383 = vmatprep.subr.bf16.mxu0 0
      %1384 = vmatpush1.bf16.msra.mxu0 0
      %1385 = vmatprep.subr.bf16.mxu0 0
      %1386 = vmatpush1.bf16.msra.mxu0 0
      %1387 = vmatprep.subr.bf16.mxu0 0
      %1388 = vmatpush1.bf16.msra.mxu0 0
      %1389 = vmatprep.subr.bf16.mxu0 0
      %1390 = vmatpush1.bf16.msra.mxu0 0
      %1391 = vmatprep.subr.bf16.mxu0 0
      %1392 = vmatpush1.bf16.msra.mxu0 0
      %1393 = vmatprep.mubr.bf16.mxu0 0
      %1394 = vmatmul.mubr.bf16.gmra.mrb[0].mxu0 %v293
      %v1395 = vpop.f32.mrb[0].mxu0
      %v1396 = vadd.f32 0.0, %v1395
      %v1397 = vpop.f32.mrb[0].mxu0
      %v1398 = vpop.f32.mrb[0].mxu0
      %v1399 = vadd.f32 0.0, %v1398
      %v1400 = vpop.f32.mrb[0].mxu0
      %1401 = vmatprep.mubr.bf16.mxu0 0
      %1402 = vmatmul.mubr.bf16.gmra.mrb[0].mxu0 %v294
      %v1403 = vpop.f32.mrb[0].mxu0
      %v1404 = vadd.f32 0.0, %v1403
      %v1405 = vpop.f32.mrb[0].mxu0
      %v1406 = vpop.f32.mrb[0].mxu0
      %v1407 = vadd.f32 0.0, %v1406
      %v1408 = vpop.f32.mrb[0].mxu0
      %1409 = vmatprep.mubr.bf16.mxu0 0
      %1410 = vmatmul.mubr.bf16.gmra.mrb[0].mxu0 %v295
      %v1411 = vpop.f32.mrb[0].mxu0
      %v1412 = vadd.f32 0.0, %v1411
      %v1413 = vpop.f32.mrb[0].mxu0
      %v1414 = vpop.f32.mrb[0].mxu0
      %v1415 = vadd.f32 0.0, %v1414
      %v1416 = vpop.f32.mrb[0].mxu0
      %1417 = vmatprep.mubr.bf16.mxu0 0
      %1418 = vmatmul.mubr.bf16.gmra.mrb[0].mxu0 %v1295
      %v1419 = vpop.f32.mrb[0].mxu0
      %v1420 = vadd.f32 0.0, %v1419
      %v1421 = vpop.f32.mrb[0].mxu0
      %v1422 = vpop.f32.mrb[0].mxu0
      %v1423 = vadd.f32 0.0, %v1422
      %v1424 = vpop.f32.mrb[0].mxu0
      %1425 = vdwg.mxu0
      %v1426 = vadd.f32 %v1281, %v1396
      %v1427 = vadd.f32 %v1282, %v1399
      %v1428 = vadd.f32 %v1283, %v1404
      %v1429 = vadd.f32 %v1284, %v1407
      %v1430 = vadd.f32 %v1285, %v1412
      %v1431 = vadd.f32 %v1286, %v1415
      %v1432 = vadd.f32 %v1287, %v1420
      %v1433 = vadd.f32 %v1288, %v1423
      %v1434 = vrot.slane %v221, 2
      %v1435 = vrot.slane %v222, 2
      %v1436 = vsel %vm539, %v1434, %v1435
      %v1438 = vpack.c.bf16 %v1436, %v1006
      %s1439 = scalar_lea.vmem %s1, 512
      %v1440 = vld [vmem:[%s1439] sm:$0xf]
      %v1441 = vld [vmem:[%s1439 + $0x4] sm:$0xf]
      %v1442 = vld [vmem:[%s1439 + $0x8] sm:$0xf]
      %v1443 = vld [vmem:[%s1439 + $0xc] sm:$0xf]
      %v1444 = vld [vmem:[%s1439 + $0x10] sm:$0xf]
      %v1445 = vld [vmem:[%s1439 + $0x14] sm:$0xf]
      %v1446 = vld [vmem:[%s1439 + $0x18] sm:$0xf]
      %v1447 = vld [vmem:[%s1439 + $0x1c] sm:$0xf]
      %v1448 = vld [vmem:[%s1439 + $0x20] sm:$0xf]
      %v1449 = vld [vmem:[%s1439 + $0x24] sm:$0xf]
      %v1450 = vld [vmem:[%s1439 + $0x28] sm:$0xf]
      %v1451 = vld [vmem:[%s1439 + $0x2c] sm:$0xf]
      %v1452 = vld [vmem:[%s1439 + $0x30] sm:$0xf]
      %v1453 = vld [vmem:[%s1439 + $0x34] sm:$0xf]
      %v1454 = vld [vmem:[%s1439 + $0x38] sm:$0xf]
      %v1455 = vld [vmem:[%s1439 + $0x3c] sm:$0xf]
      %v1472 = vunpack.c.l.b16 %v1440
      %v1473 = vunpack.c.l.b16 %v1441
      %v1474 = vunpack.c.l.b16 %v1442
      %v1475 = vunpack.c.l.b16 %v1443
      %v1476 = vunpack.c.l.b16 %v1444
      %v1477 = vunpack.c.l.b16 %v1445
      %v1478 = vunpack.c.l.b16 %v1446
      %v1479 = vunpack.c.l.b16 %v1447
      %v1480 = vunpack.c.l.b16 %v1448
      %v1481 = vunpack.c.l.b16 %v1449
      %v1482 = vunpack.c.l.b16 %v1450
      %v1483 = vunpack.c.l.b16 %v1451
      %v1484 = vunpack.c.l.b16 %v1452
      %v1485 = vunpack.c.l.b16 %v1453
      %v1486 = vunpack.c.l.b16 %v1454
      %v1487 = vunpack.c.l.b16 %v1455
      %v1488 = vpack.c.b16 %v1473, %v1472
      %v1489 = vpack.c.b16 %v1475, %v1474
      %v1490 = vpack.c.b16 %v1477, %v1476
      %v1491 = vpack.c.b16 %v1479, %v1478
      %v1492 = vpack.c.b16 %v1481, %v1480
      %v1493 = vpack.c.b16 %v1483, %v1482
      %v1494 = vpack.c.b16 %v1485, %v1484
      %v1495 = vpack.c.b16 %v1487, %v1486
      %1504 = vmatprep.subr.bf16.mxu0 0
      %1505 = vmatpush1.bf16.msra.mxu0 %v1488
      %1506 = vmatprep.subr.bf16.mxu0 0
      %1507 = vmatpush1.bf16.msra.mxu0 %v1489
      %1508 = vmatprep.subr.bf16.mxu0 0
      %1509 = vmatpush1.bf16.msra.mxu0 %v1490
      %1510 = vmatprep.subr.bf16.mxu0 0
      %1511 = vmatpush1.bf16.msra.mxu0 %v1491
      %1512 = vmatprep.subr.bf16.mxu0 0
      %1513 = vmatpush1.bf16.msra.mxu0 %v1492
      %1514 = vmatprep.subr.bf16.mxu0 0
      %1515 = vmatpush1.bf16.msra.mxu0 %v1493
      %1516 = vmatprep.subr.bf16.mxu0 0
      %1517 = vmatpush1.bf16.msra.mxu0 %v1494
      %1518 = vmatprep.subr.bf16.mxu0 0
      %1519 = vmatpush1.bf16.msra.mxu0 %v1495
      %1520 = vmatprep.subr.bf16.mxu0 0
      %1521 = vmatpush1.bf16.msra.mxu0 0
      %1522 = vmatprep.subr.bf16.mxu0 0
      %1523 = vmatpush1.bf16.msra.mxu0 0
      %1524 = vmatprep.subr.bf16.mxu0 0
      %1525 = vmatpush1.bf16.msra.mxu0 0
      %1526 = vmatprep.subr.bf16.mxu0 0
      %1527 = vmatpush1.bf16.msra.mxu0 0
      %1528 = vmatprep.subr.bf16.mxu0 0
      %1529 = vmatpush1.bf16.msra.mxu0 0
      %1530 = vmatprep.subr.bf16.mxu0 0
      %1531 = vmatpush1.bf16.msra.mxu0 0
      %1532 = vmatprep.subr.bf16.mxu0 0
      %1533 = vmatpush1.bf16.msra.mxu0 0
      %1534 = vmatprep.subr.bf16.mxu0 0
      %1535 = vmatpush1.bf16.msra.mxu0 0
      %1536 = vmatprep.mubr.bf16.mxu0 0
      %1537 = vmatmul.mubr.bf16.gmra.mrb[0].mxu0 %v573
      %v1538 = vpop.f32.mrb[0].mxu0
      %v1539 = vadd.f32 0.0, %v1538
      %v1540 = vpop.f32.mrb[0].mxu0
      %v1541 = vpop.f32.mrb[0].mxu0
      %v1542 = vadd.f32 0.0, %v1541
      %v1543 = vpop.f32.mrb[0].mxu0
      %1544 = vmatprep.mubr.bf16.mxu0 0
      %1545 = vmatmul.mubr.bf16.gmra.mrb[0].mxu0 %v574
      %v1546 = vpop.f32.mrb[0].mxu0
      %v1547 = vadd.f32 0.0, %v1546
      %v1548 = vpop.f32.mrb[0].mxu0
      %v1549 = vpop.f32.mrb[0].mxu0
      %v1550 = vadd.f32 0.0, %v1549
      %v1551 = vpop.f32.mrb[0].mxu0
      %1552 = vmatprep.mubr.bf16.mxu0 0
      %1553 = vmatmul.mubr.bf16.gmra.mrb[0].mxu0 %v575
      %v1554 = vpop.f32.mrb[0].mxu0
      %v1555 = vadd.f32 0.0, %v1554
      %v1556 = vpop.f32.mrb[0].mxu0
      %v1557 = vpop.f32.mrb[0].mxu0
      %v1558 = vadd.f32 0.0, %v1557
      %v1559 = vpop.f32.mrb[0].mxu0
      %1560 = vmatprep.mubr.bf16.mxu0 0
      %1561 = vmatmul.mubr.bf16.gmra.mrb[0].mxu0 %v1438
      %v1562 = vpop.f32.mrb[0].mxu0
      %v1563 = vadd.f32 0.0, %v1562
      %v1564 = vpop.f32.mrb[0].mxu0
      %v1565 = vpop.f32.mrb[0].mxu0
      %v1566 = vadd.f32 0.0, %v1565
      %v1567 = vpop.f32.mrb[0].mxu0
      %1568 = vdwg.mxu0
      %v1569 = vadd.f32 %v1426, %v1539
      %v1570 = vadd.f32 %v1427, %v1542
      %v1571 = vadd.f32 %v1428, %v1547
      %v1572 = vadd.f32 %v1429, %v1550
      %v1573 = vadd.f32 %v1430, %v1555
      %v1574 = vadd.f32 %v1431, %v1558
      %v1575 = vadd.f32 %v1432, %v1563
      %v1576 = vadd.f32 %v1433, %v1566
      %v1577 = vpack.c.bf16 %v1569, %v1569
      %v1578 = vpack.c.bf16 %v1570, %v1570
      %v1579 = vpack.c.bf16 %v1571, %v1571
      %v1580 = vpack.c.bf16 %v1572, %v1572
      %v1581 = vpack.c.bf16 %v1573, %v1573
      %v1582 = vpack.c.bf16 %v1574, %v1574
      %v1583 = vpack.c.bf16 %v1575, %v1575
      %v1584 = vpack.c.bf16 %v1576, %v1576
      %1585 = vst [vmem:[%s177] sm:$0xf] %v1577
      %1586 = vst [vmem:[%s177 + $0x4] sm:$0xf] %v1578
      %1587 = vst [vmem:[%s177 + $0x8] sm:$0xf] %v1579
      %1588 = vst [vmem:[%s177 + $0xc] sm:$0xf] %v1580
      %1589 = vst [vmem:[%s177 + $0x10] sm:$0xf] %v1581
      %1590 = vst [vmem:[%s177 + $0x14] sm:$0xf] %v1582
      %1591 = vst [vmem:[%s177 + $0x18] sm:$0xf] %v1583
      %1592 = vst [vmem:[%s177 + $0x1c] sm:$0xf] %v1584
      %v1593 = vadd.f32 %v1569, %v1570
      %v1594 = vadd.f32 %v1593, %v1571
      %v1595 = vadd.f32 %v1594, %v1572
      %v1596 = vadd.f32 %v1595, %v1573
      %v1597 = vadd.f32 %v1596, %v1574
      %v1598 = vadd.f32 %v1597, %v1575
      %v1599 = vadd.f32 %v1598, %v1576
      %v1600 = vrot.slane %v1599, 4
      %v1601 = vadd.f32 %v1599, %v1600
      %v1602 = vrot.slane %v1601, 2
      %v1603 = vadd.f32 %v1601, %v1602
      %v1604 = vrot.slane %v1603, 1
      %v1605 = vadd.f32 %v1603, %v1604
      %v1606 = vmul.f32 %v1569, %v1569
      %v1607 = vmul.f32 %v1570, %v1570
      %v1608 = vmul.f32 %v1571, %v1571
      %v1609 = vmul.f32 %v1572, %v1572
      %v1610 = vmul.f32 %v1573, %v1573
      %v1611 = vmul.f32 %v1574, %v1574
      %v1612 = vmul.f32 %v1575, %v1575
      %v1613 = vmul.f32 %v1576, %v1576
      %v1614 = vadd.f32 %v1606, %v1607
      %v1615 = vadd.f32 %v1614, %v1608
      %v1616 = vadd.f32 %v1615, %v1609
      %v1617 = vadd.f32 %v1616, %v1610
      %v1618 = vadd.f32 %v1617, %v1611
      %v1619 = vadd.f32 %v1618, %v1612
      %v1620 = vadd.f32 %v1619, %v1613
      %v1621 = vrot.slane %v1620, 4
      %v1622 = vadd.f32 %v1620, %v1621
      %v1623 = vrot.slane %v1622, 2
      %v1624 = vadd.f32 %v1622, %v1623
      %v1625 = vrot.slane %v1624, 1
      %v1626 = vadd.f32 %v1624, %v1625
      %vm1627 = vcmask 1040384
      %v1628 = vsel %vm1627, %v1605, %v1626
      %1629 = vst [vmem:[%s181] sm:$0x3] %v1628
      %p1630 = scmp.lt.s32.totalorder %s15, 1
      %s1631 = scalar_select %p1630, %s15, 1
      %s1632 = smul.addr %s1631, 8
      %s1633 = smul.addr %s1632, 4
      %s1634 = scalar_lea.vmem %s2, %s1633
      %p1635 = scmp.lt.s32.totalorder %s15, 1
      %s1636 = scalar_select %p1635, %s15, 1
      %s1637 = smul.addr %s1636, 2
      %s1638 = scalar_lea.vmem %s3, %s1637
      // Predicated region
      $region29: #{basic_block_forward.7} parent=27 // pred_check
        %p1639 = pneg %p80
      $region30: #{basic_block_forward.7} parent=27 // pred_check_branch
        %1641 = sbr.rel (%p1639) target = $region32
      $region31: #{basic_block_forward.7} parent=27 // pred_region
        _
      $region32: #{basic_block_forward.7} parent=27 // pred_fallthru
        _
      // Predicated region
      $region33: #{basic_block_forward.7} parent=27 // pred_check
        %p1642 = pneg %p106
      $region34: #{basic_block_forward.7} parent=27 // pred_check_branch
        %1644 = sbr.rel (%p1642) target = $region36
      $region35: #{basic_block_forward.7} parent=27 // pred_region
        _
      $region36: #{basic_block_forward.7} parent=27 // pred_fallthru
        _
    $region28: #{basic_block_forward.7} parent=5 // pred_fallthru
      _
    %p1645 = scmp.le.s32.totalorder 2, %s10
    // Predicated region
    $region37: #{basic_block_forward.7} parent=5 // pred_check
      %p1646 = pneg %p1645
    $region38: #{basic_block_forward.7} parent=5 // pred_check_branch
      %1648 = sbr.rel (%p1646) target = $region40
    $region39: #{basic_block_forward.7} parent=5 // pred_region
      %s1649 = ssub.s32 %s10, 2
      // Predicated region
      $region41: #{basic_block_forward.7} parent=39 // pred_check
        %p1650 = pneg %p86
      $region42: #{basic_block_forward.7} parent=39 // pred_check_branch
        %1652 = sbr.rel (%p1650) target = $region44
      $region43: #{basic_block_forward.7} parent=39 // pred_region
        %p1653 = scmp.lt.s32.totalorder %s16, 1
        %s1654 = scalar_select %p1653, %s16, 1
        %s1655 = smul.addr %s1654, 8
        %s1656 = smul.addr %s1655, 4
        %s1657 = scalar_lea.vmem %s2, %s1656
      $region44: #{basic_block_forward.7} parent=39 // pred_fallthru
        _
      // Predicated region
      $region45: #{basic_block_forward.7} parent=39 // pred_check
        %p1658 = pneg %p112
      $region46: #{basic_block_forward.7} parent=39 // pred_check_branch
        %1660 = sbr.rel (%p1658) target = $region48
      $region47: #{basic_block_forward.7} parent=39 // pred_region
        %p1661 = scmp.lt.s32.totalorder %s16, 1
        %s1662 = scalar_select %p1661, %s16, 1
        %s1663 = smul.addr %s1662, 2
        %s1664 = scalar_lea.vmem %s3, %s1663
      $region48: #{basic_block_forward.7} parent=39 // pred_fallthru
        _
    $region40: #{basic_block_forward.7} parent=5 // pred_fallthru
      _
  $region6: #{basic_block_forward.7} parent=0 // loop_footer
    %s14 = sadd.s32 1, %s10
  $region7: #{basic_block_forward.7} parent=0 // loop_footer_branch
    %9 = sbr.rel target = $region3
  $region8: #{basic_block_forward.7} parent=0 // loop_exit
    _

</llo_original>
